<compile_context>
chip_gen: v6e
topology: v6e:2x2x1
jax: 0.10.0
libtpu: 0.0.40
codegen_flags: <defaults>
</compile_context>

<pallas_src>
import functools
import math

import jax
import jax.numpy as jnp
from jax.experimental import pallas as pl
from jax.experimental.pallas import tpu as pltpu


# -----------------------------------------------------------------------------
# Kernel: one grid step == one batch-chunk.  Weights are VMEM-resident
# (constant index_map); (h, c) state is carried in VMEM scratch across chunks.
# -----------------------------------------------------------------------------
def _lstm_kernel(num_layers, seq_len, batch, hidden_dim, *refs):
    H = hidden_dim
    B = batch
    S = seq_len

    idx = 0
    x_ref = refs[idx]; idx += 1                       # (S*B, D)  rows = t*B + b
    layer_refs = []
    for _ in range(num_layers):
        layer_refs.append(refs[idx:idx + 3])          # w_ih_T(bf16), w_hh_T(bf16), bias(f32)
        idx += 3
    w1_ref, b1_ref, w2_ref, b2_ref, w3_ref, b3_ref = refs[idx:idx + 6]
    idx += 6
    y_ref = refs[idx]; idx += 1                       # (B, O2)
    h_ref, c_ref, seq_ref, lin_ref = refs[idx:idx + 4]

    # Zero the carried (h, c) state on the first batch-chunk only.
    @pl.when(pl.program_id(0) == 0)
    def _():
        h_ref[...] = jnp.zeros_like(h_ref)
        c_ref[...] = jnp.zeros_like(c_ref)

    # Static lane mask selecting the "g" (tanh) gate inside the packed (B, 4H)
    # gate vector; PyTorch gate order is (i, f, g, o).
    lane = jax.lax.broadcasted_iota(jnp.int32, (B, 4 * H), 1)
    is_g = jnp.logical_and(lane >= 2 * H, lane < 3 * H)

    layer_in = x_ref[...].astype(jnp.bfloat16)        # (S*B, D_in)

    for l in range(num_layers):
        w_ih_ref, w_hh_ref, bias_ref = layer_refs[l]
        wh = w_hh_ref[...]                            # (H, 4H) bf16

        # Non-recurrent projection of all timesteps at once (+ combined bias).
        pre = (jnp.dot(layer_in, w_ih_ref[...],
                       preferred_element_type=jnp.float32)
               + bias_ref[...])                       # (S*B, 4H) f32

        h = h_ref[l]                                  # (B, H) f32
        c = c_ref[l]                                  # (B, H) f32
        is_top = (l == num_layers - 1)

        for t in range(S):                            # short static loop: unrolled
            gates = pre[t * B:(t + 1) * B, :] + jnp.dot(
                h.astype(jnp.bfloat16), wh,
                preferred_element_type=jnp.float32)   # (B, 4H) f32
            # Full-width sigmoid + tanh once, then select the tanh lanes.
            act = jnp.where(is_g, jnp.tanh(gates), jax.nn.sigmoid(gates))
            i_g = act[:, 0 * H:1 * H]
            f_g = act[:, 1 * H:2 * H]
            g_g = act[:, 2 * H:3 * H]
            o_g = act[:, 3 * H:4 * H]
            c = f_g * c + i_g * g_g
            h = o_g * jnp.tanh(c)
            if is_top:
                # t-major flattening for linear1: columns [t*H:(t+1)*H] = h_t
                lin_ref[:, t * H:(t + 1) * H] = h
            else:
                # layer-to-layer handoff, rows = t*B + b
                seq_ref[t * B:(t + 1) * B, :] = h

        h_ref[l] = h
        c_ref[l] = c
        if not is_top:
            layer_in = seq_ref[...].astype(jnp.bfloat16)   # (S*B, H)

    # Heads: one K = S*H matmul, then two small matmuls.
    lin_in = lin_ref[...].astype(jnp.bfloat16)        # (B, S*H)
    y1 = jnp.dot(lin_in, w1_ref[...],
                 preferred_element_type=jnp.float32) + b1_ref[...]
    y2 = jnp.dot(y1.astype(jnp.bfloat16), w2_ref[...],
                 preferred_element_type=jnp.float32) + b2_ref[...]
    y3 = jnp.dot(y2.astype(jnp.bfloat16), w3_ref[...],
                 preferred_element_type=jnp.float32) + b3_ref[...]
    y_ref[...] = y3


# -----------------------------------------------------------------------------
# Wrapper
# -----------------------------------------------------------------------------
class LSTMPallas:
    def __init__(self, input_dim, hidden_dim, batch_size, output_dim,
                 num_layers, seq_len, key):
        self.input_dim = input_dim
        self.hidden_dim = hidden_dim
        self.batch_size = batch_size
        self.output_dim = output_dim
        self.num_layers = num_layers
        self.seq_len = seq_len
        self.params = self._init_params(key)
        self._calls = {}   # keyed by num_chunks

    # -- parameter init (PyTorch-style uniform); weights stored bf16, biases f32
    def _init_params(self, key):
        H, D, S = self.hidden_dim, self.input_dim, self.seq_len
        O0, O1, O2 = self.output_dim
        p = {}
        k = 1.0 / math.sqrt(H)
        keys = jax.random.split(key, 4 * self.num_layers + 6)
        ki = 0

        def u(shape, scale):
            nonlocal ki
            v = jax.random.uniform(keys[ki], shape, jnp.float32, -scale, scale)
            ki += 1
            return v

        for l in range(self.num_layers):
            d_in = D if l == 0 else H
            p[f"w_ih_T_{l}"] = u((4 * H, d_in), k).T.astype(jnp.bfloat16)  # (d_in, 4H)
            p[f"w_hh_T_{l}"] = u((4 * H, H), k).T.astype(jnp.bfloat16)     # (H, 4H)
            # combined bias b_ih + b_hh, hoisted to host
            p[f"bias_{l}"] = (u((4 * H,), k) + u((4 * H,), k)).reshape(1, 4 * H)
        k1 = 1.0 / math.sqrt(H * S)
        p["w1_T"] = u((O0, H * S), k1).T.astype(jnp.bfloat16)              # (S*H, O0)
        p["b1"] = u((O0,), k1).reshape(1, O0)
        k2 = 1.0 / math.sqrt(O0)
        p["w2_T"] = u((O1, O0), k2).T.astype(jnp.bfloat16)                 # (O0, O1)
        p["b2"] = u((O1,), k2).reshape(1, O1)
        k3 = 1.0 / math.sqrt(O1)
        p["w3_T"] = u((O2, O1), k3).T.astype(jnp.bfloat16)                 # (O1, O2)
        p["b3"] = u((O2,), k3).reshape(1, O2)
        return p

    def _get_call(self, num_chunks):
        if num_chunks in self._calls:
            return self._calls[num_chunks]

        S, B, D, H = self.seq_len, self.batch_size, self.input_dim, self.hidden_dim
        O0, O1, O2 = self.output_dim
        kernel = functools.partial(_lstm_kernel, self.num_layers, S, B, H)

        def resident(shape):
            # full-array block + constant index_map => DMA'd once, VMEM-resident
            return pl.BlockSpec(shape, lambda c, _n=len(shape): (0,) * _n)

        in_specs = [pl.BlockSpec((None, S * B, D), lambda c: (c, 0, 0))]
        for l in range(self.num_layers):
            d_in = D if l == 0 else H
            in_specs += [resident((d_in, 4 * H)),
                         resident((H, 4 * H)),
                         resident((1, 4 * H))]
        in_specs += [resident((S * H, O0)), resident((1, O0)),
                     resident((O0, O1)), resident((1, O1)),
                     resident((O1, O2)), resident((1, O2))]

        out_specs = pl.BlockSpec((None, B, O2), lambda c: (c, 0, 0))

        call = pl.pallas_call(
            kernel,
            grid=(num_chunks,),
            out_shape=jax.ShapeDtypeStruct((num_chunks, B, O2), jnp.float32),
            in_specs=in_specs,
            out_specs=out_specs,
            scratch_shapes=[
                pltpu.VMEM((self.num_layers, B, H), jnp.float32),  # h state
                pltpu.VMEM((self.num_layers, B, H), jnp.float32),  # c state
                pltpu.VMEM((S * B, H), jnp.float32),               # layer->layer seq buffer
                pltpu.VMEM((B, S * H), jnp.float32),               # flattened top output
            ],
            compiler_params=pltpu.CompilerParams(
                dimension_semantics=("arbitrary",),   # chunks carry (h, c): serial
                vmem_limit_bytes=32 * 1024 * 1024,
            ),
        )
        self._calls[num_chunks] = call
        return call

    def forward(self, x):
        """x: (seq_len, total_batch, input_dim) -> (total_batch, output_dim[2])."""
        S, B, D = self.seq_len, self.batch_size, self.input_dim
        total_batch = x.shape[1]
        assert total_batch % B == 0, "total batch must be a multiple of batch_size"
        num_chunks = total_batch // B

        # (S, total_batch, D) -> (num_chunks, S*B, D); within a chunk row = t*B + b.
        x_r = (x.reshape(S, num_chunks, B, D)
                .transpose(1, 0, 2, 3)
                .reshape(num_chunks, S * B, D))

        flat = [x_r]
        for l in range(self.num_layers):
            flat += [self.params[f"w_ih_T_{l}"], self.params[f"w_hh_T_{l}"],
                     self.params[f"bias_{l}"]]
        flat += [self.params["w1_T"], self.params["b1"],
                 self.params["w2_T"], self.params["b2"],
                 self.params["w3_T"], self.params["b3"]]

        y = self._get_call(num_chunks)(*flat)          # (num_chunks, B, O2)
        return y.reshape(num_chunks * B, self.output_dim[2])


# -----------------------------------------------------------------------------
# Pure-JAX reference (same math / same bf16 MXU casting as the kernel)
# -----------------------------------------------------------------------------
def reference_forward(model: LSTMPallas, x):
    H, B, S = model.hidden_dim, model.batch_size, model.seq_len
    total_batch = x.shape[1]
    num_chunks = total_batch // B
    h = jnp.zeros((model.num_layers, B, H), jnp.float32)
    c = jnp.zeros_like(h)
    outs_all = []
    for x_chunk in jnp.split(x, num_chunks, axis=1):          # (S, B, D)
        layer_in = x_chunk.reshape(S * B, model.input_dim)    # rows = t*B + b
        new_h, new_c = [], []
        outs = []
        for l in range(model.num_layers):
            wi = model.params[f"w_ih_T_{l}"]
            wh = model.params[f"w_hh_T_{l}"]
            bias = model.params[f"bias_{l}"]
            pre = jnp.dot(layer_in.astype(jnp.bfloat16), wi,
                          preferred_element_type=jnp.float32) + bias
            hl, cl = h[l], c[l]
            outs = []
            for t in range(S):
                gates = pre[t * B:(t + 1) * B] + jnp.dot(
                    hl.astype(jnp.bfloat16), wh,
                    preferred_element_type=jnp.float32)
                i_g = jax.nn.sigmoid(gates[:, 0 * H:1 * H])
                f_g = jax.nn.sigmoid(gates[:, 1 * H:2 * H])
                g_g = jnp.tanh(gates[:, 2 * H:3 * H])
                o_g = jax.nn.sigmoid(gates[:, 3 * H:4 * H])
                cl = f_g * cl + i_g * g_g
                hl = o_g * jnp.tanh(cl)
                outs.append(hl)
            new_h.append(hl); new_c.append(cl)
            layer_in = jnp.concatenate(outs, axis=0)           # (S*B, H)
        h = jnp.stack(new_h); c = jnp.stack(new_c)
        lin_in = jnp.concatenate(outs, axis=1)                 # (B, S*H), t-major
        y = jnp.dot(lin_in.astype(jnp.bfloat16), model.params["w1_T"],
                    preferred_element_type=jnp.float32) + model.params["b1"]
        y = jnp.dot(y.astype(jnp.bfloat16), model.params["w2_T"],
                    preferred_element_type=jnp.float32) + model.params["b2"]
        y = jnp.dot(y.astype(jnp.bfloat16), model.params["w3_T"],
                    preferred_element_type=jnp.float32) + model.params["b3"]
        outs_all.append(y)
    return jnp.concatenate(outs_all, axis=0)


if __name__ == "__main__":
    input_dim = 16
    hidden_dim = 32
    batch_size = 2
    output_dim = (64, 32, 8)
    num_layers = 2
    seq_len = 8
    total_batch = 4       # -> 2 chunks of batch_size

    root = jax.random.PRNGKey(0)
    k_params, k_x = jax.random.split(root)
    model = LSTMPallas(input_dim, hidden_dim, batch_size, output_dim,
                       num_layers, seq_len, k_params)

    x = jax.random.normal(k_x, (seq_len, total_batch, input_dim), jnp.float32)

    out = jax.block_until_ready(model.forward(x))
    ref = jax.block_until_ready(reference_forward(model, x))

    assert out.shape == (total_batch, output_dim[2]), out.shape
    assert jnp.allclose(out, ref, rtol=2e-3, atol=2e-3), (
        float(jnp.max(jnp.abs(out - ref))))

    print("KERNEL_OK")
</pallas_src>

<mosaic_0001>
module attributes {stable_mosaic.version = 11 : i64} {
  func.func @_lstm_kernel(%arg0: i32, %arg1: memref<1x16x16xf32, #tpu.memory_space<vmem>>, %arg2: memref<16x128xbf16, #tpu.memory_space<vmem>>, %arg3: memref<32x128xbf16, #tpu.memory_space<vmem>>, %arg4: memref<1x128xf32, #tpu.memory_space<vmem>>, %arg5: memref<32x128xbf16, #tpu.memory_space<vmem>>, %arg6: memref<32x128xbf16, #tpu.memory_space<vmem>>, %arg7: memref<1x128xf32, #tpu.memory_space<vmem>>, %arg8: memref<256x64xbf16, #tpu.memory_space<vmem>>, %arg9: memref<1x64xf32, #tpu.memory_space<vmem>>, %arg10: memref<64x32xbf16, #tpu.memory_space<vmem>>, %arg11: memref<1x32xf32, #tpu.memory_space<vmem>>, %arg12: memref<32x8xbf16, #tpu.memory_space<vmem>>, %arg13: memref<1x8xf32, #tpu.memory_space<vmem>>, %arg14: memref<1x2x8xf32, #tpu.memory_space<vmem>>, %arg15: memref<2x2x32xf32, #tpu.memory_space<vmem>>, %arg16: memref<2x2x32xf32, #tpu.memory_space<vmem>>, %arg17: memref<16x32xf32, #tpu.memory_space<vmem>>, %arg18: memref<2x256xf32, #tpu.memory_space<vmem>>) attributes {dimension_semantics = [#tpu.dimension_semantics<arbitrary>], iteration_bounds = array<i64: 2>, scalar_prefetch = 0 : i64, scratch_operands = 4 : i64, tpu.core_type = #tpu.core_type<tc>, window_params = [{transform_indices = @transform_0, window_bounds = array<i64: 1, 16, 16>}, {pipeline_mode = #tpu.pipeline_mode<synchronous>, transform_indices = @transform_1, window_bounds = array<i64: 16, 128>}, {pipeline_mode = #tpu.pipeline_mode<synchronous>, transform_indices = @transform_2, window_bounds = array<i64: 32, 128>}, {pipeline_mode = #tpu.pipeline_mode<synchronous>, transform_indices = @transform_3, window_bounds = array<i64: 1, 128>}, {pipeline_mode = #tpu.pipeline_mode<synchronous>, transform_indices = @transform_4, window_bounds = array<i64: 32, 128>}, {pipeline_mode = #tpu.pipeline_mode<synchronous>, transform_indices = @transform_5, window_bounds = array<i64: 32, 128>}, {pipeline_mode = #tpu.pipeline_mode<synchronous>, transform_indices = @transform_6, window_bounds = array<i64: 1, 128>}, {pipeline_mode = #tpu.pipeline_mode<synchronous>, transform_indices = @transform_7, window_bounds = array<i64: 256, 64>}, {pipeline_mode = #tpu.pipeline_mode<synchronous>, transform_indices = @transform_8, window_bounds = array<i64: 1, 64>}, {pipeline_mode = #tpu.pipeline_mode<synchronous>, transform_indices = @transform_9, window_bounds = array<i64: 64, 32>}, {pipeline_mode = #tpu.pipeline_mode<synchronous>, transform_indices = @transform_10, window_bounds = array<i64: 1, 32>}, {pipeline_mode = #tpu.pipeline_mode<synchronous>, transform_indices = @transform_11, window_bounds = array<i64: 32, 8>}, {pipeline_mode = #tpu.pipeline_mode<synchronous>, transform_indices = @transform_12, window_bounds = array<i64: 1, 8>}, {transform_indices = @transform_13, window_bounds = array<i64: 1, 2, 8>}]} {
    %c0_i32 = arith.constant 0 : i32
    %0 = arith.cmpi eq, %arg0, %c0_i32 : i32
    %1 = arith.extui %0 : i1 to i32
    %c0_i32_0 = arith.constant 0 : i32
    %2 = arith.cmpi ne, %1, %c0_i32_0 : i32
    scf.if %2 {
      %cst_111 = arith.constant 0.000000e+00 : f32
      %404 = vector.broadcast %cst_111 : f32 to vector<2x2x32xf32>
      %c0_112 = arith.constant 0 : index
      %c0_113 = arith.constant 0 : index
      %c0_114 = arith.constant 0 : index
      %405 = vector.load %arg15[%c0_112, %c0_113, %c0_114] : memref<2x2x32xf32, #tpu.memory_space<vmem>>, vector<2x2x32xf32>
      tpu.vector_store %arg15[%c0_112, %c0_113, %c0_114], %404 {strides = array<i32>} : memref<2x2x32xf32, #tpu.memory_space<vmem>>, vector<2x2x32xf32>,
      %cst_115 = arith.constant 0.000000e+00 : f32
      %406 = vector.broadcast %cst_115 : f32 to vector<2x2x32xf32>
      %c0_116 = arith.constant 0 : index
      %c0_117 = arith.constant 0 : index
      %c0_118 = arith.constant 0 : index
      %407 = vector.load %arg16[%c0_116, %c0_117, %c0_118] : memref<2x2x32xf32, #tpu.memory_space<vmem>>, vector<2x2x32xf32>
      tpu.vector_store %arg16[%c0_116, %c0_117, %c0_118], %406 {strides = array<i32>} : memref<2x2x32xf32, #tpu.memory_space<vmem>>, vector<2x2x32xf32>,
    } else {
    }
    %3 = tpu.iota {dimensions = array<i32: 1>} : vector<2x128xi32>
    %c64_i32 = arith.constant 64 : i32
    %4 = vector.broadcast %c64_i32 : i32 to vector<2x128xi32>
    %5 = arith.cmpi sge, %3, %4 : vector<2x128xi32>
    %c96_i32 = arith.constant 96 : i32
    %6 = vector.broadcast %c96_i32 : i32 to vector<2x128xi32>
    %7 = arith.cmpi slt, %3, %6 : vector<2x128xi32>
    %8 = arith.andi %5, %7 : vector<2x128xi1>
    %c0 = arith.constant 0 : index
    %c0_1 = arith.constant 0 : index
    %c0_2 = arith.constant 0 : index
    %9 = vector.load %arg1[%c0, %c0_1, %c0_2] : memref<1x16x16xf32, #tpu.memory_space<vmem>>, vector<1x16x16xf32>
    %10 = vector.shape_cast %9 : vector<1x16x16xf32> to vector<16x16xf32>
    %11 = arith.truncf %10 : vector<16x16xf32> to vector<16x16xbf16>
    %c0_3 = arith.constant 0 : index
    %c0_4 = arith.constant 0 : index
    %12 = vector.load %arg3[%c0_3, %c0_4] : memref<32x128xbf16, #tpu.memory_space<vmem>>, vector<32x128xbf16>
    %c0_5 = arith.constant 0 : index
    %c0_6 = arith.constant 0 : index
    %13 = vector.load %arg2[%c0_5, %c0_6] : memref<16x128xbf16, #tpu.memory_space<vmem>>, vector<16x128xbf16>
    %cst = arith.constant dense<0.000000e+00> : vector<16x128xf32>
    %14 = tpu.matmul %11, %13, %cst {dimension_numbers = #tpu.dot_dimension_numbers<[1], [0], [0], [1], [0, 0, 1, 1], [], []>} : vector<16x16xbf16>, vector<16x128xbf16>, vector<16x128xf32> -> vector<16x128xf32>
    %c0_7 = arith.constant 0 : index
    %c0_8 = arith.constant 0 : index
    %15 = vector.load %arg4[%c0_7, %c0_8] : memref<1x128xf32, #tpu.memory_space<vmem>>, vector<1x128xf32>
    %16 = vector.broadcast %15 : vector<1x128xf32> to vector<16x128xf32>
    %17 = arith.addf %14, %16 : vector<16x128xf32>
    %c0_9 = arith.constant 0 : index
    %c0_10 = arith.constant 0 : index
    %c0_11 = arith.constant 0 : index
    %18 = vector.load %arg15[%c0_9, %c0_10, %c0_11] : memref<2x2x32xf32, #tpu.memory_space<vmem>>, vector<1x2x32xf32>
    %19 = vector.shape_cast %18 : vector<1x2x32xf32> to vector<2x32xf32>
    %c0_12 = arith.constant 0 : index
    %c0_13 = arith.constant 0 : index
    %c0_14 = arith.constant 0 : index
    %20 = vector.load %arg16[%c0_12, %c0_13, %c0_14] : memref<2x2x32xf32, #tpu.memory_space<vmem>>, vector<1x2x32xf32>
    %21 = vector.shape_cast %20 : vector<1x2x32xf32> to vector<2x32xf32>
    %22 = vector.extract_strided_slice %17 {offsets = [0, 0], sizes = [2, 128], strides = [1, 1]} : vector<16x128xf32> to vector<2x128xf32>
    %23 = arith.truncf %19 : vector<2x32xf32> to vector<2x32xbf16>
    %cst_15 = arith.constant dense<0.000000e+00> : vector<2x128xf32>
    %24 = tpu.matmul %23, %12, %cst_15 {dimension_numbers = #tpu.dot_dimension_numbers<[1], [0], [0], [1], [0, 0, 1, 1], [], []>} : vector<2x32xbf16>, vector<32x128xbf16>, vector<2x128xf32> -> vector<2x128xf32>
    %25 = arith.addf %22, %24 : vector<2x128xf32>
    %26 = math.tanh %25 : vector<2x128xf32>
    %27 = arith.negf %25 : vector<2x128xf32>
    %28 = math.exp %27 : vector<2x128xf32>
    %cst_16 = arith.constant 1.000000e+00 : f32
    %29 = vector.broadcast %cst_16 : f32 to vector<2x128xf32>
    %30 = arith.addf %29, %28 : vector<2x128xf32>
    %31 = arith.divf %29, %30 : vector<2x128xf32>
    %32 = arith.select %8, %26, %31 : vector<2x128xi1>, vector<2x128xf32>
    %33 = vector.extract_strided_slice %32 {offsets = [0, 0], sizes = [2, 32], strides = [1, 1]} : vector<2x128xf32> to vector<2x32xf32>
    %34 = vector.extract_strided_slice %32 {offsets = [0, 32], sizes = [2, 32], strides = [1, 1]} : vector<2x128xf32> to vector<2x32xf32>
    %35 = vector.extract_strided_slice %32 {offsets = [0, 64], sizes = [2, 32], strides = [1, 1]} : vector<2x128xf32> to vector<2x32xf32>
    %36 = vector.extract_strided_slice %32 {offsets = [0, 96], sizes = [2, 32], strides = [1, 1]} : vector<2x128xf32> to vector<2x32xf32>
    %37 = arith.mulf %34, %21 : vector<2x32xf32>
    %38 = arith.mulf %33, %35 : vector<2x32xf32>
    %39 = arith.addf %37, %38 : vector<2x32xf32>
    %40 = math.tanh %39 : vector<2x32xf32>
    %41 = arith.mulf %36, %40 : vector<2x32xf32>
    %c0_17 = arith.constant 0 : index
    %c0_18 = arith.constant 0 : index
    %42 = vector.load %arg17[%c0_17, %c0_18] : memref<16x32xf32, #tpu.memory_space<vmem>>, vector<2x32xf32>
    tpu.vector_store %arg17[%c0_17, %c0_18], %41 {strides = array<i32>} : memref<16x32xf32, #tpu.memory_space<vmem>>, vector<2x32xf32>,
    %43 = vector.extract_strided_slice %17 {offsets = [2, 0], sizes = [2, 128], strides = [1, 1]} : vector<16x128xf32> to vector<2x128xf32>
    %44 = arith.truncf %41 : vector<2x32xf32> to vector<2x32xbf16>
    %cst_19 = arith.constant dense<0.000000e+00> : vector<2x128xf32>
    %45 = tpu.matmul %44, %12, %cst_19 {dimension_numbers = #tpu.dot_dimension_numbers<[1], [0], [0], [1], [0, 0, 1, 1], [], []>} : vector<2x32xbf16>, vector<32x128xbf16>, vector<2x128xf32> -> vector<2x128xf32>
    %46 = arith.addf %43, %45 : vector<2x128xf32>
    %47 = math.tanh %46 : vector<2x128xf32>
    %48 = arith.negf %46 : vector<2x128xf32>
    %49 = math.exp %48 : vector<2x128xf32>
    %cst_20 = arith.constant 1.000000e+00 : f32
    %50 = vector.broadcast %cst_20 : f32 to vector<2x128xf32>
    %51 = arith.addf %50, %49 : vector<2x128xf32>
    %52 = arith.divf %50, %51 : vector<2x128xf32>
    %53 = arith.select %8, %47, %52 : vector<2x128xi1>, vector<2x128xf32>
    %54 = vector.extract_strided_slice %53 {offsets = [0, 0], sizes = [2, 32], strides = [1, 1]} : vector<2x128xf32> to vector<2x32xf32>
    %55 = vector.extract_strided_slice %53 {offsets = [0, 32], sizes = [2, 32], strides = [1, 1]} : vector<2x128xf32> to vector<2x32xf32>
    %56 = vector.extract_strided_slice %53 {offsets = [0, 64], sizes = [2, 32], strides = [1, 1]} : vector<2x128xf32> to vector<2x32xf32>
    %57 = vector.extract_strided_slice %53 {offsets = [0, 96], sizes = [2, 32], strides = [1, 1]} : vector<2x128xf32> to vector<2x32xf32>
    %58 = arith.mulf %55, %39 : vector<2x32xf32>
    %59 = arith.mulf %54, %56 : vector<2x32xf32>
    %60 = arith.addf %58, %59 : vector<2x32xf32>
    %61 = math.tanh %60 : vector<2x32xf32>
    %62 = arith.mulf %57, %61 : vector<2x32xf32>
    %c2 = arith.constant 2 : index
    %c0_21 = arith.constant 0 : index
    %63 = vector.load %arg17[%c2, %c0_21] : memref<16x32xf32, #tpu.memory_space<vmem>>, vector<2x32xf32>
    tpu.vector_store %arg17[%c2, %c0_21], %62 {strides = array<i32>} : memref<16x32xf32, #tpu.memory_space<vmem>>, vector<2x32xf32>,
    %64 = vector.extract_strided_slice %17 {offsets = [4, 0], sizes = [2, 128], strides = [1, 1]} : vector<16x128xf32> to vector<2x128xf32>
    %65 = arith.truncf %62 : vector<2x32xf32> to vector<2x32xbf16>
    %cst_22 = arith.constant dense<0.000000e+00> : vector<2x128xf32>
    %66 = tpu.matmul %65, %12, %cst_22 {dimension_numbers = #tpu.dot_dimension_numbers<[1], [0], [0], [1], [0, 0, 1, 1], [], []>} : vector<2x32xbf16>, vector<32x128xbf16>, vector<2x128xf32> -> vector<2x128xf32>
    %67 = arith.addf %64, %66 : vector<2x128xf32>
    %68 = math.tanh %67 : vector<2x128xf32>
    %69 = arith.negf %67 : vector<2x128xf32>
    %70 = math.exp %69 : vector<2x128xf32>
    %cst_23 = arith.constant 1.000000e+00 : f32
    %71 = vector.broadcast %cst_23 : f32 to vector<2x128xf32>
    %72 = arith.addf %71, %70 : vector<2x128xf32>
    %73 = arith.divf %71, %72 : vector<2x128xf32>
    %74 = arith.select %8, %68, %73 : vector<2x128xi1>, vector<2x128xf32>
    %75 = vector.extract_strided_slice %74 {offsets = [0, 0], sizes = [2, 32], strides = [1, 1]} : vector<2x128xf32> to vector<2x32xf32>
    %76 = vector.extract_strided_slice %74 {offsets = [0, 32], sizes = [2, 32], strides = [1, 1]} : vector<2x128xf32> to vector<2x32xf32>
    %77 = vector.extract_strided_slice %74 {offsets = [0, 64], sizes = [2, 32], strides = [1, 1]} : vector<2x128xf32> to vector<2x32xf32>
    %78 = vector.extract_strided_slice %74 {offsets = [0, 96], sizes = [2, 32], strides = [1, 1]} : vector<2x128xf32> to vector<2x32xf32>
    %79 = arith.mulf %76, %60 : vector<2x32xf32>
    %80 = arith.mulf %75, %77 : vector<2x32xf32>
    %81 = arith.addf %79, %80 : vector<2x32xf32>
    %82 = math.tanh %81 : vector<2x32xf32>
    %83 = arith.mulf %78, %82 : vector<2x32xf32>
    %c4 = arith.constant 4 : index
    %c0_24 = arith.constant 0 : index
    %84 = vector.load %arg17[%c4, %c0_24] : memref<16x32xf32, #tpu.memory_space<vmem>>, vector<2x32xf32>
    tpu.vector_store %arg17[%c4, %c0_24], %83 {strides = array<i32>} : memref<16x32xf32, #tpu.memory_space<vmem>>, vector<2x32xf32>,
    %85 = vector.extract_strided_slice %17 {offsets = [6, 0], sizes = [2, 128], strides = [1, 1]} : vector<16x128xf32> to vector<2x128xf32>
    %86 = arith.truncf %83 : vector<2x32xf32> to vector<2x32xbf16>
    %cst_25 = arith.constant dense<0.000000e+00> : vector<2x128xf32>
    %87 = tpu.matmul %86, %12, %cst_25 {dimension_numbers = #tpu.dot_dimension_numbers<[1], [0], [0], [1], [0, 0, 1, 1], [], []>} : vector<2x32xbf16>, vector<32x128xbf16>, vector<2x128xf32> -> vector<2x128xf32>
    %88 = arith.addf %85, %87 : vector<2x128xf32>
    %89 = math.tanh %88 : vector<2x128xf32>
    %90 = arith.negf %88 : vector<2x128xf32>
    %91 = math.exp %90 : vector<2x128xf32>
    %cst_26 = arith.constant 1.000000e+00 : f32
    %92 = vector.broadcast %cst_26 : f32 to vector<2x128xf32>
    %93 = arith.addf %92, %91 : vector<2x128xf32>
    %94 = arith.divf %92, %93 : vector<2x128xf32>
    %95 = arith.select %8, %89, %94 : vector<2x128xi1>, vector<2x128xf32>
    %96 = vector.extract_strided_slice %95 {offsets = [0, 0], sizes = [2, 32], strides = [1, 1]} : vector<2x128xf32> to vector<2x32xf32>
    %97 = vector.extract_strided_slice %95 {offsets = [0, 32], sizes = [2, 32], strides = [1, 1]} : vector<2x128xf32> to vector<2x32xf32>
    %98 = vector.extract_strided_slice %95 {offsets = [0, 64], sizes = [2, 32], strides = [1, 1]} : vector<2x128xf32> to vector<2x32xf32>
    %99 = vector.extract_strided_slice %95 {offsets = [0, 96], sizes = [2, 32], strides = [1, 1]} : vector<2x128xf32> to vector<2x32xf32>
    %100 = arith.mulf %97, %81 : vector<2x32xf32>
    %101 = arith.mulf %96, %98 : vector<2x32xf32>
    %102 = arith.addf %100, %101 : vector<2x32xf32>
    %103 = math.tanh %102 : vector<2x32xf32>
    %104 = arith.mulf %99, %103 : vector<2x32xf32>
    %c6 = arith.constant 6 : index
    %c0_27 = arith.constant 0 : index
    %105 = vector.load %arg17[%c6, %c0_27] : memref<16x32xf32, #tpu.memory_space<vmem>>, vector<2x32xf32>
    tpu.vector_store %arg17[%c6, %c0_27], %104 {strides = array<i32>} : memref<16x32xf32, #tpu.memory_space<vmem>>, vector<2x32xf32>,
    %106 = vector.extract_strided_slice %17 {offsets = [8, 0], sizes = [2, 128], strides = [1, 1]} : vector<16x128xf32> to vector<2x128xf32>
    %107 = arith.truncf %104 : vector<2x32xf32> to vector<2x32xbf16>
    %cst_28 = arith.constant dense<0.000000e+00> : vector<2x128xf32>
    %108 = tpu.matmul %107, %12, %cst_28 {dimension_numbers = #tpu.dot_dimension_numbers<[1], [0], [0], [1], [0, 0, 1, 1], [], []>} : vector<2x32xbf16>, vector<32x128xbf16>, vector<2x128xf32> -> vector<2x128xf32>
    %109 = arith.addf %106, %108 : vector<2x128xf32>
    %110 = math.tanh %109 : vector<2x128xf32>
    %111 = arith.negf %109 : vector<2x128xf32>
    %112 = math.exp %111 : vector<2x128xf32>
    %cst_29 = arith.constant 1.000000e+00 : f32
    %113 = vector.broadcast %cst_29 : f32 to vector<2x128xf32>
    %114 = arith.addf %113, %112 : vector<2x128xf32>
    %115 = arith.divf %113, %114 : vector<2x128xf32>
    %116 = arith.select %8, %110, %115 : vector<2x128xi1>, vector<2x128xf32>
    %117 = vector.extract_strided_slice %116 {offsets = [0, 0], sizes = [2, 32], strides = [1, 1]} : vector<2x128xf32> to vector<2x32xf32>
    %118 = vector.extract_strided_slice %116 {offsets = [0, 32], sizes = [2, 32], strides = [1, 1]} : vector<2x128xf32> to vector<2x32xf32>
    %119 = vector.extract_strided_slice %116 {offsets = [0, 64], sizes = [2, 32], strides = [1, 1]} : vector<2x128xf32> to vector<2x32xf32>
    %120 = vector.extract_strided_slice %116 {offsets = [0, 96], sizes = [2, 32], strides = [1, 1]} : vector<2x128xf32> to vector<2x32xf32>
    %121 = arith.mulf %118, %102 : vector<2x32xf32>
    %122 = arith.mulf %117, %119 : vector<2x32xf32>
    %123 = arith.addf %121, %122 : vector<2x32xf32>
    %124 = math.tanh %123 : vector<2x32xf32>
    %125 = arith.mulf %120, %124 : vector<2x32xf32>
    %c8 = arith.constant 8 : index
    %c0_30 = arith.constant 0 : index
    %126 = vector.load %arg17[%c8, %c0_30] : memref<16x32xf32, #tpu.memory_space<vmem>>, vector<2x32xf32>
    tpu.vector_store %arg17[%c8, %c0_30], %125 {strides = array<i32>} : memref<16x32xf32, #tpu.memory_space<vmem>>, vector<2x32xf32>,
    %127 = vector.extract_strided_slice %17 {offsets = [10, 0], sizes = [2, 128], strides = [1, 1]} : vector<16x128xf32> to vector<2x128xf32>
    %128 = arith.truncf %125 : vector<2x32xf32> to vector<2x32xbf16>
    %cst_31 = arith.constant dense<0.000000e+00> : vector<2x128xf32>
    %129 = tpu.matmul %128, %12, %cst_31 {dimension_numbers = #tpu.dot_dimension_numbers<[1], [0], [0], [1], [0, 0, 1, 1], [], []>} : vector<2x32xbf16>, vector<32x128xbf16>, vector<2x128xf32> -> vector<2x128xf32>
    %130 = arith.addf %127, %129 : vector<2x128xf32>
    %131 = math.tanh %130 : vector<2x128xf32>
    %132 = arith.negf %130 : vector<2x128xf32>
    %133 = math.exp %132 : vector<2x128xf32>
    %cst_32 = arith.constant 1.000000e+00 : f32
    %134 = vector.broadcast %cst_32 : f32 to vector<2x128xf32>
    %135 = arith.addf %134, %133 : vector<2x128xf32>
    %136 = arith.divf %134, %135 : vector<2x128xf32>
    %137 = arith.select %8, %131, %136 : vector<2x128xi1>, vector<2x128xf32>
    %138 = vector.extract_strided_slice %137 {offsets = [0, 0], sizes = [2, 32], strides = [1, 1]} : vector<2x128xf32> to vector<2x32xf32>
    %139 = vector.extract_strided_slice %137 {offsets = [0, 32], sizes = [2, 32], strides = [1, 1]} : vector<2x128xf32> to vector<2x32xf32>
    %140 = vector.extract_strided_slice %137 {offsets = [0, 64], sizes = [2, 32], strides = [1, 1]} : vector<2x128xf32> to vector<2x32xf32>
    %141 = vector.extract_strided_slice %137 {offsets = [0, 96], sizes = [2, 32], strides = [1, 1]} : vector<2x128xf32> to vector<2x32xf32>
    %142 = arith.mulf %139, %123 : vector<2x32xf32>
    %143 = arith.mulf %138, %140 : vector<2x32xf32>
    %144 = arith.addf %142, %143 : vector<2x32xf32>
    %145 = math.tanh %144 : vector<2x32xf32>
    %146 = arith.mulf %141, %145 : vector<2x32xf32>
    %c10 = arith.constant 10 : index
    %c0_33 = arith.constant 0 : index
    %147 = vector.load %arg17[%c10, %c0_33] : memref<16x32xf32, #tpu.memory_space<vmem>>, vector<2x32xf32>
    tpu.vector_store %arg17[%c10, %c0_33], %146 {strides = array<i32>} : memref<16x32xf32, #tpu.memory_space<vmem>>, vector<2x32xf32>,
    %148 = vector.extract_strided_slice %17 {offsets = [12, 0], sizes = [2, 128], strides = [1, 1]} : vector<16x128xf32> to vector<2x128xf32>
    %149 = arith.truncf %146 : vector<2x32xf32> to vector<2x32xbf16>
    %cst_34 = arith.constant dense<0.000000e+00> : vector<2x128xf32>
    %150 = tpu.matmul %149, %12, %cst_34 {dimension_numbers = #tpu.dot_dimension_numbers<[1], [0], [0], [1], [0, 0, 1, 1], [], []>} : vector<2x32xbf16>, vector<32x128xbf16>, vector<2x128xf32> -> vector<2x128xf32>
    %151 = arith.addf %148, %150 : vector<2x128xf32>
    %152 = math.tanh %151 : vector<2x128xf32>
    %153 = arith.negf %151 : vector<2x128xf32>
    %154 = math.exp %153 : vector<2x128xf32>
    %cst_35 = arith.constant 1.000000e+00 : f32
    %155 = vector.broadcast %cst_35 : f32 to vector<2x128xf32>
    %156 = arith.addf %155, %154 : vector<2x128xf32>
    %157 = arith.divf %155, %156 : vector<2x128xf32>
    %158 = arith.select %8, %152, %157 : vector<2x128xi1>, vector<2x128xf32>
    %159 = vector.extract_strided_slice %158 {offsets = [0, 0], sizes = [2, 32], strides = [1, 1]} : vector<2x128xf32> to vector<2x32xf32>
    %160 = vector.extract_strided_slice %158 {offsets = [0, 32], sizes = [2, 32], strides = [1, 1]} : vector<2x128xf32> to vector<2x32xf32>
    %161 = vector.extract_strided_slice %158 {offsets = [0, 64], sizes = [2, 32], strides = [1, 1]} : vector<2x128xf32> to vector<2x32xf32>
    %162 = vector.extract_strided_slice %158 {offsets = [0, 96], sizes = [2, 32], strides = [1, 1]} : vector<2x128xf32> to vector<2x32xf32>
    %163 = arith.mulf %160, %144 : vector<2x32xf32>
    %164 = arith.mulf %159, %161 : vector<2x32xf32>
    %165 = arith.addf %163, %164 : vector<2x32xf32>
    %166 = math.tanh %165 : vector<2x32xf32>
    %167 = arith.mulf %162, %166 : vector<2x32xf32>
    %c12 = arith.constant 12 : index
    %c0_36 = arith.constant 0 : index
    %168 = vector.load %arg17[%c12, %c0_36] : memref<16x32xf32, #tpu.memory_space<vmem>>, vector<2x32xf32>
    tpu.vector_store %arg17[%c12, %c0_36], %167 {strides = array<i32>} : memref<16x32xf32, #tpu.memory_space<vmem>>, vector<2x32xf32>,
    %169 = vector.extract_strided_slice %17 {offsets = [14, 0], sizes = [2, 128], strides = [1, 1]} : vector<16x128xf32> to vector<2x128xf32>
    %170 = arith.truncf %167 : vector<2x32xf32> to vector<2x32xbf16>
    %cst_37 = arith.constant dense<0.000000e+00> : vector<2x128xf32>
    %171 = tpu.matmul %170, %12, %cst_37 {dimension_numbers = #tpu.dot_dimension_numbers<[1], [0], [0], [1], [0, 0, 1, 1], [], []>} : vector<2x32xbf16>, vector<32x128xbf16>, vector<2x128xf32> -> vector<2x128xf32>
    %172 = arith.addf %169, %171 : vector<2x128xf32>
    %173 = math.tanh %172 : vector<2x128xf32>
    %174 = arith.negf %172 : vector<2x128xf32>
    %175 = math.exp %174 : vector<2x128xf32>
    %cst_38 = arith.constant 1.000000e+00 : f32
    %176 = vector.broadcast %cst_38 : f32 to vector<2x128xf32>
    %177 = arith.addf %176, %175 : vector<2x128xf32>
    %178 = arith.divf %176, %177 : vector<2x128xf32>
    %179 = arith.select %8, %173, %178 : vector<2x128xi1>, vector<2x128xf32>
    %180 = vector.extract_strided_slice %179 {offsets = [0, 0], sizes = [2, 32], strides = [1, 1]} : vector<2x128xf32> to vector<2x32xf32>
    %181 = vector.extract_strided_slice %179 {offsets = [0, 32], sizes = [2, 32], strides = [1, 1]} : vector<2x128xf32> to vector<2x32xf32>
    %182 = vector.extract_strided_slice %179 {offsets = [0, 64], sizes = [2, 32], strides = [1, 1]} : vector<2x128xf32> to vector<2x32xf32>
    %183 = vector.extract_strided_slice %179 {offsets = [0, 96], sizes = [2, 32], strides = [1, 1]} : vector<2x128xf32> to vector<2x32xf32>
    %184 = arith.mulf %181, %165 : vector<2x32xf32>
    %185 = arith.mulf %180, %182 : vector<2x32xf32>
    %186 = arith.addf %184, %185 : vector<2x32xf32>
    %187 = math.tanh %186 : vector<2x32xf32>
    %188 = arith.mulf %183, %187 : vector<2x32xf32>
    %c14 = arith.constant 14 : index
    %c0_39 = arith.constant 0 : index
    %189 = vector.load %arg17[%c14, %c0_39] : memref<16x32xf32, #tpu.memory_space<vmem>>, vector<2x32xf32>
    tpu.vector_store %arg17[%c14, %c0_39], %188 {strides = array<i32>} : memref<16x32xf32, #tpu.memory_space<vmem>>, vector<2x32xf32>,
    %c0_40 = arith.constant 0 : index
    %c0_41 = arith.constant 0 : index
    %c0_42 = arith.constant 0 : index
    %190 = vector.load %arg15[%c0_40, %c0_41, %c0_42] : memref<2x2x32xf32, #tpu.memory_space<vmem>>, vector<1x2x32xf32>
    %191 = vector.shape_cast %190 : vector<1x2x32xf32> to vector<2x32xf32>
    %192 = vector.shape_cast %188 : vector<2x32xf32> to vector<1x2x32xf32>
    tpu.vector_store %arg15[%c0_40, %c0_41, %c0_42], %192 {strides = array<i32>} : memref<2x2x32xf32, #tpu.memory_space<vmem>>, vector<1x2x32xf32>,
    %c0_43 = arith.constant 0 : index
    %c0_44 = arith.constant 0 : index
    %c0_45 = arith.constant 0 : index
    %193 = vector.load %arg16[%c0_43, %c0_44, %c0_45] : memref<2x2x32xf32, #tpu.memory_space<vmem>>, vector<1x2x32xf32>
    %194 = vector.shape_cast %193 : vector<1x2x32xf32> to vector<2x32xf32>
    %195 = vector.shape_cast %186 : vector<2x32xf32> to vector<1x2x32xf32>
    tpu.vector_store %arg16[%c0_43, %c0_44, %c0_45], %195 {strides = array<i32>} : memref<2x2x32xf32, #tpu.memory_space<vmem>>, vector<1x2x32xf32>,
    %c0_46 = arith.constant 0 : index
    %c0_47 = arith.constant 0 : index
    %196 = vector.load %arg17[%c0_46, %c0_47] : memref<16x32xf32, #tpu.memory_space<vmem>>, vector<16x32xf32>
    %197 = arith.truncf %196 : vector<16x32xf32> to vector<16x32xbf16>
    %c0_48 = arith.constant 0 : index
    %c0_49 = arith.constant 0 : index
    %198 = vector.load %arg6[%c0_48, %c0_49] : memref<32x128xbf16, #tpu.memory_space<vmem>>, vector<32x128xbf16>
    %c0_50 = arith.constant 0 : index
    %c0_51 = arith.constant 0 : index
    %199 = vector.load %arg5[%c0_50, %c0_51] : memref<32x128xbf16, #tpu.memory_space<vmem>>, vector<32x128xbf16>
    %cst_52 = arith.constant dense<0.000000e+00> : vector<16x128xf32>
    %200 = tpu.matmul %197, %199, %cst_52 {dimension_numbers = #tpu.dot_dimension_numbers<[1], [0], [0], [1], [0, 0, 1, 1], [], []>} : vector<16x32xbf16>, vector<32x128xbf16>, vector<16x128xf32> -> vector<16x128xf32>
    %c0_53 = arith.constant 0 : index
    %c0_54 = arith.constant 0 : index
    %201 = vector.load %arg7[%c0_53, %c0_54] : memref<1x128xf32, #tpu.memory_space<vmem>>, vector<1x128xf32>
    %202 = vector.broadcast %201 : vector<1x128xf32> to vector<16x128xf32>
    %203 = arith.addf %200, %202 : vector<16x128xf32>
    %c1 = arith.constant 1 : index
    %c0_55 = arith.constant 0 : index
    %c0_56 = arith.constant 0 : index
    %204 = vector.load %arg15[%c1, %c0_55, %c0_56] : memref<2x2x32xf32, #tpu.memory_space<vmem>>, vector<1x2x32xf32>
    %205 = vector.shape_cast %204 : vector<1x2x32xf32> to vector<2x32xf32>
    %c1_57 = arith.constant 1 : index
    %c0_58 = arith.constant 0 : index
    %c0_59 = arith.constant 0 : index
    %206 = vector.load %arg16[%c1_57, %c0_58, %c0_59] : memref<2x2x32xf32, #tpu.memory_space<vmem>>, vector<1x2x32xf32>
    %207 = vector.shape_cast %206 : vector<1x2x32xf32> to vector<2x32xf32>
    %208 = vector.extract_strided_slice %203 {offsets = [0, 0], sizes = [2, 128], strides = [1, 1]} : vector<16x128xf32> to vector<2x128xf32>
    %209 = arith.truncf %205 : vector<2x32xf32> to vector<2x32xbf16>
    %cst_60 = arith.constant dense<0.000000e+00> : vector<2x128xf32>
    %210 = tpu.matmul %209, %198, %cst_60 {dimension_numbers = #tpu.dot_dimension_numbers<[1], [0], [0], [1], [0, 0, 1, 1], [], []>} : vector<2x32xbf16>, vector<32x128xbf16>, vector<2x128xf32> -> vector<2x128xf32>
    %211 = arith.addf %208, %210 : vector<2x128xf32>
    %212 = math.tanh %211 : vector<2x128xf32>
    %213 = arith.negf %211 : vector<2x128xf32>
    %214 = math.exp %213 : vector<2x128xf32>
    %cst_61 = arith.constant 1.000000e+00 : f32
    %215 = vector.broadcast %cst_61 : f32 to vector<2x128xf32>
    %216 = arith.addf %215, %214 : vector<2x128xf32>
    %217 = arith.divf %215, %216 : vector<2x128xf32>
    %218 = arith.select %8, %212, %217 : vector<2x128xi1>, vector<2x128xf32>
    %219 = vector.extract_strided_slice %218 {offsets = [0, 0], sizes = [2, 32], strides = [1, 1]} : vector<2x128xf32> to vector<2x32xf32>
    %220 = vector.extract_strided_slice %218 {offsets = [0, 32], sizes = [2, 32], strides = [1, 1]} : vector<2x128xf32> to vector<2x32xf32>
    %221 = vector.extract_strided_slice %218 {offsets = [0, 64], sizes = [2, 32], strides = [1, 1]} : vector<2x128xf32> to vector<2x32xf32>
    %222 = vector.extract_strided_slice %218 {offsets = [0, 96], sizes = [2, 32], strides = [1, 1]} : vector<2x128xf32> to vector<2x32xf32>
    %223 = arith.mulf %220, %207 : vector<2x32xf32>
    %224 = arith.mulf %219, %221 : vector<2x32xf32>
    %225 = arith.addf %223, %224 : vector<2x32xf32>
    %226 = math.tanh %225 : vector<2x32xf32>
    %227 = arith.mulf %222, %226 : vector<2x32xf32>
    %c0_62 = arith.constant 0 : index
    %c0_63 = arith.constant 0 : index
    %228 = vector.load %arg18[%c0_62, %c0_63] : memref<2x256xf32, #tpu.memory_space<vmem>>, vector<2x32xf32>
    tpu.vector_store %arg18[%c0_62, %c0_63], %227 {strides = array<i32>} : memref<2x256xf32, #tpu.memory_space<vmem>>, vector<2x32xf32>,
    %229 = vector.extract_strided_slice %203 {offsets = [2, 0], sizes = [2, 128], strides = [1, 1]} : vector<16x128xf32> to vector<2x128xf32>
    %230 = arith.truncf %227 : vector<2x32xf32> to vector<2x32xbf16>
    %cst_64 = arith.constant dense<0.000000e+00> : vector<2x128xf32>
    %231 = tpu.matmul %230, %198, %cst_64 {dimension_numbers = #tpu.dot_dimension_numbers<[1], [0], [0], [1], [0, 0, 1, 1], [], []>} : vector<2x32xbf16>, vector<32x128xbf16>, vector<2x128xf32> -> vector<2x128xf32>
    %232 = arith.addf %229, %231 : vector<2x128xf32>
    %233 = math.tanh %232 : vector<2x128xf32>
    %234 = arith.negf %232 : vector<2x128xf32>
    %235 = math.exp %234 : vector<2x128xf32>
    %cst_65 = arith.constant 1.000000e+00 : f32
    %236 = vector.broadcast %cst_65 : f32 to vector<2x128xf32>
    %237 = arith.addf %236, %235 : vector<2x128xf32>
    %238 = arith.divf %236, %237 : vector<2x128xf32>
    %239 = arith.select %8, %233, %238 : vector<2x128xi1>, vector<2x128xf32>
    %240 = vector.extract_strided_slice %239 {offsets = [0, 0], sizes = [2, 32], strides = [1, 1]} : vector<2x128xf32> to vector<2x32xf32>
    %241 = vector.extract_strided_slice %239 {offsets = [0, 32], sizes = [2, 32], strides = [1, 1]} : vector<2x128xf32> to vector<2x32xf32>
    %242 = vector.extract_strided_slice %239 {offsets = [0, 64], sizes = [2, 32], strides = [1, 1]} : vector<2x128xf32> to vector<2x32xf32>
    %243 = vector.extract_strided_slice %239 {offsets = [0, 96], sizes = [2, 32], strides = [1, 1]} : vector<2x128xf32> to vector<2x32xf32>
    %244 = arith.mulf %241, %225 : vector<2x32xf32>
    %245 = arith.mulf %240, %242 : vector<2x32xf32>
    %246 = arith.addf %244, %245 : vector<2x32xf32>
    %247 = math.tanh %246 : vector<2x32xf32>
    %248 = arith.mulf %243, %247 : vector<2x32xf32>
    %c0_66 = arith.constant 0 : index
    %c32 = arith.constant 32 : index
    %249 = vector.load %arg18[%c0_66, %c32] : memref<2x256xf32, #tpu.memory_space<vmem>>, vector<2x32xf32>
    tpu.vector_store %arg18[%c0_66, %c32], %248 {strides = array<i32>} : memref<2x256xf32, #tpu.memory_space<vmem>>, vector<2x32xf32>,
    %250 = vector.extract_strided_slice %203 {offsets = [4, 0], sizes = [2, 128], strides = [1, 1]} : vector<16x128xf32> to vector<2x128xf32>
    %251 = arith.truncf %248 : vector<2x32xf32> to vector<2x32xbf16>
    %cst_67 = arith.constant dense<0.000000e+00> : vector<2x128xf32>
    %252 = tpu.matmul %251, %198, %cst_67 {dimension_numbers = #tpu.dot_dimension_numbers<[1], [0], [0], [1], [0, 0, 1, 1], [], []>} : vector<2x32xbf16>, vector<32x128xbf16>, vector<2x128xf32> -> vector<2x128xf32>
    %253 = arith.addf %250, %252 : vector<2x128xf32>
    %254 = math.tanh %253 : vector<2x128xf32>
    %255 = arith.negf %253 : vector<2x128xf32>
    %256 = math.exp %255 : vector<2x128xf32>
    %cst_68 = arith.constant 1.000000e+00 : f32
    %257 = vector.broadcast %cst_68 : f32 to vector<2x128xf32>
    %258 = arith.addf %257, %256 : vector<2x128xf32>
    %259 = arith.divf %257, %258 : vector<2x128xf32>
    %260 = arith.select %8, %254, %259 : vector<2x128xi1>, vector<2x128xf32>
    %261 = vector.extract_strided_slice %260 {offsets = [0, 0], sizes = [2, 32], strides = [1, 1]} : vector<2x128xf32> to vector<2x32xf32>
    %262 = vector.extract_strided_slice %260 {offsets = [0, 32], sizes = [2, 32], strides = [1, 1]} : vector<2x128xf32> to vector<2x32xf32>
    %263 = vector.extract_strided_slice %260 {offsets = [0, 64], sizes = [2, 32], strides = [1, 1]} : vector<2x128xf32> to vector<2x32xf32>
    %264 = vector.extract_strided_slice %260 {offsets = [0, 96], sizes = [2, 32], strides = [1, 1]} : vector<2x128xf32> to vector<2x32xf32>
    %265 = arith.mulf %262, %246 : vector<2x32xf32>
    %266 = arith.mulf %261, %263 : vector<2x32xf32>
    %267 = arith.addf %265, %266 : vector<2x32xf32>
    %268 = math.tanh %267 : vector<2x32xf32>
    %269 = arith.mulf %264, %268 : vector<2x32xf32>
    %c0_69 = arith.constant 0 : index
    %c64 = arith.constant 64 : index
    %270 = vector.load %arg18[%c0_69, %c64] : memref<2x256xf32, #tpu.memory_space<vmem>>, vector<2x32xf32>
    tpu.vector_store %arg18[%c0_69, %c64], %269 {strides = array<i32>} : memref<2x256xf32, #tpu.memory_space<vmem>>, vector<2x32xf32>,
    %271 = vector.extract_strided_slice %203 {offsets = [6, 0], sizes = [2, 128], strides = [1, 1]} : vector<16x128xf32> to vector<2x128xf32>
    %272 = arith.truncf %269 : vector<2x32xf32> to vector<2x32xbf16>
    %cst_70 = arith.constant dense<0.000000e+00> : vector<2x128xf32>
    %273 = tpu.matmul %272, %198, %cst_70 {dimension_numbers = #tpu.dot_dimension_numbers<[1], [0], [0], [1], [0, 0, 1, 1], [], []>} : vector<2x32xbf16>, vector<32x128xbf16>, vector<2x128xf32> -> vector<2x128xf32>
    %274 = arith.addf %271, %273 : vector<2x128xf32>
    %275 = math.tanh %274 : vector<2x128xf32>
    %276 = arith.negf %274 : vector<2x128xf32>
    %277 = math.exp %276 : vector<2x128xf32>
    %cst_71 = arith.constant 1.000000e+00 : f32
    %278 = vector.broadcast %cst_71 : f32 to vector<2x128xf32>
    %279 = arith.addf %278, %277 : vector<2x128xf32>
    %280 = arith.divf %278, %279 : vector<2x128xf32>
    %281 = arith.select %8, %275, %280 : vector<2x128xi1>, vector<2x128xf32>
    %282 = vector.extract_strided_slice %281 {offsets = [0, 0], sizes = [2, 32], strides = [1, 1]} : vector<2x128xf32> to vector<2x32xf32>
    %283 = vector.extract_strided_slice %281 {offsets = [0, 32], sizes = [2, 32], strides = [1, 1]} : vector<2x128xf32> to vector<2x32xf32>
    %284 = vector.extract_strided_slice %281 {offsets = [0, 64], sizes = [2, 32], strides = [1, 1]} : vector<2x128xf32> to vector<2x32xf32>
    %285 = vector.extract_strided_slice %281 {offsets = [0, 96], sizes = [2, 32], strides = [1, 1]} : vector<2x128xf32> to vector<2x32xf32>
    %286 = arith.mulf %283, %267 : vector<2x32xf32>
    %287 = arith.mulf %282, %284 : vector<2x32xf32>
    %288 = arith.addf %286, %287 : vector<2x32xf32>
    %289 = math.tanh %288 : vector<2x32xf32>
    %290 = arith.mulf %285, %289 : vector<2x32xf32>
    %c0_72 = arith.constant 0 : index
    %c96 = arith.constant 96 : index
    %291 = vector.load %arg18[%c0_72, %c96] : memref<2x256xf32, #tpu.memory_space<vmem>>, vector<2x32xf32>
    tpu.vector_store %arg18[%c0_72, %c96], %290 {strides = array<i32>} : memref<2x256xf32, #tpu.memory_space<vmem>>, vector<2x32xf32>,
    %292 = vector.extract_strided_slice %203 {offsets = [8, 0], sizes = [2, 128], strides = [1, 1]} : vector<16x128xf32> to vector<2x128xf32>
    %293 = arith.truncf %290 : vector<2x32xf32> to vector<2x32xbf16>
    %cst_73 = arith.constant dense<0.000000e+00> : vector<2x128xf32>
    %294 = tpu.matmul %293, %198, %cst_73 {dimension_numbers = #tpu.dot_dimension_numbers<[1], [0], [0], [1], [0, 0, 1, 1], [], []>} : vector<2x32xbf16>, vector<32x128xbf16>, vector<2x128xf32> -> vector<2x128xf32>
    %295 = arith.addf %292, %294 : vector<2x128xf32>
    %296 = math.tanh %295 : vector<2x128xf32>
    %297 = arith.negf %295 : vector<2x128xf32>
    %298 = math.exp %297 : vector<2x128xf32>
    %cst_74 = arith.constant 1.000000e+00 : f32
    %299 = vector.broadcast %cst_74 : f32 to vector<2x128xf32>
    %300 = arith.addf %299, %298 : vector<2x128xf32>
    %301 = arith.divf %299, %300 : vector<2x128xf32>
    %302 = arith.select %8, %296, %301 : vector<2x128xi1>, vector<2x128xf32>
    %303 = vector.extract_strided_slice %302 {offsets = [0, 0], sizes = [2, 32], strides = [1, 1]} : vector<2x128xf32> to vector<2x32xf32>
    %304 = vector.extract_strided_slice %302 {offsets = [0, 32], sizes = [2, 32], strides = [1, 1]} : vector<2x128xf32> to vector<2x32xf32>
    %305 = vector.extract_strided_slice %302 {offsets = [0, 64], sizes = [2, 32], strides = [1, 1]} : vector<2x128xf32> to vector<2x32xf32>
    %306 = vector.extract_strided_slice %302 {offsets = [0, 96], sizes = [2, 32], strides = [1, 1]} : vector<2x128xf32> to vector<2x32xf32>
    %307 = arith.mulf %304, %288 : vector<2x32xf32>
    %308 = arith.mulf %303, %305 : vector<2x32xf32>
    %309 = arith.addf %307, %308 : vector<2x32xf32>
    %310 = math.tanh %309 : vector<2x32xf32>
    %311 = arith.mulf %306, %310 : vector<2x32xf32>
    %c0_75 = arith.constant 0 : index
    %c128 = arith.constant 128 : index
    %312 = vector.load %arg18[%c0_75, %c128] : memref<2x256xf32, #tpu.memory_space<vmem>>, vector<2x32xf32>
    tpu.vector_store %arg18[%c0_75, %c128], %311 {strides = array<i32>} : memref<2x256xf32, #tpu.memory_space<vmem>>, vector<2x32xf32>,
    %313 = vector.extract_strided_slice %203 {offsets = [10, 0], sizes = [2, 128], strides = [1, 1]} : vector<16x128xf32> to vector<2x128xf32>
    %314 = arith.truncf %311 : vector<2x32xf32> to vector<2x32xbf16>
    %cst_76 = arith.constant dense<0.000000e+00> : vector<2x128xf32>
    %315 = tpu.matmul %314, %198, %cst_76 {dimension_numbers = #tpu.dot_dimension_numbers<[1], [0], [0], [1], [0, 0, 1, 1], [], []>} : vector<2x32xbf16>, vector<32x128xbf16>, vector<2x128xf32> -> vector<2x128xf32>
    %316 = arith.addf %313, %315 : vector<2x128xf32>
    %317 = math.tanh %316 : vector<2x128xf32>
    %318 = arith.negf %316 : vector<2x128xf32>
    %319 = math.exp %318 : vector<2x128xf32>
    %cst_77 = arith.constant 1.000000e+00 : f32
    %320 = vector.broadcast %cst_77 : f32 to vector<2x128xf32>
    %321 = arith.addf %320, %319 : vector<2x128xf32>
    %322 = arith.divf %320, %321 : vector<2x128xf32>
    %323 = arith.select %8, %317, %322 : vector<2x128xi1>, vector<2x128xf32>
    %324 = vector.extract_strided_slice %323 {offsets = [0, 0], sizes = [2, 32], strides = [1, 1]} : vector<2x128xf32> to vector<2x32xf32>
    %325 = vector.extract_strided_slice %323 {offsets = [0, 32], sizes = [2, 32], strides = [1, 1]} : vector<2x128xf32> to vector<2x32xf32>
    %326 = vector.extract_strided_slice %323 {offsets = [0, 64], sizes = [2, 32], strides = [1, 1]} : vector<2x128xf32> to vector<2x32xf32>
    %327 = vector.extract_strided_slice %323 {offsets = [0, 96], sizes = [2, 32], strides = [1, 1]} : vector<2x128xf32> to vector<2x32xf32>
    %328 = arith.mulf %325, %309 : vector<2x32xf32>
    %329 = arith.mulf %324, %326 : vector<2x32xf32>
    %330 = arith.addf %328, %329 : vector<2x32xf32>
    %331 = math.tanh %330 : vector<2x32xf32>
    %332 = arith.mulf %327, %331 : vector<2x32xf32>
    %c0_78 = arith.constant 0 : index
    %c160 = arith.constant 160 : index
    %333 = vector.load %arg18[%c0_78, %c160] : memref<2x256xf32, #tpu.memory_space<vmem>>, vector<2x32xf32>
    tpu.vector_store %arg18[%c0_78, %c160], %332 {strides = array<i32>} : memref<2x256xf32, #tpu.memory_space<vmem>>, vector<2x32xf32>,
    %334 = vector.extract_strided_slice %203 {offsets = [12, 0], sizes = [2, 128], strides = [1, 1]} : vector<16x128xf32> to vector<2x128xf32>
    %335 = arith.truncf %332 : vector<2x32xf32> to vector<2x32xbf16>
    %cst_79 = arith.constant dense<0.000000e+00> : vector<2x128xf32>
    %336 = tpu.matmul %335, %198, %cst_79 {dimension_numbers = #tpu.dot_dimension_numbers<[1], [0], [0], [1], [0, 0, 1, 1], [], []>} : vector<2x32xbf16>, vector<32x128xbf16>, vector<2x128xf32> -> vector<2x128xf32>
    %337 = arith.addf %334, %336 : vector<2x128xf32>
    %338 = math.tanh %337 : vector<2x128xf32>
    %339 = arith.negf %337 : vector<2x128xf32>
    %340 = math.exp %339 : vector<2x128xf32>
    %cst_80 = arith.constant 1.000000e+00 : f32
    %341 = vector.broadcast %cst_80 : f32 to vector<2x128xf32>
    %342 = arith.addf %341, %340 : vector<2x128xf32>
    %343 = arith.divf %341, %342 : vector<2x128xf32>
    %344 = arith.select %8, %338, %343 : vector<2x128xi1>, vector<2x128xf32>
    %345 = vector.extract_strided_slice %344 {offsets = [0, 0], sizes = [2, 32], strides = [1, 1]} : vector<2x128xf32> to vector<2x32xf32>
    %346 = vector.extract_strided_slice %344 {offsets = [0, 32], sizes = [2, 32], strides = [1, 1]} : vector<2x128xf32> to vector<2x32xf32>
    %347 = vector.extract_strided_slice %344 {offsets = [0, 64], sizes = [2, 32], strides = [1, 1]} : vector<2x128xf32> to vector<2x32xf32>
    %348 = vector.extract_strided_slice %344 {offsets = [0, 96], sizes = [2, 32], strides = [1, 1]} : vector<2x128xf32> to vector<2x32xf32>
    %349 = arith.mulf %346, %330 : vector<2x32xf32>
    %350 = arith.mulf %345, %347 : vector<2x32xf32>
    %351 = arith.addf %349, %350 : vector<2x32xf32>
    %352 = math.tanh %351 : vector<2x32xf32>
    %353 = arith.mulf %348, %352 : vector<2x32xf32>
    %c0_81 = arith.constant 0 : index
    %c192 = arith.constant 192 : index
    %354 = vector.load %arg18[%c0_81, %c192] : memref<2x256xf32, #tpu.memory_space<vmem>>, vector<2x32xf32>
    tpu.vector_store %arg18[%c0_81, %c192], %353 {strides = array<i32>} : memref<2x256xf32, #tpu.memory_space<vmem>>, vector<2x32xf32>,
    %355 = vector.extract_strided_slice %203 {offsets = [14, 0], sizes = [2, 128], strides = [1, 1]} : vector<16x128xf32> to vector<2x128xf32>
    %356 = arith.truncf %353 : vector<2x32xf32> to vector<2x32xbf16>
    %cst_82 = arith.constant dense<0.000000e+00> : vector<2x128xf32>
    %357 = tpu.matmul %356, %198, %cst_82 {dimension_numbers = #tpu.dot_dimension_numbers<[1], [0], [0], [1], [0, 0, 1, 1], [], []>} : vector<2x32xbf16>, vector<32x128xbf16>, vector<2x128xf32> -> vector<2x128xf32>
    %358 = arith.addf %355, %357 : vector<2x128xf32>
    %359 = math.tanh %358 : vector<2x128xf32>
    %360 = arith.negf %358 : vector<2x128xf32>
    %361 = math.exp %360 : vector<2x128xf32>
    %cst_83 = arith.constant 1.000000e+00 : f32
    %362 = vector.broadcast %cst_83 : f32 to vector<2x128xf32>
    %363 = arith.addf %362, %361 : vector<2x128xf32>
    %364 = arith.divf %362, %363 : vector<2x128xf32>
    %365 = arith.select %8, %359, %364 : vector<2x128xi1>, vector<2x128xf32>
    %366 = vector.extract_strided_slice %365 {offsets = [0, 0], sizes = [2, 32], strides = [1, 1]} : vector<2x128xf32> to vector<2x32xf32>
    %367 = vector.extract_strided_slice %365 {offsets = [0, 32], sizes = [2, 32], strides = [1, 1]} : vector<2x128xf32> to vector<2x32xf32>
    %368 = vector.extract_strided_slice %365 {offsets = [0, 64], sizes = [2, 32], strides = [1, 1]} : vector<2x128xf32> to vector<2x32xf32>
    %369 = vector.extract_strided_slice %365 {offsets = [0, 96], sizes = [2, 32], strides = [1, 1]} : vector<2x128xf32> to vector<2x32xf32>
    %370 = arith.mulf %367, %351 : vector<2x32xf32>
    %371 = arith.mulf %366, %368 : vector<2x32xf32>
    %372 = arith.addf %370, %371 : vector<2x32xf32>
    %373 = math.tanh %372 : vector<2x32xf32>
    %374 = arith.mulf %369, %373 : vector<2x32xf32>
    %c0_84 = arith.constant 0 : index
    %c224 = arith.constant 224 : index
    %375 = vector.load %arg18[%c0_84, %c224] : memref<2x256xf32, #tpu.memory_space<vmem>>, vector<2x32xf32>
    tpu.vector_store %arg18[%c0_84, %c224], %374 {strides = array<i32>} : memref<2x256xf32, #tpu.memory_space<vmem>>, vector<2x32xf32>,
    %c1_85 = arith.constant 1 : index
    %c0_86 = arith.constant 0 : index
    %c0_87 = arith.constant 0 : index
    %376 = vector.load %arg15[%c1_85, %c0_86, %c0_87] : memref<2x2x32xf32, #tpu.memory_space<vmem>>, vector<1x2x32xf32>
    %377 = vector.shape_cast %376 : vector<1x2x32xf32> to vector<2x32xf32>
    %378 = vector.shape_cast %374 : vector<2x32xf32> to vector<1x2x32xf32>
    tpu.vector_store %arg15[%c1_85, %c0_86, %c0_87], %378 {strides = array<i32>} : memref<2x2x32xf32, #tpu.memory_space<vmem>>, vector<1x2x32xf32>,
    %c1_88 = arith.constant 1 : index
    %c0_89 = arith.constant 0 : index
    %c0_90 = arith.constant 0 : index
    %379 = vector.load %arg16[%c1_88, %c0_89, %c0_90] : memref<2x2x32xf32, #tpu.memory_space<vmem>>, vector<1x2x32xf32>
    %380 = vector.shape_cast %379 : vector<1x2x32xf32> to vector<2x32xf32>
    %381 = vector.shape_cast %372 : vector<2x32xf32> to vector<1x2x32xf32>
    tpu.vector_store %arg16[%c1_88, %c0_89, %c0_90], %381 {strides = array<i32>} : memref<2x2x32xf32, #tpu.memory_space<vmem>>, vector<1x2x32xf32>,
    %c0_91 = arith.constant 0 : index
    %c0_92 = arith.constant 0 : index
    %382 = vector.load %arg18[%c0_91, %c0_92] : memref<2x256xf32, #tpu.memory_space<vmem>>, vector<2x256xf32>
    %383 = arith.truncf %382 : vector<2x256xf32> to vector<2x256xbf16>
    %c0_93 = arith.constant 0 : index
    %c0_94 = arith.constant 0 : index
    %384 = vector.load %arg8[%c0_93, %c0_94] : memref<256x64xbf16, #tpu.memory_space<vmem>>, vector<256x64xbf16>
    %cst_95 = arith.constant dense<0.000000e+00> : vector<2x64xf32>
    %385 = tpu.matmul %383, %384, %cst_95 {dimension_numbers = #tpu.dot_dimension_numbers<[1], [0], [0], [1], [0, 0, 1, 1], [], []>} : vector<2x256xbf16>, vector<256x64xbf16>, vector<2x64xf32> -> vector<2x64xf32>
    %c0_96 = arith.constant 0 : index
    %c0_97 = arith.constant 0 : index
    %386 = vector.load %arg9[%c0_96, %c0_97] : memref<1x64xf32, #tpu.memory_space<vmem>>, vector<1x64xf32>
    %387 = vector.broadcast %386 : vector<1x64xf32> to vector<2x64xf32>
    %388 = arith.addf %385, %387 : vector<2x64xf32>
    %389 = arith.truncf %388 : vector<2x64xf32> to vector<2x64xbf16>
    %c0_98 = arith.constant 0 : index
    %c0_99 = arith.constant 0 : index
    %390 = vector.load %arg10[%c0_98, %c0_99] : memref<64x32xbf16, #tpu.memory_space<vmem>>, vector<64x32xbf16>
    %cst_100 = arith.constant dense<0.000000e+00> : vector<2x32xf32>
    %391 = tpu.matmul %389, %390, %cst_100 {dimension_numbers = #tpu.dot_dimension_numbers<[1], [0], [0], [1], [0, 0, 1, 1], [], []>} : vector<2x64xbf16>, vector<64x32xbf16>, vector<2x32xf32> -> vector<2x32xf32>
    %c0_101 = arith.constant 0 : index
    %c0_102 = arith.constant 0 : index
    %392 = vector.load %arg11[%c0_101, %c0_102] : memref<1x32xf32, #tpu.memory_space<vmem>>, vector<1x32xf32>
    %393 = vector.broadcast %392 : vector<1x32xf32> to vector<2x32xf32>
    %394 = arith.addf %391, %393 : vector<2x32xf32>
    %395 = arith.truncf %394 : vector<2x32xf32> to vector<2x32xbf16>
    %c0_103 = arith.constant 0 : index
    %c0_104 = arith.constant 0 : index
    %396 = vector.load %arg12[%c0_103, %c0_104] : memref<32x8xbf16, #tpu.memory_space<vmem>>, vector<32x8xbf16>
    %cst_105 = arith.constant dense<0.000000e+00> : vector<2x8xf32>
    %397 = tpu.matmul %395, %396, %cst_105 {dimension_numbers = #tpu.dot_dimension_numbers<[1], [0], [0], [1], [0, 0, 1, 1], [], []>} : vector<2x32xbf16>, vector<32x8xbf16>, vector<2x8xf32> -> vector<2x8xf32>
    %c0_106 = arith.constant 0 : index
    %c0_107 = arith.constant 0 : index
    %398 = vector.load %arg13[%c0_106, %c0_107] : memref<1x8xf32, #tpu.memory_space<vmem>>, vector<1x8xf32>
    %399 = vector.broadcast %398 : vector<1x8xf32> to vector<2x8xf32>
    %400 = arith.addf %397, %399 : vector<2x8xf32>
    %c0_108 = arith.constant 0 : index
    %c0_109 = arith.constant 0 : index
    %c0_110 = arith.constant 0 : index
    %401 = vector.load %arg14[%c0_108, %c0_109, %c0_110] : memref<1x2x8xf32, #tpu.memory_space<vmem>>, vector<1x2x8xf32>
    %402 = vector.shape_cast %401 : vector<1x2x8xf32> to vector<2x8xf32>
    %403 = vector.shape_cast %400 : vector<2x8xf32> to vector<1x2x8xf32>
    tpu.vector_store %arg14[%c0_108, %c0_109, %c0_110], %403 {strides = array<i32>} : memref<1x2x8xf32, #tpu.memory_space<vmem>>, vector<1x2x8xf32>,
    return
  }
  func.func @transform_0(%arg0: i32) -> (i32, i32, i32) {
    %c0_i32 = arith.constant 0 : i32
    %c0_i32_0 = arith.constant 0 : i32
    %c0_i32_1 = arith.constant 0 : i32
    return %arg0, %c0_i32, %c0_i32_0 : i32, i32, i32
  }
  func.func @transform_1(%arg0: i32) -> (i32, i32) {
    %c0_i32 = arith.constant 0 : i32
    %c0_i32_0 = arith.constant 0 : i32
    %c0_i32_1 = arith.constant 0 : i32
    return %c0_i32, %c0_i32_0 : i32, i32
  }
  func.func @transform_2(%arg0: i32) -> (i32, i32) {
    %c0_i32 = arith.constant 0 : i32
    %c0_i32_0 = arith.constant 0 : i32
    %c0_i32_1 = arith.constant 0 : i32
    return %c0_i32, %c0_i32_0 : i32, i32
  }
  func.func @transform_3(%arg0: i32) -> (i32, i32) {
    %c0_i32 = arith.constant 0 : i32
    %c0_i32_0 = arith.constant 0 : i32
    %c0_i32_1 = arith.constant 0 : i32
    return %c0_i32, %c0_i32_0 : i32, i32
  }
  func.func @transform_4(%arg0: i32) -> (i32, i32) {
    %c0_i32 = arith.constant 0 : i32
    %c0_i32_0 = arith.constant 0 : i32
    %c0_i32_1 = arith.constant 0 : i32
    return %c0_i32, %c0_i32_0 : i32, i32
  }
  func.func @transform_5(%arg0: i32) -> (i32, i32) {
    %c0_i32 = arith.constant 0 : i32
    %c0_i32_0 = arith.constant 0 : i32
    %c0_i32_1 = arith.constant 0 : i32
    return %c0_i32, %c0_i32_0 : i32, i32
  }
  func.func @transform_6(%arg0: i32) -> (i32, i32) {
    %c0_i32 = arith.constant 0 : i32
    %c0_i32_0 = arith.constant 0 : i32
    %c0_i32_1 = arith.constant 0 : i32
    return %c0_i32, %c0_i32_0 : i32, i32
  }
  func.func @transform_7(%arg0: i32) -> (i32, i32) {
    %c0_i32 = arith.constant 0 : i32
    %c0_i32_0 = arith.constant 0 : i32
    %c0_i32_1 = arith.constant 0 : i32
    return %c0_i32, %c0_i32_0 : i32, i32
  }
  func.func @transform_8(%arg0: i32) -> (i32, i32) {
    %c0_i32 = arith.constant 0 : i32
    %c0_i32_0 = arith.constant 0 : i32
    %c0_i32_1 = arith.constant 0 : i32
    return %c0_i32, %c0_i32_0 : i32, i32
  }
  func.func @transform_9(%arg0: i32) -> (i32, i32) {
    %c0_i32 = arith.constant 0 : i32
    %c0_i32_0 = arith.constant 0 : i32
    %c0_i32_1 = arith.constant 0 : i32
    return %c0_i32, %c0_i32_0 : i32, i32
  }
  func.func @transform_10(%arg0: i32) -> (i32, i32) {
    %c0_i32 = arith.constant 0 : i32
    %c0_i32_0 = arith.constant 0 : i32
    %c0_i32_1 = arith.constant 0 : i32
    return %c0_i32, %c0_i32_0 : i32, i32
  }
  func.func @transform_11(%arg0: i32) -> (i32, i32) {
    %c0_i32 = arith.constant 0 : i32
    %c0_i32_0 = arith.constant 0 : i32
    %c0_i32_1 = arith.constant 0 : i32
    return %c0_i32, %c0_i32_0 : i32, i32
  }
  func.func @transform_12(%arg0: i32) -> (i32, i32) {
    %c0_i32 = arith.constant 0 : i32
    %c0_i32_0 = arith.constant 0 : i32
    %c0_i32_1 = arith.constant 0 : i32
    return %c0_i32, %c0_i32_0 : i32, i32
  }
  func.func @transform_13(%arg0: i32) -> (i32, i32, i32) {
    %c0_i32 = arith.constant 0 : i32
    %c0_i32_0 = arith.constant 0 : i32
    %c0_i32_1 = arith.constant 0 : i32
    return %arg0, %c0_i32, %c0_i32_0 : i32, i32, i32
  }
}

</mosaic_0001>

<llo_original>
// kernel: tpu_custom_call.1
$region0: #{tpu_custom_call.1}
  #allocation0 [shape = 'u32[]', space=smem, size = 0x4, offset = 0x4, fixed_abs, tag = 'smem constant byte address 0x4 - core index']
  #allocation1 [shape = 'u32[144,128]{1,0:T(1,128)}', space=vmem, size = 0x12000, scoped, tag = 'internal scratch']
  #allocation2 [shape = 'f32[2,2,32]{2,1,0:T(2,128)}', space=vmem, size = 0x800, scoped, tag = 'scratch operand']
  #allocation3 [shape = 'f32[2,2,32]{2,1,0:T(2,128)}', space=vmem, size = 0x800, scoped, tag = 'scratch operand']
  #allocation4 [shape = 'f32[16,32]{1,0:T(8,128)}', space=vmem, size = 0x2000, scoped, tag = 'scratch operand']
  #allocation5 [shape = 'f32[2,256]{1,0:T(2,128)}', space=vmem, size = 0x800, scoped, tag = 'scratch operand']
  %s0 = inlined_call_operand.vmem [shape: f32[2,16,16], index: 0, kind: input, shape index: {}]
  %s1 = inlined_call_operand.vmem [shape: bf16[16,128], index: 1, kind: input, shape index: {}]
  %s2 = inlined_call_operand.vmem [shape: bf16[32,128], index: 2, kind: input, shape index: {}]
  %s3 = inlined_call_operand.vmem [shape: f32[1,128], index: 3, kind: input, shape index: {}]
  %s4 = inlined_call_operand.vmem [shape: bf16[32,128], index: 4, kind: input, shape index: {}]
  %s5 = inlined_call_operand.vmem [shape: bf16[32,128], index: 5, kind: input, shape index: {}]
  %s6 = inlined_call_operand.vmem [shape: f32[1,128], index: 6, kind: input, shape index: {}]
  %s7 = inlined_call_operand.vmem [shape: bf16[256,64], index: 7, kind: input, shape index: {}]
  %s8 = inlined_call_operand.vmem [shape: f32[1,64], index: 8, kind: input, shape index: {}]
  %s9 = inlined_call_operand.vmem [shape: bf16[64,32], index: 9, kind: input, shape index: {}]
  %s10 = inlined_call_operand.vmem [shape: f32[1,32], index: 10, kind: input, shape index: {}]
  %s11 = inlined_call_operand.vmem [shape: bf16[32,8], index: 11, kind: input, shape index: {}]
  %s12 = inlined_call_operand.vmem [shape: f32[1,8], index: 12, kind: input, shape index: {}]
  %s13 = inlined_call_operand.hbm [shape: f32[2,2,8], index: 13, kind: output, shape index: {}]
  %s14 = sld [smem:[#allocation0]]
  $region89: #{tpu_custom_call.1} parent=0
    _
  %s16 = ssub.s32 1, %s14
  %s17 = scalar_select 0, %s16, %s14
  $region1: #{tpu_custom_call.1} parent=0
    #allocation6 [shape = 'u8[2048]{0}', space=vmem, size = 0x800, scoped, tag = 'output window, operand 0']
    #allocation7 [shape = 's32[2]{0}', space=sflag, size = 0x8, scoped, tag = 'scoped memory for tpu_custom_call.1']
    %18 = vsyncpa [#allocation7], 0
    %s19 = scalar_lea.sflag [#allocation7], 1
    %20 = vsyncpa %s19, 0
    loop: start=0, step=1, limit=4
    $region2: #{tpu_custom_call.1} parent=1 // loop_pre_header
      _
    $region3: #{tpu_custom_call.1} parent=1 // loop_header
      %s22 = sphi 0, %s26
      %p23 = scmp.ge.s32.totalorder %s22, 4
      %s32 = sphi 0, %s34
      %s35 = sphi 0, %s32
      %s36 = sphi 0, %s35
      %s52 = sphi 0, %s36
      %s56 = sphi 0, %s56
      %s58 = sphi 0, %s56
      %s59 = sphi 0, %s58
      %s73 = sphi 0, %s59
      %s77 = sphi 0, %s77
      %s79 = sphi 0, %s77
      %s80 = sphi 0, %s79
      %s94 = sphi 0, %s80
      %s98 = sphi 0, %s98
      %s100 = sphi 0, %s98
      %s101 = sphi 0, %s100
      %s115 = sphi 0, %s101
      %s119 = sphi 0, %s119
      %s121 = sphi 0, %s119
      %s122 = sphi 0, %s121
      %s136 = sphi 0, %s122
      %s140 = sphi 0, %s140
      %s142 = sphi 0, %s140
      %s143 = sphi 0, %s142
      %s157 = sphi 0, %s143
      %s161 = sphi 0, %s161
      %s163 = sphi 0, %s161
      %s164 = sphi 0, %s163
      %s178 = sphi 0, %s164
      %s182 = sphi 0, %s182
      %s184 = sphi 0, %s182
      %s185 = sphi 0, %s184
      %s199 = sphi 0, %s185
      %s203 = sphi 0, %s203
      %s205 = sphi 0, %s203
      %s206 = sphi 0, %s205
      %s220 = sphi 0, %s206
      %s224 = sphi 0, %s224
      %s226 = sphi 0, %s224
      %s227 = sphi 0, %s226
      %s241 = sphi 0, %s227
      %s245 = sphi 0, %s245
      %s247 = sphi 0, %s245
      %s248 = sphi 0, %s247
      %s262 = sphi 0, %s248
      %s266 = sphi 0, %s266
      %s268 = sphi 0, %s266
      %s269 = sphi 0, %s268
      %s283 = sphi 0, %s269
      %s287 = sphi 0, %s287
      %s289 = sphi 0, %s287
      %s290 = sphi 0, %s289
      %s304 = sphi 0, %s290
      %s310 = sphi 0, %s312
      %s313 = sphi 0, %s310
      %s314 = sphi 0, %s313
      %s330 = sphi 0, %s314
    $region4: #{tpu_custom_call.1} parent=1 // loop_header_branch
      %25 = sbr.rel (%p23) target = $region8
    $region5: #{tpu_custom_call.1} parent=1 // loop_body
      %s27 = ssub.s32 %s22, 1
      %s28 = ssub.s32 %s22, 2
      %s29 = sadd.s32 %s22, 1
      %s30 = ssub.s32 %s22, %s29
      %p31 = scmp.eq.s32.totalorder %s30, 0
      %s33 = sadd.s32 %s32, 1
      %s34 = scalar_select %p31, %s32, %s33
      %p37 = pneg %p31
      %p38 = scmp.eq.s32.totalorder %s22, 1
      %p39 = por %p37, %p38
      %p40 = scmp.ne.s32.totalorder %s32, %s35
      %p41 = scmp.eq.s32.totalorder %s22, 0
      %p42 = por %p40, %p41
      %p43 = scmp.ne.s32.totalorder %s32, %s35
      %p44 = scmp.eq.s32.totalorder %s27, 1
      %p45 = por %p43, %p44
      %p46 = scmp.ne.s32.totalorder %s35, %s36
      %p47 = scmp.eq.s32.totalorder %s27, 0
      %p48 = por %p46, %p47
      %p49 = scmp.ne.s32.totalorder %s35, %s36
      %p50 = scmp.eq.s32.totalorder %s28, 1
      %p51 = por %p49, %p50
      %p53 = scmp.ne.s32.totalorder %s36, %s52
      %p54 = scmp.eq.s32.totalorder %s28, 0
      %p55 = por %p53, %p54
      %s57 = sadd.s32 %s56, 1
      %p60 = scmp.eq.s32.totalorder %s22, 1
      %p61 = scmp.ne.s32.totalorder %s56, %s58
      %p62 = scmp.eq.s32.totalorder %s22, 0
      %p63 = por %p61, %p62
      %p64 = scmp.ne.s32.totalorder %s56, %s58
      %p65 = scmp.eq.s32.totalorder %s27, 1
      %p66 = por %p64, %p65
      %p67 = scmp.ne.s32.totalorder %s58, %s59
      %p68 = scmp.eq.s32.totalorder %s27, 0
      %p69 = por %p67, %p68
      %p70 = scmp.ne.s32.totalorder %s58, %s59
      %p71 = scmp.eq.s32.totalorder %s28, 1
      %p72 = por %p70, %p71
      %p74 = scmp.ne.s32.totalorder %s59, %s73
      %p75 = scmp.eq.s32.totalorder %s28, 0
      %p76 = por %p74, %p75
      %s78 = sadd.s32 %s77, 1
      %p81 = scmp.eq.s32.totalorder %s22, 1
      %p82 = scmp.ne.s32.totalorder %s77, %s79
      %p83 = scmp.eq.s32.totalorder %s22, 0
      %p84 = por %p82, %p83
      %p85 = scmp.ne.s32.totalorder %s77, %s79
      %p86 = scmp.eq.s32.totalorder %s27, 1
      %p87 = por %p85, %p86
      %p88 = scmp.ne.s32.totalorder %s79, %s80
      %p89 = scmp.eq.s32.totalorder %s27, 0
      %p90 = por %p88, %p89
      %p91 = scmp.ne.s32.totalorder %s79, %s80
      %p92 = scmp.eq.s32.totalorder %s28, 1
      %p93 = por %p91, %p92
      %p95 = scmp.ne.s32.totalorder %s80, %s94
      %p96 = scmp.eq.s32.totalorder %s28, 0
      %p97 = por %p95, %p96
      %s99 = sadd.s32 %s98, 1
      %p102 = scmp.eq.s32.totalorder %s22, 1
      %p103 = scmp.ne.s32.totalorder %s98, %s100
      %p104 = scmp.eq.s32.totalorder %s22, 0
      %p105 = por %p103, %p104
      %p106 = scmp.ne.s32.totalorder %s98, %s100
      %p107 = scmp.eq.s32.totalorder %s27, 1
      %p108 = por %p106, %p107
      %p109 = scmp.ne.s32.totalorder %s100, %s101
      %p110 = scmp.eq.s32.totalorder %s27, 0
      %p111 = por %p109, %p110
      %p112 = scmp.ne.s32.totalorder %s100, %s101
      %p113 = scmp.eq.s32.totalorder %s28, 1
      %p114 = por %p112, %p113
      %p116 = scmp.ne.s32.totalorder %s101, %s115
      %p117 = scmp.eq.s32.totalorder %s28, 0
      %p118 = por %p116, %p117
      %s120 = sadd.s32 %s119, 1
      %p123 = scmp.eq.s32.totalorder %s22, 1
      %p124 = scmp.ne.s32.totalorder %s119, %s121
      %p125 = scmp.eq.s32.totalorder %s22, 0
      %p126 = por %p124, %p125
      %p127 = scmp.ne.s32.totalorder %s119, %s121
      %p128 = scmp.eq.s32.totalorder %s27, 1
      %p129 = por %p127, %p128
      %p130 = scmp.ne.s32.totalorder %s121, %s122
      %p131 = scmp.eq.s32.totalorder %s27, 0
      %p132 = por %p130, %p131
      %p133 = scmp.ne.s32.totalorder %s121, %s122
      %p134 = scmp.eq.s32.totalorder %s28, 1
      %p135 = por %p133, %p134
      %p137 = scmp.ne.s32.totalorder %s122, %s136
      %p138 = scmp.eq.s32.totalorder %s28, 0
      %p139 = por %p137, %p138
      %s141 = sadd.s32 %s140, 1
      %p144 = scmp.eq.s32.totalorder %s22, 1
      %p145 = scmp.ne.s32.totalorder %s140, %s142
      %p146 = scmp.eq.s32.totalorder %s22, 0
      %p147 = por %p145, %p146
      %p148 = scmp.ne.s32.totalorder %s140, %s142
      %p149 = scmp.eq.s32.totalorder %s27, 1
      %p150 = por %p148, %p149
      %p151 = scmp.ne.s32.totalorder %s142, %s143
      %p152 = scmp.eq.s32.totalorder %s27, 0
      %p153 = por %p151, %p152
      %p154 = scmp.ne.s32.totalorder %s142, %s143
      %p155 = scmp.eq.s32.totalorder %s28, 1
      %p156 = por %p154, %p155
      %p158 = scmp.ne.s32.totalorder %s143, %s157
      %p159 = scmp.eq.s32.totalorder %s28, 0
      %p160 = por %p158, %p159
      %s162 = sadd.s32 %s161, 1
      %p165 = scmp.eq.s32.totalorder %s22, 1
      %p166 = scmp.ne.s32.totalorder %s161, %s163
      %p167 = scmp.eq.s32.totalorder %s22, 0
      %p168 = por %p166, %p167
      %p169 = scmp.ne.s32.totalorder %s161, %s163
      %p170 = scmp.eq.s32.totalorder %s27, 1
      %p171 = por %p169, %p170
      %p172 = scmp.ne.s32.totalorder %s163, %s164
      %p173 = scmp.eq.s32.totalorder %s27, 0
      %p174 = por %p172, %p173
      %p175 = scmp.ne.s32.totalorder %s163, %s164
      %p176 = scmp.eq.s32.totalorder %s28, 1
      %p177 = por %p175, %p176
      %p179 = scmp.ne.s32.totalorder %s164, %s178
      %p180 = scmp.eq.s32.totalorder %s28, 0
      %p181 = por %p179, %p180
      %s183 = sadd.s32 %s182, 1
      %p186 = scmp.eq.s32.totalorder %s22, 1
      %p187 = scmp.ne.s32.totalorder %s182, %s184
      %p188 = scmp.eq.s32.totalorder %s22, 0
      %p189 = por %p187, %p188
      %p190 = scmp.ne.s32.totalorder %s182, %s184
      %p191 = scmp.eq.s32.totalorder %s27, 1
      %p192 = por %p190, %p191
      %p193 = scmp.ne.s32.totalorder %s184, %s185
      %p194 = scmp.eq.s32.totalorder %s27, 0
      %p195 = por %p193, %p194
      %p196 = scmp.ne.s32.totalorder %s184, %s185
      %p197 = scmp.eq.s32.totalorder %s28, 1
      %p198 = por %p196, %p197
      %p200 = scmp.ne.s32.totalorder %s185, %s199
      %p201 = scmp.eq.s32.totalorder %s28, 0
      %p202 = por %p200, %p201
      %s204 = sadd.s32 %s203, 1
      %p207 = scmp.eq.s32.totalorder %s22, 1
      %p208 = scmp.ne.s32.totalorder %s203, %s205
      %p209 = scmp.eq.s32.totalorder %s22, 0
      %p210 = por %p208, %p209
      %p211 = scmp.ne.s32.totalorder %s203, %s205
      %p212 = scmp.eq.s32.totalorder %s27, 1
      %p213 = por %p211, %p212
      %p214 = scmp.ne.s32.totalorder %s205, %s206
      %p215 = scmp.eq.s32.totalorder %s27, 0
      %p216 = por %p214, %p215
      %p217 = scmp.ne.s32.totalorder %s205, %s206
      %p218 = scmp.eq.s32.totalorder %s28, 1
      %p219 = por %p217, %p218
      %p221 = scmp.ne.s32.totalorder %s206, %s220
      %p222 = scmp.eq.s32.totalorder %s28, 0
      %p223 = por %p221, %p222
      %s225 = sadd.s32 %s224, 1
      %p228 = scmp.eq.s32.totalorder %s22, 1
      %p229 = scmp.ne.s32.totalorder %s224, %s226
      %p230 = scmp.eq.s32.totalorder %s22, 0
      %p231 = por %p229, %p230
      %p232 = scmp.ne.s32.totalorder %s224, %s226
      %p233 = scmp.eq.s32.totalorder %s27, 1
      %p234 = por %p232, %p233
      %p235 = scmp.ne.s32.totalorder %s226, %s227
      %p236 = scmp.eq.s32.totalorder %s27, 0
      %p237 = por %p235, %p236
      %p238 = scmp.ne.s32.totalorder %s226, %s227
      %p239 = scmp.eq.s32.totalorder %s28, 1
      %p240 = por %p238, %p239
      %p242 = scmp.ne.s32.totalorder %s227, %s241
      %p243 = scmp.eq.s32.totalorder %s28, 0
      %p244 = por %p242, %p243
      %s246 = sadd.s32 %s245, 1
      %p249 = scmp.eq.s32.totalorder %s22, 1
      %p250 = scmp.ne.s32.totalorder %s245, %s247
      %p251 = scmp.eq.s32.totalorder %s22, 0
      %p252 = por %p250, %p251
      %p253 = scmp.ne.s32.totalorder %s245, %s247
      %p254 = scmp.eq.s32.totalorder %s27, 1
      %p255 = por %p253, %p254
      %p256 = scmp.ne.s32.totalorder %s247, %s248
      %p257 = scmp.eq.s32.totalorder %s27, 0
      %p258 = por %p256, %p257
      %p259 = scmp.ne.s32.totalorder %s247, %s248
      %p260 = scmp.eq.s32.totalorder %s28, 1
      %p261 = por %p259, %p260
      %p263 = scmp.ne.s32.totalorder %s248, %s262
      %p264 = scmp.eq.s32.totalorder %s28, 0
      %p265 = por %p263, %p264
      %s267 = sadd.s32 %s266, 1
      %p270 = scmp.eq.s32.totalorder %s22, 1
      %p271 = scmp.ne.s32.totalorder %s266, %s268
      %p272 = scmp.eq.s32.totalorder %s22, 0
      %p273 = por %p271, %p272
      %p274 = scmp.ne.s32.totalorder %s266, %s268
      %p275 = scmp.eq.s32.totalorder %s27, 1
      %p276 = por %p274, %p275
      %p277 = scmp.ne.s32.totalorder %s268, %s269
      %p278 = scmp.eq.s32.totalorder %s27, 0
      %p279 = por %p277, %p278
      %p280 = scmp.ne.s32.totalorder %s268, %s269
      %p281 = scmp.eq.s32.totalorder %s28, 1
      %p282 = por %p280, %p281
      %p284 = scmp.ne.s32.totalorder %s269, %s283
      %p285 = scmp.eq.s32.totalorder %s28, 0
      %p286 = por %p284, %p285
      %s288 = sadd.s32 %s287, 1
      %p291 = scmp.eq.s32.totalorder %s22, 1
      %p292 = scmp.ne.s32.totalorder %s287, %s289
      %p293 = scmp.eq.s32.totalorder %s22, 0
      %p294 = por %p292, %p293
      %p295 = scmp.ne.s32.totalorder %s287, %s289
      %p296 = scmp.eq.s32.totalorder %s27, 1
      %p297 = por %p295, %p296
      %p298 = scmp.ne.s32.totalorder %s289, %s290
      %p299 = scmp.eq.s32.totalorder %s27, 0
      %p300 = por %p298, %p299
      %p301 = scmp.ne.s32.totalorder %s289, %s290
      %p302 = scmp.eq.s32.totalorder %s28, 1
      %p303 = por %p301, %p302
      %p305 = scmp.ne.s32.totalorder %s290, %s304
      %p306 = scmp.eq.s32.totalorder %s28, 0
      %p307 = por %p305, %p306
      %s308 = ssub.s32 %s22, %s29
      %p309 = scmp.eq.s32.totalorder %s308, 0
      %s311 = sadd.s32 %s310, 1
      %s312 = scalar_select %p309, %s310, %s311
      %p315 = pneg %p309
      %p316 = scmp.eq.s32.totalorder %s22, 1
      %p317 = por %p315, %p316
      %p318 = scmp.ne.s32.totalorder %s310, %s313
      %p319 = scmp.eq.s32.totalorder %s22, 0
      %p320 = por %p318, %p319
      %p321 = scmp.ne.s32.totalorder %s310, %s313
      %p322 = scmp.eq.s32.totalorder %s27, 1
      %p323 = por %p321, %p322
      %p324 = scmp.ne.s32.totalorder %s313, %s314
      %p325 = scmp.eq.s32.totalorder %s27, 0
      %p326 = por %p324, %p325
      %p327 = scmp.ne.s32.totalorder %s313, %s314
      %p328 = scmp.eq.s32.totalorder %s28, 1
      %p329 = por %p327, %p328
      %p331 = scmp.ne.s32.totalorder %s314, %s330
      %p332 = scmp.eq.s32.totalorder %s28, 0
      %p333 = por %p331, %p332
      %p334 = scmp.le.s32.totalorder 1, %s22
      %p335 = scmp.lt.s32.totalorder %s22, 3
      %p336 = pnand %p334, %p335
      %p337 = pneg %p336
      // Predicated region
      $region9: #{tpu_custom_call.1} parent=5 // pred_check
        _
      $region10: #{tpu_custom_call.1} parent=5 // pred_check_branch
        %339 = sbr.rel (%p336) target = $region12
      $region11: #{tpu_custom_call.1} parent=5 // pred_region
        %s340 = ssub.s32 %s22, 1
        // Predicated region
        $region13: #{tpu_custom_call.1} parent=11 // pred_check
          %p341 = pneg %p69
        $region14: #{tpu_custom_call.1} parent=11 // pred_check_branch
          %343 = sbr.rel (%p341) target = $region16
        $region15: #{tpu_custom_call.1} parent=11 // pred_region
          _
        $region16: #{tpu_custom_call.1} parent=11 // pred_fallthru
          _
        // Predicated region
        $region17: #{tpu_custom_call.1} parent=11 // pred_check
          %p344 = pneg %p90
        $region18: #{tpu_custom_call.1} parent=11 // pred_check_branch
          %346 = sbr.rel (%p344) target = $region20
        $region19: #{tpu_custom_call.1} parent=11 // pred_region
          _
        $region20: #{tpu_custom_call.1} parent=11 // pred_fallthru
          _
        // Predicated region
        $region21: #{tpu_custom_call.1} parent=11 // pred_check
          %p347 = pneg %p111
        $region22: #{tpu_custom_call.1} parent=11 // pred_check_branch
          %349 = sbr.rel (%p347) target = $region24
        $region23: #{tpu_custom_call.1} parent=11 // pred_region
          _
        $region24: #{tpu_custom_call.1} parent=11 // pred_fallthru
          _
        // Predicated region
        $region25: #{tpu_custom_call.1} parent=11 // pred_check
          %p350 = pneg %p132
        $region26: #{tpu_custom_call.1} parent=11 // pred_check_branch
          %352 = sbr.rel (%p350) target = $region28
        $region27: #{tpu_custom_call.1} parent=11 // pred_region
          _
        $region28: #{tpu_custom_call.1} parent=11 // pred_fallthru
          _
        // Predicated region
        $region29: #{tpu_custom_call.1} parent=11 // pred_check
          %p353 = pneg %p153
        $region30: #{tpu_custom_call.1} parent=11 // pred_check_branch
          %355 = sbr.rel (%p353) target = $region32
        $region31: #{tpu_custom_call.1} parent=11 // pred_region
          _
        $region32: #{tpu_custom_call.1} parent=11 // pred_fallthru
          _
        // Predicated region
        $region33: #{tpu_custom_call.1} parent=11 // pred_check
          %p356 = pneg %p174
        $region34: #{tpu_custom_call.1} parent=11 // pred_check_branch
          %358 = sbr.rel (%p356) target = $region36
        $region35: #{tpu_custom_call.1} parent=11 // pred_region
          _
        $region36: #{tpu_custom_call.1} parent=11 // pred_fallthru
          _
        // Predicated region
        $region37: #{tpu_custom_call.1} parent=11 // pred_check
          %p359 = pneg %p195
        $region38: #{tpu_custom_call.1} parent=11 // pred_check_branch
          %361 = sbr.rel (%p359) target = $region40
        $region39: #{tpu_custom_call.1} parent=11 // pred_region
          _
        $region40: #{tpu_custom_call.1} parent=11 // pred_fallthru
          _
        // Predicated region
        $region41: #{tpu_custom_call.1} parent=11 // pred_check
          %p362 = pneg %p216
        $region42: #{tpu_custom_call.1} parent=11 // pred_check_branch
          %364 = sbr.rel (%p362) target = $region44
        $region43: #{tpu_custom_call.1} parent=11 // pred_region
          _
        $region44: #{tpu_custom_call.1} parent=11 // pred_fallthru
          _
        // Predicated region
        $region45: #{tpu_custom_call.1} parent=11 // pred_check
          %p365 = pneg %p237
        $region46: #{tpu_custom_call.1} parent=11 // pred_check_branch
          %367 = sbr.rel (%p365) target = $region48
        $region47: #{tpu_custom_call.1} parent=11 // pred_region
          _
        $region48: #{tpu_custom_call.1} parent=11 // pred_fallthru
          _
        // Predicated region
        $region49: #{tpu_custom_call.1} parent=11 // pred_check
          %p368 = pneg %p258
        $region50: #{tpu_custom_call.1} parent=11 // pred_check_branch
          %370 = sbr.rel (%p368) target = $region52
        $region51: #{tpu_custom_call.1} parent=11 // pred_region
          _
        $region52: #{tpu_custom_call.1} parent=11 // pred_fallthru
          _
        // Predicated region
        $region53: #{tpu_custom_call.1} parent=11 // pred_check
          %p371 = pneg %p279
        $region54: #{tpu_custom_call.1} parent=11 // pred_check_branch
          %373 = sbr.rel (%p371) target = $region56
        $region55: #{tpu_custom_call.1} parent=11 // pred_region
          _
        $region56: #{tpu_custom_call.1} parent=11 // pred_fallthru
          _
        // Predicated region
        $region57: #{tpu_custom_call.1} parent=11 // pred_check
          %p374 = pneg %p300
        $region58: #{tpu_custom_call.1} parent=11 // pred_check_branch
          %376 = sbr.rel (%p374) target = $region60
        $region59: #{tpu_custom_call.1} parent=11 // pred_region
          _
        $region60: #{tpu_custom_call.1} parent=11 // pred_fallthru
          _
      $region12: #{tpu_custom_call.1} parent=5 // pred_fallthru
        _
      %p377 = scmp.lt.s32.totalorder %s22, 2
      // Predicated region
      $region61: #{tpu_custom_call.1} parent=5 // pred_check
        %p378 = pneg %p377
      $region62: #{tpu_custom_call.1} parent=5 // pred_check_branch
        %380 = sbr.rel (%p378) target = $region64
      $region63: #{tpu_custom_call.1} parent=5 // pred_region
        // Predicated region
        $region65: #{tpu_custom_call.1} parent=63 // pred_check
          %p381 = pneg %p42
        $region66: #{tpu_custom_call.1} parent=63 // pred_check_branch
          %383 = sbr.rel (%p381) target = $region68
        $region67: #{tpu_custom_call.1} parent=63 // pred_region
          %p384 = scmp.lt.s32.totalorder %s22, 1
          %s385 = scalar_select %p384, %s22, 1
          %s386 = smul.addr %s385, 2
          %s387 = smul.addr %s386, 8
          %s388 = scalar_lea.vmem %s0, %s387
        $region68: #{tpu_custom_call.1} parent=63 // pred_fallthru
          _
      $region64: #{tpu_custom_call.1} parent=5 // pred_fallthru
        _
      %p389 = scmp.le.s32.totalorder 1, %s22
      %p390 = scmp.lt.s32.totalorder %s22, 3
      %p391 = pnand %p389, %p390
      %p392 = pneg %p391
      // Predicated region
      $region69: #{tpu_custom_call.1} parent=5 // pred_check
        _
      $region70: #{tpu_custom_call.1} parent=5 // pred_check_branch
        %394 = sbr.rel (%p391) target = $region72
      $region71: #{tpu_custom_call.1} parent=5 // pred_region
        %s395 = ssub.s32 %s22, 1
        %p396 = scmp.lt.s32.totalorder %s27, 1
        %s397 = scalar_select %p396, %s27, 1
        %s398 = smul.addr %s397, 2
        %s399 = smul.addr %s398, 8
        %s400 = scalar_lea.vmem %s0, %s399
        %p401 = pneg %p48
        %p402 = pneg %p45
        %p403 = pneg %p69
        %p404 = pneg %p66
        %p405 = pneg %p90
        %p406 = pneg %p87
        %p407 = pneg %p111
        %p408 = pneg %p108
        %p409 = pneg %p132
        %p410 = pneg %p129
        %p411 = pneg %p153
        %p412 = pneg %p150
        %p413 = pneg %p174
        %p414 = pneg %p171
        %p415 = pneg %p195
        %p416 = pneg %p192
        %p417 = pneg %p216
        %p418 = pneg %p213
        %p419 = pneg %p237
        %p420 = pneg %p234
        %p421 = pneg %p258
        %p422 = pneg %p255
        %p423 = pneg %p279
        %p424 = pneg %p276
        %p425 = pneg %p300
        %p426 = pneg %p297
        %p427 = pneg %p326
        %p428 = pneg %p323
        %s429 = sand.u32 %s313, 1
        %s430 = scalar_lea.sflag [#allocation7], %s429
        %s431 = sand.u32 %s313, 1
        %s432 = smul.addr %s431, 2
        %s433 = scalar_lea.vmem [#allocation6], %s432
        %p434 = scmp.lt.s32.totalorder %s27, 1
        %s435 = scalar_select %p434, %s27, 1
        %s436 = smul.addr %s435, 2
        %s437 = smul.addr %s436, 8
        %s438 = scalar_lea.vmem %s0, %s437
        %p440 = scmp.eq.s32.totalorder %s27, 0
        // Predicated region
        $region73: #{tpu_custom_call.1} parent=71 // pred_check
          %p441 = pneg %p440
        $region74: #{tpu_custom_call.1} parent=71 // pred_check_branch
          %443 = sbr.rel (%p441) target = $region76
        $region75: #{tpu_custom_call.1} parent=71 // pred_region
          %vm444 = vcmask 254976
          %445 = vst.msk [vmem:[#allocation2] sm:$0x3] %vm444, 0.0
          %446 = vst.msk [vmem:[#allocation2 + $0x2] sm:$0x3] %vm444, 0.0
          %447 = vst.msk [vmem:[#allocation3] sm:$0x3] %vm444, 0.0
          %448 = vst.msk [vmem:[#allocation3 + $0x2] sm:$0x3] %vm444, 0.0
        $region76: #{tpu_custom_call.1} parent=71 // pred_fallthru
          _
        %v449 = vlaneseq
        %v450 = vand.u32 %v449, 127
        %vm451 = vcmp.ge.s32.totalorder %v450, 64
        %vm452 = vcmp.lt.s32.totalorder %v450, 96
        %vm453 = vmand %vm451, %vm452
        %v454 = vld [vmem:[%s438] sm:$0xff]
        %v455 = vld [vmem:[%s438 + $0x8] sm:$0xff]
        %v456 = vpack.c.bf16 %v455, %v454
        %v457 = vld [vmem:[%s2] sm:$0xf]
        %v458 = vld [vmem:[%s2 + $0x4] sm:$0xf]
        %v459 = vld [vmem:[%s2 + $0x8] sm:$0xf]
        %v460 = vld [vmem:[%s2 + $0xc] sm:$0xf]
        %v461 = vld [vmem:[%s1] sm:$0xf]
        %v462 = vld [vmem:[%s1 + $0x4] sm:$0xf]
        %v463 = vld [vmem:[%s3] sm:$0x1]
        %v465 = vlaneseq
        %v466 = vshrl.u32 %v465, 7
        %v467 = vsub.s32 0, %v466
        %v468 = vrot.slane %v463, %v467
        %v472 = vunpack.c.l.b16 %v461
        %v473 = vunpack.c.l.b16 %v462
        %v474 = vpack.c.b16 %v473, %v472
        %vm476 = vcmask 130048
        %v478 = vsel %vm476, %v456, 0
        %480 = vmatprep.subr.bf16.mxu0 0
        %481 = vmatpush1.bf16.msra.mxu0 0
        %482 = vmatprep.subr.bf16.mxu0 0
        %483 = vmatpush1.bf16.msra.mxu0 0
        %484 = vmatprep.subr.bf16.mxu0 0
        %485 = vmatpush1.bf16.msra.mxu0 0
        %486 = vmatprep.subr.bf16.mxu0 0
        %487 = vmatpush1.bf16.msra.mxu0 0
        %488 = vmatprep.subr.bf16.mxu0 0
        %489 = vmatpush1.bf16.msra.mxu0 0
        %490 = vmatprep.subr.bf16.mxu0 0
        %491 = vmatpush1.bf16.msra.mxu0 0
        %492 = vmatprep.subr.bf16.mxu0 0
        %493 = vmatpush1.bf16.msra.mxu0 0
        %494 = vmatprep.subr.bf16.mxu0 0
        %495 = vmatpush1.bf16.msra.mxu0 %v474
        %496 = vmatprep.subr.bf16.mxu0 0
        %497 = vmatpush2.bf16.msra.mxu0 0
        %498 = vmatprep.subr.bf16.mxu0 0
        %499 = vmatpush2.bf16.msra.mxu0 0
        %500 = vmatprep.subr.bf16.mxu0 0
        %501 = vmatpush2.bf16.msra.mxu0 0
        %502 = vmatprep.subr.bf16.mxu0 0
        %503 = vmatpush2.bf16.msra.mxu0 0
        %504 = vmatprep.subr.bf16.mxu0 0
        %505 = vmatpush2.bf16.msra.mxu0 0
        %506 = vmatprep.subr.bf16.mxu0 0
        %507 = vmatpush2.bf16.msra.mxu0 0
        %508 = vmatprep.subr.bf16.mxu0 0
        %509 = vmatpush2.bf16.msra.mxu0 0
        %510 = vmatprep.subr.bf16.mxu0 0
        %511 = vmatpush2.bf16.msra.mxu0 0
        %512 = vmatprep.mubr.bf16.mxu0 0
        %513 = vmatmul.mubr.bf16.gmra.mxu0 %v478
        %v514 = vpop.f32.mrf.mxu0
        %v515 = vadd.f32 %v468, %v514
        %v516 = vpop.f32.mrf.mxu0
        %v517 = vpop.f32.mrf.mxu0
        %v518 = vadd.f32 %v468, %v517
        %v519 = vpop.f32.mrf.mxu0
        %520 = vdwg.mxu0
        %v521 = vld [vmem:[#allocation2] sm:$0x3]
        %v522 = vld [vmem:[#allocation3] sm:$0x3]
        %v523 = vpack.c.bf16 %v521, %v521
        %v528 = vunpack.c.l.b16 %v457
        %v529 = vunpack.c.l.b16 %v458
        %v530 = vunpack.c.l.b16 %v459
        %v531 = vunpack.c.l.b16 %v460
        %v532 = vpack.c.b16 %v529, %v528
        %v533 = vpack.c.b16 %v531, %v530
        %vm536 = vcmask 261120
        %v538 = vsel %vm536, %v523, 0
        %540 = vmatprep.subr.bf16.mxu0 0
        %541 = vmatpush1.bf16.msra.mxu0 0
        %542 = vmatprep.subr.bf16.mxu0 0
        %543 = vmatpush1.bf16.msra.mxu0 0
        %544 = vmatprep.subr.bf16.mxu0 0
        %545 = vmatpush1.bf16.msra.mxu0 0
        %546 = vmatprep.subr.bf16.mxu0 0
        %547 = vmatpush1.bf16.msra.mxu0 0
        %548 = vmatprep.subr.bf16.mxu0 0
        %549 = vmatpush1.bf16.msra.mxu0 0
        %550 = vmatprep.subr.bf16.mxu0 0
        %551 = vmatpush1.bf16.msra.mxu0 0
        %552 = vmatprep.subr.bf16.mxu0 0
        %553 = vmatpush1.bf16.msra.mxu0 %v533
        %554 = vmatprep.subr.bf16.mxu0 0
        %555 = vmatpush1.bf16.msra.mxu0 %v532
        %556 = vmatprep.subr.bf16.mxu0 0
        %557 = vmatpush2.bf16.msra.mxu0 0
        %558 = vmatprep.subr.bf16.mxu0 0
        %559 = vmatpush2.bf16.msra.mxu0 0
        %560 = vmatprep.subr.bf16.mxu0 0
        %561 = vmatpush2.bf16.msra.mxu0 0
        %562 = vmatprep.subr.bf16.mxu0 0
        %563 = vmatpush2.bf16.msra.mxu0 0
        %564 = vmatprep.subr.bf16.mxu0 0
        %565 = vmatpush2.bf16.msra.mxu0 0
        %566 = vmatprep.subr.bf16.mxu0 0
        %567 = vmatpush2.bf16.msra.mxu0 0
        %568 = vmatprep.subr.bf16.mxu0 0
        %569 = vmatpush2.bf16.msra.mxu0 0
        %570 = vmatprep.subr.bf16.mxu0 0
        %571 = vmatpush2.bf16.msra.mxu0 0
        %572 = vmatprep.mubr.bf16.mxu0 0
        %573 = vmatmul.mubr.bf16.gmra.mxu0 %v538
        %v574 = vpop.f32.mrf.mxu0
        %v575 = vadd.f32 0.0, %v574
        %v576 = vpop.f32.mrf.mxu0
        %v577 = vpop.f32.mrf.mxu0
        %v578 = vpop.f32.mrf.mxu0
        %579 = vdwg.mxu0
        %v580 = vadd.f32 %v515, %v575
        %v581 = vtanh.pop %v580
        %v582 = vxor.u32 %v580, 2147483648
        %v583 = vmul.f32 %v582, 1.442695
        %v584 = vpow.pop %v583
        %v585 = vadd.f32 %v584, 1.0
        %v586 = vrcp.pop %v585
        %v587 = vmul.f32 1.0, %v586
        %v588 = vsel %vm453, %v581, %v587
        %590 = vrot.lane.b32.xlu0 %v522, 32
        %v591 = vpop.permute.xlu0 %590
        %v593 = vmul.f32 %v588, %v591
        %595 = vrot.lane.b32.xlu0 %v588, 64
        %v596 = vpop.permute.xlu0 %595
        %v598 = vmul.f32 %v588, %v596
        %600 = vrot.lane.b32.xlu0 %v598, 32
        %v601 = vpop.permute.xlu0 %600
        %v603 = vadd.f32 %v593, %v601
        %v604 = vtanh.pop %v603
        %606 = vrot.lane.b32.xlu0 %v604, 64
        %v607 = vpop.permute.xlu0 %606
        %v609 = vmul.f32 %v588, %v607
        %611 = vrot.lane.b32.xlu0 %v609, 32
        %v612 = vpop.permute.xlu0 %611
        %vm614 = vcmask 254976
        %615 = vst.msk [vmem:[#allocation4] sm:$0x3] %vm614, %v612
        %v616 = vpack.c.bf16 %v609, %v609
        %618 = vrot.lane.b32.xlu0 %v616, 32
        %v619 = vpop.permute.xlu0 %618
        %v621 = vsel %vm536, %v619, 0
        %623 = vmatprep.subr.bf16.mxu0 0
        %624 = vmatpush1.bf16.msra.mxu0 0
        %625 = vmatprep.subr.bf16.mxu0 0
        %626 = vmatpush1.bf16.msra.mxu0 0
        %627 = vmatprep.subr.bf16.mxu0 0
        %628 = vmatpush1.bf16.msra.mxu0 0
        %629 = vmatprep.subr.bf16.mxu0 0
        %630 = vmatpush1.bf16.msra.mxu0 0
        %631 = vmatprep.subr.bf16.mxu0 0
        %632 = vmatpush1.bf16.msra.mxu0 0
        %633 = vmatprep.subr.bf16.mxu0 0
        %634 = vmatpush1.bf16.msra.mxu0 0
        %635 = vmatprep.subr.bf16.mxu0 0
        %636 = vmatpush1.bf16.msra.mxu0 %v533
        %637 = vmatprep.subr.bf16.mxu0 0
        %638 = vmatpush1.bf16.msra.mxu0 %v532
        %639 = vmatprep.subr.bf16.mxu0 0
        %640 = vmatpush2.bf16.msra.mxu0 0
        %641 = vmatprep.subr.bf16.mxu0 0
        %642 = vmatpush2.bf16.msra.mxu0 0
        %643 = vmatprep.subr.bf16.mxu0 0
        %644 = vmatpush2.bf16.msra.mxu0 0
        %645 = vmatprep.subr.bf16.mxu0 0
        %646 = vmatpush2.bf16.msra.mxu0 0
        %647 = vmatprep.subr.bf16.mxu0 0
        %648 = vmatpush2.bf16.msra.mxu0 0
        %649 = vmatprep.subr.bf16.mxu0 0
        %650 = vmatpush2.bf16.msra.mxu0 0
        %651 = vmatprep.subr.bf16.mxu0 0
        %652 = vmatpush2.bf16.msra.mxu0 0
        %653 = vmatprep.subr.bf16.mxu0 0
        %654 = vmatpush2.bf16.msra.mxu0 0
        %655 = vmatprep.mubr.bf16.mxu0 0
        %656 = vmatmul.mubr.bf16.gmra.mxu0 %v621
        %v657 = vpop.f32.mrf.mxu0
        %v658 = vadd.f32 0.0, %v657
        %v659 = vpop.f32.mrf.mxu0
        %v660 = vpop.f32.mrf.mxu0
        %v661 = vpop.f32.mrf.mxu0
        %662 = vdwg.mxu0
        %v664 = vrot.slane %v658, 6
        %v666 = vadd.f32 %v515, %v664
        %v667 = vtanh.pop %v666
        %v668 = vxor.u32 %v666, 2147483648
        %v669 = vmul.f32 %v668, 1.442695
        %v670 = vpow.pop %v669
        %v671 = vadd.f32 %v670, 1.0
        %v672 = vrcp.pop %v671
        %v673 = vmul.f32 1.0, %v672
        %v674 = vsel %vm453, %v667, %v673
        %v676 = vrot.slane %v603, 6
        %v678 = vmul.f32 %v674, %v676
        %680 = vrot.lane.b32.xlu0 %v674, 64
        %v681 = vpop.permute.xlu0 %680
        %v683 = vmul.f32 %v674, %v681
        %685 = vrot.lane.b32.xlu0 %v683, 32
        %v686 = vpop.permute.xlu0 %685
        %v688 = vadd.f32 %v678, %v686
        %v689 = vtanh.pop %v688
        %691 = vrot.lane.b32.xlu0 %v689, 64
        %v692 = vpop.permute.xlu0 %691
        %v694 = vmul.f32 %v674, %v692
        %696 = vrot.lane.b32.xlu0 %v694, 32
        %v697 = vpop.permute.xlu0 %696
        %vm699 = vcmask 257026
        %700 = vst.msk [vmem:[#allocation4] sm:$0xc] %vm699, %v697
        %v701 = vpack.c.bf16 %v694, %v694
        %v703 = vrot.slane %v701, 1
        %704 = vrot.lane.b32.xlu0 %v703, 32
        %v705 = vpop.permute.xlu0 %704
        %v707 = vsel %vm536, %v705, 0
        %709 = vmatprep.subr.bf16.mxu0 0
        %710 = vmatpush1.bf16.msra.mxu0 0
        %711 = vmatprep.subr.bf16.mxu0 0
        %712 = vmatpush1.bf16.msra.mxu0 0
        %713 = vmatprep.subr.bf16.mxu0 0
        %714 = vmatpush1.bf16.msra.mxu0 0
        %715 = vmatprep.subr.bf16.mxu0 0
        %716 = vmatpush1.bf16.msra.mxu0 0
        %717 = vmatprep.subr.bf16.mxu0 0
        %718 = vmatpush1.bf16.msra.mxu0 0
        %719 = vmatprep.subr.bf16.mxu0 0
        %720 = vmatpush1.bf16.msra.mxu0 0
        %721 = vmatprep.subr.bf16.mxu0 0
        %722 = vmatpush1.bf16.msra.mxu0 %v533
        %723 = vmatprep.subr.bf16.mxu0 0
        %724 = vmatpush1.bf16.msra.mxu0 %v532
        %725 = vmatprep.subr.bf16.mxu0 0
        %726 = vmatpush2.bf16.msra.mxu0 0
        %727 = vmatprep.subr.bf16.mxu0 0
        %728 = vmatpush2.bf16.msra.mxu0 0
        %729 = vmatprep.subr.bf16.mxu0 0
        %730 = vmatpush2.bf16.msra.mxu0 0
        %731 = vmatprep.subr.bf16.mxu0 0
        %732 = vmatpush2.bf16.msra.mxu0 0
        %733 = vmatprep.subr.bf16.mxu0 0
        %734 = vmatpush2.bf16.msra.mxu0 0
        %735 = vmatprep.subr.bf16.mxu0 0
        %736 = vmatpush2.bf16.msra.mxu0 0
        %737 = vmatprep.subr.bf16.mxu0 0
        %738 = vmatpush2.bf16.msra.mxu0 0
        %739 = vmatprep.subr.bf16.mxu0 0
        %740 = vmatpush2.bf16.msra.mxu0 0
        %741 = vmatprep.mubr.bf16.mxu0 0
        %742 = vmatmul.mubr.bf16.gmra.mxu0 %v707
        %v743 = vpop.f32.mrf.mxu0
        %v744 = vadd.f32 0.0, %v743
        %v745 = vpop.f32.mrf.mxu0
        %v746 = vpop.f32.mrf.mxu0
        %v747 = vpop.f32.mrf.mxu0
        %748 = vdwg.mxu0
        %v750 = vrot.slane %v744, 4
        %v752 = vadd.f32 %v515, %v750
        %v753 = vtanh.pop %v752
        %v754 = vxor.u32 %v752, 2147483648
        %v755 = vmul.f32 %v754, 1.442695
        %v756 = vpow.pop %v755
        %v757 = vadd.f32 %v756, 1.0
        %v758 = vrcp.pop %v757
        %v759 = vmul.f32 1.0, %v758
        %v760 = vsel %vm453, %v753, %v759
        %v762 = vrot.slane %v688, 6
        %v764 = vmul.f32 %v760, %v762
        %766 = vrot.lane.b32.xlu0 %v760, 64
        %v767 = vpop.permute.xlu0 %766
        %v769 = vmul.f32 %v760, %v767
        %771 = vrot.lane.b32.xlu0 %v769, 32
        %v772 = vpop.permute.xlu0 %771
        %v774 = vadd.f32 %v764, %v772
        %v775 = vtanh.pop %v774
        %777 = vrot.lane.b32.xlu0 %v775, 64
        %v778 = vpop.permute.xlu0 %777
        %v780 = vmul.f32 %v760, %v778
        %782 = vrot.lane.b32.xlu0 %v780, 32
        %v783 = vpop.permute.xlu0 %782
        %vm785 = vcmask 259076
        %786 = vst.msk [vmem:[#allocation4] sm:$0x30] %vm785, %v783
        %v787 = vpack.c.bf16 %v780, %v780
        %v789 = vrot.slane %v787, 2
        %790 = vrot.lane.b32.xlu0 %v789, 32
        %v791 = vpop.permute.xlu0 %790
        %v793 = vsel %vm536, %v791, 0
        %795 = vmatprep.subr.bf16.mxu0 0
        %796 = vmatpush1.bf16.msra.mxu0 0
        %797 = vmatprep.subr.bf16.mxu0 0
        %798 = vmatpush1.bf16.msra.mxu0 0
        %799 = vmatprep.subr.bf16.mxu0 0
        %800 = vmatpush1.bf16.msra.mxu0 0
        %801 = vmatprep.subr.bf16.mxu0 0
        %802 = vmatpush1.bf16.msra.mxu0 0
        %803 = vmatprep.subr.bf16.mxu0 0
        %804 = vmatpush1.bf16.msra.mxu0 0
        %805 = vmatprep.subr.bf16.mxu0 0
        %806 = vmatpush1.bf16.msra.mxu0 0
        %807 = vmatprep.subr.bf16.mxu0 0
        %808 = vmatpush1.bf16.msra.mxu0 %v533
        %809 = vmatprep.subr.bf16.mxu0 0
        %810 = vmatpush1.bf16.msra.mxu0 %v532
        %811 = vmatprep.subr.bf16.mxu0 0
        %812 = vmatpush2.bf16.msra.mxu0 0
        %813 = vmatprep.subr.bf16.mxu0 0
        %814 = vmatpush2.bf16.msra.mxu0 0
        %815 = vmatprep.subr.bf16.mxu0 0
        %816 = vmatpush2.bf16.msra.mxu0 0
        %817 = vmatprep.subr.bf16.mxu0 0
        %818 = vmatpush2.bf16.msra.mxu0 0
        %819 = vmatprep.subr.bf16.mxu0 0
        %820 = vmatpush2.bf16.msra.mxu0 0
        %821 = vmatprep.subr.bf16.mxu0 0
        %822 = vmatpush2.bf16.msra.mxu0 0
        %823 = vmatprep.subr.bf16.mxu0 0
        %824 = vmatpush2.bf16.msra.mxu0 0
        %825 = vmatprep.subr.bf16.mxu0 0
        %826 = vmatpush2.bf16.msra.mxu0 0
        %827 = vmatprep.mubr.bf16.mxu0 0
        %828 = vmatmul.mubr.bf16.gmra.mxu0 %v793
        %v829 = vpop.f32.mrf.mxu0
        %v830 = vadd.f32 0.0, %v829
        %v831 = vpop.f32.mrf.mxu0
        %v832 = vpop.f32.mrf.mxu0
        %v833 = vpop.f32.mrf.mxu0
        %834 = vdwg.mxu0
        %v836 = vrot.slane %v830, 2
        %v838 = vadd.f32 %v515, %v836
        %v839 = vtanh.pop %v838
        %v840 = vxor.u32 %v838, 2147483648
        %v841 = vmul.f32 %v840, 1.442695
        %v842 = vpow.pop %v841
        %v843 = vadd.f32 %v842, 1.0
        %v844 = vrcp.pop %v843
        %v845 = vmul.f32 1.0, %v844
        %v846 = vsel %vm453, %v839, %v845
        %v848 = vrot.slane %v774, 6
        %v850 = vmul.f32 %v846, %v848
        %852 = vrot.lane.b32.xlu0 %v846, 64
        %v853 = vpop.permute.xlu0 %852
        %v855 = vmul.f32 %v846, %v853
        %857 = vrot.lane.b32.xlu0 %v855, 32
        %v858 = vpop.permute.xlu0 %857
        %v860 = vadd.f32 %v850, %v858
        %v861 = vtanh.pop %v860
        %863 = vrot.lane.b32.xlu0 %v861, 64
        %v864 = vpop.permute.xlu0 %863
        %v866 = vmul.f32 %v846, %v864
        %868 = vrot.lane.b32.xlu0 %v866, 32
        %v869 = vpop.permute.xlu0 %868
        %vm871 = vcmask 261126
        %872 = vst.msk [vmem:[#allocation4] sm:$0xc0] %vm871, %v869
        %v873 = vpack.c.bf16 %v866, %v866
        %v875 = vrot.slane %v873, 3
        %876 = vrot.lane.b32.xlu0 %v875, 32
        %v877 = vpop.permute.xlu0 %876
        %v879 = vsel %vm536, %v877, 0
        %881 = vmatprep.subr.bf16.mxu0 0
        %882 = vmatpush1.bf16.msra.mxu0 0
        %883 = vmatprep.subr.bf16.mxu0 0
        %884 = vmatpush1.bf16.msra.mxu0 0
        %885 = vmatprep.subr.bf16.mxu0 0
        %886 = vmatpush1.bf16.msra.mxu0 0
        %887 = vmatprep.subr.bf16.mxu0 0
        %888 = vmatpush1.bf16.msra.mxu0 0
        %889 = vmatprep.subr.bf16.mxu0 0
        %890 = vmatpush1.bf16.msra.mxu0 0
        %891 = vmatprep.subr.bf16.mxu0 0
        %892 = vmatpush1.bf16.msra.mxu0 0
        %893 = vmatprep.subr.bf16.mxu0 0
        %894 = vmatpush1.bf16.msra.mxu0 %v533
        %895 = vmatprep.subr.bf16.mxu0 0
        %896 = vmatpush1.bf16.msra.mxu0 %v532
        %897 = vmatprep.subr.bf16.mxu0 0
        %898 = vmatpush2.bf16.msra.mxu0 0
        %899 = vmatprep.subr.bf16.mxu0 0
        %900 = vmatpush2.bf16.msra.mxu0 0
        %901 = vmatprep.subr.bf16.mxu0 0
        %902 = vmatpush2.bf16.msra.mxu0 0
        %903 = vmatprep.subr.bf16.mxu0 0
        %904 = vmatpush2.bf16.msra.mxu0 0
        %905 = vmatprep.subr.bf16.mxu0 0
        %906 = vmatpush2.bf16.msra.mxu0 0
        %907 = vmatprep.subr.bf16.mxu0 0
        %908 = vmatpush2.bf16.msra.mxu0 0
        %909 = vmatprep.subr.bf16.mxu0 0
        %910 = vmatpush2.bf16.msra.mxu0 0
        %911 = vmatprep.subr.bf16.mxu0 0
        %912 = vmatpush2.bf16.msra.mxu0 0
        %913 = vmatprep.mubr.bf16.mxu0 0
        %914 = vmatmul.mubr.bf16.gmra.mxu0 %v879
        %v915 = vpop.f32.mrf.mxu0
        %v916 = vadd.f32 0.0, %v915
        %v917 = vpop.f32.mrf.mxu0
        %v918 = vpop.f32.mrf.mxu0
        %v919 = vpop.f32.mrf.mxu0
        %920 = vdwg.mxu0
        %v921 = vadd.f32 %v518, %v916
        %v922 = vtanh.pop %v921
        %v923 = vxor.u32 %v921, 2147483648
        %v924 = vmul.f32 %v923, 1.442695
        %v925 = vpow.pop %v924
        %v926 = vadd.f32 %v925, 1.0
        %v927 = vrcp.pop %v926
        %v928 = vmul.f32 1.0, %v927
        %v929 = vsel %vm453, %v922, %v928
        %v931 = vrot.slane %v860, 6
        %v933 = vmul.f32 %v929, %v931
        %935 = vrot.lane.b32.xlu0 %v929, 64
        %v936 = vpop.permute.xlu0 %935
        %v938 = vmul.f32 %v929, %v936
        %940 = vrot.lane.b32.xlu0 %v938, 32
        %v941 = vpop.permute.xlu0 %940
        %v943 = vadd.f32 %v933, %v941
        %v944 = vtanh.pop %v943
        %946 = vrot.lane.b32.xlu0 %v944, 64
        %v947 = vpop.permute.xlu0 %946
        %v949 = vmul.f32 %v929, %v947
        %951 = vrot.lane.b32.xlu0 %v949, 32
        %v952 = vpop.permute.xlu0 %951
        %954 = vst.msk [vmem:[#allocation4 + $0x8] sm:$0x3] %vm614, %v952
        %v955 = vpack.c.bf16 %v949, %v949
        %957 = vrot.lane.b32.xlu0 %v955, 32
        %v958 = vpop.permute.xlu0 %957
        %v960 = vsel %vm536, %v958, 0
        %962 = vmatprep.subr.bf16.mxu0 0
        %963 = vmatpush1.bf16.msra.mxu0 0
        %964 = vmatprep.subr.bf16.mxu0 0
        %965 = vmatpush1.bf16.msra.mxu0 0
        %966 = vmatprep.subr.bf16.mxu0 0
        %967 = vmatpush1.bf16.msra.mxu0 0
        %968 = vmatprep.subr.bf16.mxu0 0
        %969 = vmatpush1.bf16.msra.mxu0 0
        %970 = vmatprep.subr.bf16.mxu0 0
        %971 = vmatpush1.bf16.msra.mxu0 0
        %972 = vmatprep.subr.bf16.mxu0 0
        %973 = vmatpush1.bf16.msra.mxu0 0
        %974 = vmatprep.subr.bf16.mxu0 0
        %975 = vmatpush1.bf16.msra.mxu0 %v533
        %976 = vmatprep.subr.bf16.mxu0 0
        %977 = vmatpush1.bf16.msra.mxu0 %v532
        %978 = vmatprep.subr.bf16.mxu0 0
        %979 = vmatpush2.bf16.msra.mxu0 0
        %980 = vmatprep.subr.bf16.mxu0 0
        %981 = vmatpush2.bf16.msra.mxu0 0
        %982 = vmatprep.subr.bf16.mxu0 0
        %983 = vmatpush2.bf16.msra.mxu0 0
        %984 = vmatprep.subr.bf16.mxu0 0
        %985 = vmatpush2.bf16.msra.mxu0 0
        %986 = vmatprep.subr.bf16.mxu0 0
        %987 = vmatpush2.bf16.msra.mxu0 0
        %988 = vmatprep.subr.bf16.mxu0 0
        %989 = vmatpush2.bf16.msra.mxu0 0
        %990 = vmatprep.subr.bf16.mxu0 0
        %991 = vmatpush2.bf16.msra.mxu0 0
        %992 = vmatprep.subr.bf16.mxu0 0
        %993 = vmatpush2.bf16.msra.mxu0 0
        %994 = vmatprep.mubr.bf16.mxu0 0
        %995 = vmatmul.mubr.bf16.gmra.mxu0 %v960
        %v996 = vpop.f32.mrf.mxu0
        %v997 = vadd.f32 0.0, %v996
        %v998 = vpop.f32.mrf.mxu0
        %v999 = vpop.f32.mrf.mxu0
        %v1000 = vpop.f32.mrf.mxu0
        %1001 = vdwg.mxu0
        %v1003 = vrot.slane %v997, 6
        %v1005 = vadd.f32 %v518, %v1003
        %v1006 = vtanh.pop %v1005
        %v1007 = vxor.u32 %v1005, 2147483648
        %v1008 = vmul.f32 %v1007, 1.442695
        %v1009 = vpow.pop %v1008
        %v1010 = vadd.f32 %v1009, 1.0
        %v1011 = vrcp.pop %v1010
        %v1012 = vmul.f32 1.0, %v1011
        %v1013 = vsel %vm453, %v1006, %v1012
        %v1015 = vrot.slane %v943, 6
        %v1017 = vmul.f32 %v1013, %v1015
        %1019 = vrot.lane.b32.xlu0 %v1013, 64
        %v1020 = vpop.permute.xlu0 %1019
        %v1022 = vmul.f32 %v1013, %v1020
        %1024 = vrot.lane.b32.xlu0 %v1022, 32
        %v1025 = vpop.permute.xlu0 %1024
        %v1027 = vadd.f32 %v1017, %v1025
        %v1028 = vtanh.pop %v1027
        %1030 = vrot.lane.b32.xlu0 %v1028, 64
        %v1031 = vpop.permute.xlu0 %1030
        %v1033 = vmul.f32 %v1013, %v1031
        %1035 = vrot.lane.b32.xlu0 %v1033, 32
        %v1036 = vpop.permute.xlu0 %1035
        %1038 = vst.msk [vmem:[#allocation4 + $0x8] sm:$0xc] %vm699, %v1036
        %v1039 = vpack.c.bf16 %v1033, %v1033
        %v1041 = vrot.slane %v1039, 1
        %1042 = vrot.lane.b32.xlu0 %v1041, 32
        %v1043 = vpop.permute.xlu0 %1042
        %v1045 = vsel %vm536, %v1043, 0
        %1047 = vmatprep.subr.bf16.mxu0 0
        %1048 = vmatpush1.bf16.msra.mxu0 0
        %1049 = vmatprep.subr.bf16.mxu0 0
        %1050 = vmatpush1.bf16.msra.mxu0 0
        %1051 = vmatprep.subr.bf16.mxu0 0
        %1052 = vmatpush1.bf16.msra.mxu0 0
        %1053 = vmatprep.subr.bf16.mxu0 0
        %1054 = vmatpush1.bf16.msra.mxu0 0
        %1055 = vmatprep.subr.bf16.mxu0 0
        %1056 = vmatpush1.bf16.msra.mxu0 0
        %1057 = vmatprep.subr.bf16.mxu0 0
        %1058 = vmatpush1.bf16.msra.mxu0 0
        %1059 = vmatprep.subr.bf16.mxu0 0
        %1060 = vmatpush1.bf16.msra.mxu0 %v533
        %1061 = vmatprep.subr.bf16.mxu0 0
        %1062 = vmatpush1.bf16.msra.mxu0 %v532
        %1063 = vmatprep.subr.bf16.mxu0 0
        %1064 = vmatpush2.bf16.msra.mxu0 0
        %1065 = vmatprep.subr.bf16.mxu0 0
        %1066 = vmatpush2.bf16.msra.mxu0 0
        %1067 = vmatprep.subr.bf16.mxu0 0
        %1068 = vmatpush2.bf16.msra.mxu0 0
        %1069 = vmatprep.subr.bf16.mxu0 0
        %1070 = vmatpush2.bf16.msra.mxu0 0
        %1071 = vmatprep.subr.bf16.mxu0 0
        %1072 = vmatpush2.bf16.msra.mxu0 0
        %1073 = vmatprep.subr.bf16.mxu0 0
        %1074 = vmatpush2.bf16.msra.mxu0 0
        %1075 = vmatprep.subr.bf16.mxu0 0
        %1076 = vmatpush2.bf16.msra.mxu0 0
        %1077 = vmatprep.subr.bf16.mxu0 0
        %1078 = vmatpush2.bf16.msra.mxu0 0
        %1079 = vmatprep.mubr.bf16.mxu0 0
        %1080 = vmatmul.mubr.bf16.gmra.mxu0 %v1045
        %v1081 = vpop.f32.mrf.mxu0
        %v1082 = vadd.f32 0.0, %v1081
        %v1083 = vpop.f32.mrf.mxu0
        %v1084 = vpop.f32.mrf.mxu0
        %v1085 = vpop.f32.mrf.mxu0
        %1086 = vdwg.mxu0
        %v1088 = vrot.slane %v1082, 4
        %v1090 = vadd.f32 %v518, %v1088
        %v1091 = vtanh.pop %v1090
        %v1092 = vxor.u32 %v1090, 2147483648
        %v1093 = vmul.f32 %v1092, 1.442695
        %v1094 = vpow.pop %v1093
        %v1095 = vadd.f32 %v1094, 1.0
        %v1096 = vrcp.pop %v1095
        %v1097 = vmul.f32 1.0, %v1096
        %v1098 = vsel %vm453, %v1091, %v1097
        %v1100 = vrot.slane %v1027, 6
        %v1102 = vmul.f32 %v1098, %v1100
        %1104 = vrot.lane.b32.xlu0 %v1098, 64
        %v1105 = vpop.permute.xlu0 %1104
        %v1107 = vmul.f32 %v1098, %v1105
        %1109 = vrot.lane.b32.xlu0 %v1107, 32
        %v1110 = vpop.permute.xlu0 %1109
        %v1112 = vadd.f32 %v1102, %v1110
        %v1113 = vtanh.pop %v1112
        %1115 = vrot.lane.b32.xlu0 %v1113, 64
        %v1116 = vpop.permute.xlu0 %1115
        %v1118 = vmul.f32 %v1098, %v1116
        %1120 = vrot.lane.b32.xlu0 %v1118, 32
        %v1121 = vpop.permute.xlu0 %1120
        %1123 = vst.msk [vmem:[#allocation4 + $0x8] sm:$0x30] %vm785, %v1121
        %v1124 = vpack.c.bf16 %v1118, %v1118
        %v1126 = vrot.slane %v1124, 2
        %1127 = vrot.lane.b32.xlu0 %v1126, 32
        %v1128 = vpop.permute.xlu0 %1127
        %v1130 = vsel %vm536, %v1128, 0
        %1132 = vmatprep.subr.bf16.mxu0 0
        %1133 = vmatpush1.bf16.msra.mxu0 0
        %1134 = vmatprep.subr.bf16.mxu0 0
        %1135 = vmatpush1.bf16.msra.mxu0 0
        %1136 = vmatprep.subr.bf16.mxu0 0
        %1137 = vmatpush1.bf16.msra.mxu0 0
        %1138 = vmatprep.subr.bf16.mxu0 0
        %1139 = vmatpush1.bf16.msra.mxu0 0
        %1140 = vmatprep.subr.bf16.mxu0 0
        %1141 = vmatpush1.bf16.msra.mxu0 0
        %1142 = vmatprep.subr.bf16.mxu0 0
        %1143 = vmatpush1.bf16.msra.mxu0 0
        %1144 = vmatprep.subr.bf16.mxu0 0
        %1145 = vmatpush1.bf16.msra.mxu0 %v533
        %1146 = vmatprep.subr.bf16.mxu0 0
        %1147 = vmatpush1.bf16.msra.mxu0 %v532
        %1148 = vmatprep.subr.bf16.mxu0 0
        %1149 = vmatpush2.bf16.msra.mxu0 0
        %1150 = vmatprep.subr.bf16.mxu0 0
        %1151 = vmatpush2.bf16.msra.mxu0 0
        %1152 = vmatprep.subr.bf16.mxu0 0
        %1153 = vmatpush2.bf16.msra.mxu0 0
        %1154 = vmatprep.subr.bf16.mxu0 0
        %1155 = vmatpush2.bf16.msra.mxu0 0
        %1156 = vmatprep.subr.bf16.mxu0 0
        %1157 = vmatpush2.bf16.msra.mxu0 0
        %1158 = vmatprep.subr.bf16.mxu0 0
        %1159 = vmatpush2.bf16.msra.mxu0 0
        %1160 = vmatprep.subr.bf16.mxu0 0
        %1161 = vmatpush2.bf16.msra.mxu0 0
        %1162 = vmatprep.subr.bf16.mxu0 0
        %1163 = vmatpush2.bf16.msra.mxu0 0
        %1164 = vmatprep.mubr.bf16.mxu0 0
        %1165 = vmatmul.mubr.bf16.gmra.mxu0 %v1130
        %v1166 = vpop.f32.mrf.mxu0
        %v1167 = vadd.f32 0.0, %v1166
        %v1168 = vpop.f32.mrf.mxu0
        %v1169 = vpop.f32.mrf.mxu0
        %v1170 = vpop.f32.mrf.mxu0
        %1171 = vdwg.mxu0
        %v1173 = vrot.slane %v1167, 2
        %v1175 = vadd.f32 %v518, %v1173
        %v1176 = vtanh.pop %v1175
        %v1177 = vxor.u32 %v1175, 2147483648
        %v1178 = vmul.f32 %v1177, 1.442695
        %v1179 = vpow.pop %v1178
        %v1180 = vadd.f32 %v1179, 1.0
        %v1181 = vrcp.pop %v1180
        %v1182 = vmul.f32 1.0, %v1181
        %v1183 = vsel %vm453, %v1176, %v1182
        %v1185 = vrot.slane %v1112, 6
        %v1187 = vmul.f32 %v1183, %v1185
        %1189 = vrot.lane.b32.xlu0 %v1183, 64
        %v1190 = vpop.permute.xlu0 %1189
        %v1192 = vmul.f32 %v1183, %v1190
        %1194 = vrot.lane.b32.xlu0 %v1192, 32
        %v1195 = vpop.permute.xlu0 %1194
        %v1197 = vadd.f32 %v1187, %v1195
        %v1198 = vtanh.pop %v1197
        %1200 = vrot.lane.b32.xlu0 %v1198, 64
        %v1201 = vpop.permute.xlu0 %1200
        %v1203 = vmul.f32 %v1183, %v1201
        %1205 = vrot.lane.b32.xlu0 %v1203, 32
        %v1206 = vpop.permute.xlu0 %1205
        %1208 = vst.msk [vmem:[#allocation4 + $0x8] sm:$0xc0] %vm871, %v1206
        %1209 = vst.msk [vmem:[#allocation2 - $0x6] sm:$0xc0] %vm871, %v1206
        %1211 = vrot.lane.b32.xlu0 %v1197, 96
        %v1212 = vpop.permute.xlu0 %1211
        %1214 = vst.msk [vmem:[#allocation3 - $0x6] sm:$0xc0] %vm871, %v1212
        %v1215 = vld [vmem:[#allocation4] sm:$0xff]
        %v1216 = vld [vmem:[#allocation4 + $0x8] sm:$0xff]
        %v1217 = vpack.c.bf16 %v1216, %v1215
        %v1218 = vld [vmem:[%s5] sm:$0xf]
        %v1219 = vld [vmem:[%s5 + $0x4] sm:$0xf]
        %v1220 = vld [vmem:[%s5 + $0x8] sm:$0xf]
        %v1221 = vld [vmem:[%s5 + $0xc] sm:$0xf]
        %v1222 = vld [vmem:[%s4] sm:$0xf]
        %v1223 = vld [vmem:[%s4 + $0x4] sm:$0xf]
        %v1224 = vld [vmem:[%s4 + $0x8] sm:$0xf]
        %v1225 = vld [vmem:[%s4 + $0xc] sm:$0xf]
        %v1226 = vld [vmem:[%s6] sm:$0x1]
        %v1228 = vlaneseq
        %v1229 = vshrl.u32 %v1228, 7
        %v1230 = vsub.s32 0, %v1229
        %v1231 = vrot.slane %v1226, %v1230
        %v1237 = vunpack.c.l.b16 %v1222
        %v1238 = vunpack.c.l.b16 %v1223
        %v1239 = vunpack.c.l.b16 %v1224
        %v1240 = vunpack.c.l.b16 %v1225
        %v1241 = vpack.c.b16 %v1238, %v1237
        %v1242 = vpack.c.b16 %v1240, %v1239
        %v1246 = vsel %vm536, %v1217, 0
        %1248 = vmatprep.subr.bf16.mxu0 0
        %1249 = vmatpush1.bf16.msra.mxu0 0
        %1250 = vmatprep.subr.bf16.mxu0 0
        %1251 = vmatpush1.bf16.msra.mxu0 0
        %1252 = vmatprep.subr.bf16.mxu0 0
        %1253 = vmatpush1.bf16.msra.mxu0 0
        %1254 = vmatprep.subr.bf16.mxu0 0
        %1255 = vmatpush1.bf16.msra.mxu0 0
        %1256 = vmatprep.subr.bf16.mxu0 0
        %1257 = vmatpush1.bf16.msra.mxu0 0
        %1258 = vmatprep.subr.bf16.mxu0 0
        %1259 = vmatpush1.bf16.msra.mxu0 0
        %1260 = vmatprep.subr.bf16.mxu0 0
        %1261 = vmatpush1.bf16.msra.mxu0 %v1242
        %1262 = vmatprep.subr.bf16.mxu0 0
        %1263 = vmatpush1.bf16.msra.mxu0 %v1241
        %1264 = vmatprep.subr.bf16.mxu0 0
        %1265 = vmatpush2.bf16.msra.mxu0 0
        %1266 = vmatprep.subr.bf16.mxu0 0
        %1267 = vmatpush2.bf16.msra.mxu0 0
        %1268 = vmatprep.subr.bf16.mxu0 0
        %1269 = vmatpush2.bf16.msra.mxu0 0
        %1270 = vmatprep.subr.bf16.mxu0 0
        %1271 = vmatpush2.bf16.msra.mxu0 0
        %1272 = vmatprep.subr.bf16.mxu0 0
        %1273 = vmatpush2.bf16.msra.mxu0 0
        %1274 = vmatprep.subr.bf16.mxu0 0
        %1275 = vmatpush2.bf16.msra.mxu0 0
        %1276 = vmatprep.subr.bf16.mxu0 0
        %1277 = vmatpush2.bf16.msra.mxu0 0
        %1278 = vmatprep.subr.bf16.mxu0 0
        %1279 = vmatpush2.bf16.msra.mxu0 0
        %1280 = vmatprep.mubr.bf16.mxu0 0
        %1281 = vmatmul.mubr.bf16.gmra.mxu0 %v1246
        %v1282 = vpop.f32.mrf.mxu0
        %v1283 = vadd.f32 %v1231, %v1282
        %v1284 = vpop.f32.mrf.mxu0
        %v1285 = vpop.f32.mrf.mxu0
        %v1286 = vadd.f32 %v1231, %v1285
        %v1287 = vpop.f32.mrf.mxu0
        %1288 = vdwg.mxu0
        %s1289 = scalar_lea.vmem [#allocation2], 2
        %v1290 = vld [vmem:[%s1289] sm:$0x3]
        %s1291 = scalar_lea.vmem [#allocation3], 2
        %v1292 = vld [vmem:[%s1291] sm:$0x3]
        %v1293 = vpack.c.bf16 %v1290, %v1290
        %v1298 = vunpack.c.l.b16 %v1218
        %v1299 = vunpack.c.l.b16 %v1219
        %v1300 = vunpack.c.l.b16 %v1220
        %v1301 = vunpack.c.l.b16 %v1221
        %v1302 = vpack.c.b16 %v1299, %v1298
        %v1303 = vpack.c.b16 %v1301, %v1300
        %v1307 = vsel %vm536, %v1293, 0
        %1309 = vmatprep.subr.bf16.mxu0 0
        %1310 = vmatpush1.bf16.msra.mxu0 0
        %1311 = vmatprep.subr.bf16.mxu0 0
        %1312 = vmatpush1.bf16.msra.mxu0 0
        %1313 = vmatprep.subr.bf16.mxu0 0
        %1314 = vmatpush1.bf16.msra.mxu0 0
        %1315 = vmatprep.subr.bf16.mxu0 0
        %1316 = vmatpush1.bf16.msra.mxu0 0
        %1317 = vmatprep.subr.bf16.mxu0 0
        %1318 = vmatpush1.bf16.msra.mxu0 0
        %1319 = vmatprep.subr.bf16.mxu0 0
        %1320 = vmatpush1.bf16.msra.mxu0 0
        %1321 = vmatprep.subr.bf16.mxu0 0
        %1322 = vmatpush1.bf16.msra.mxu0 %v1303
        %1323 = vmatprep.subr.bf16.mxu0 0
        %1324 = vmatpush1.bf16.msra.mxu0 %v1302
        %1325 = vmatprep.subr.bf16.mxu0 0
        %1326 = vmatpush2.bf16.msra.mxu0 0
        %1327 = vmatprep.subr.bf16.mxu0 0
        %1328 = vmatpush2.bf16.msra.mxu0 0
        %1329 = vmatprep.subr.bf16.mxu0 0
        %1330 = vmatpush2.bf16.msra.mxu0 0
        %1331 = vmatprep.subr.bf16.mxu0 0
        %1332 = vmatpush2.bf16.msra.mxu0 0
        %1333 = vmatprep.subr.bf16.mxu0 0
        %1334 = vmatpush2.bf16.msra.mxu0 0
        %1335 = vmatprep.subr.bf16.mxu0 0
        %1336 = vmatpush2.bf16.msra.mxu0 0
        %1337 = vmatprep.subr.bf16.mxu0 0
        %1338 = vmatpush2.bf16.msra.mxu0 0
        %1339 = vmatprep.subr.bf16.mxu0 0
        %1340 = vmatpush2.bf16.msra.mxu0 0
        %1341 = vmatprep.mubr.bf16.mxu0 0
        %1342 = vmatmul.mubr.bf16.gmra.mxu0 %v1307
        %v1343 = vpop.f32.mrf.mxu0
        %v1344 = vadd.f32 0.0, %v1343
        %v1345 = vpop.f32.mrf.mxu0
        %v1346 = vpop.f32.mrf.mxu0
        %v1347 = vpop.f32.mrf.mxu0
        %1348 = vdwg.mxu0
        %v1349 = vadd.f32 %v1283, %v1344
        %v1350 = vtanh.pop %v1349
        %v1351 = vxor.u32 %v1349, 2147483648
        %v1352 = vmul.f32 %v1351, 1.442695
        %v1353 = vpow.pop %v1352
        %v1354 = vadd.f32 %v1353, 1.0
        %v1355 = vrcp.pop %v1354
        %v1356 = vmul.f32 1.0, %v1355
        %v1357 = vsel %vm453, %v1350, %v1356
        %1359 = vrot.lane.b32.xlu0 %v1292, 32
        %v1360 = vpop.permute.xlu0 %1359
        %v1362 = vmul.f32 %v1357, %v1360
        %1364 = vrot.lane.b32.xlu0 %v1357, 64
        %v1365 = vpop.permute.xlu0 %1364
        %v1367 = vmul.f32 %v1357, %v1365
        %1369 = vrot.lane.b32.xlu0 %v1367, 32
        %v1370 = vpop.permute.xlu0 %1369
        %v1372 = vadd.f32 %v1362, %v1370
        %v1373 = vtanh.pop %v1372
        %1375 = vrot.lane.b32.xlu0 %v1373, 64
        %v1376 = vpop.permute.xlu0 %1375
        %v1378 = vmul.f32 %v1357, %v1376
        %v1381 = vunpack.c.l.s4 1983009808
        %v1382 = vunpack.c.0.s8 %v1381
        %v1383 = vlaneseq
        %v1384 = vshrl.u32 %v1383, 7
        %v1385 = vsub.s32 %v1382, %v1384
        %v1386 = vrot.slane %v1378, %v1385
        %1387 = vrot.lane.b32.xlu0 %v1386, 32
        %v1388 = vpop.permute.xlu0 %1387
        %1390 = vst.msk [vmem:[#allocation5] sm:$0x3] %vm614, %v1388
        %v1391 = vpack.c.bf16 %v1378, %v1378
        %1393 = vrot.lane.b32.xlu0 %v1391, 32
        %v1394 = vpop.permute.xlu0 %1393
        %v1396 = vsel %vm536, %v1394, 0
        %1398 = vmatprep.subr.bf16.mxu0 0
        %1399 = vmatpush1.bf16.msra.mxu0 0
        %1400 = vmatprep.subr.bf16.mxu0 0
        %1401 = vmatpush1.bf16.msra.mxu0 0
        %1402 = vmatprep.subr.bf16.mxu0 0
        %1403 = vmatpush1.bf16.msra.mxu0 0
        %1404 = vmatprep.subr.bf16.mxu0 0
        %1405 = vmatpush1.bf16.msra.mxu0 0
        %1406 = vmatprep.subr.bf16.mxu0 0
        %1407 = vmatpush1.bf16.msra.mxu0 0
        %1408 = vmatprep.subr.bf16.mxu0 0
        %1409 = vmatpush1.bf16.msra.mxu0 0
        %1410 = vmatprep.subr.bf16.mxu0 0
        %1411 = vmatpush1.bf16.msra.mxu0 %v1303
        %1412 = vmatprep.subr.bf16.mxu0 0
        %1413 = vmatpush1.bf16.msra.mxu0 %v1302
        %1414 = vmatprep.subr.bf16.mxu0 0
        %1415 = vmatpush2.bf16.msra.mxu0 0
        %1416 = vmatprep.subr.bf16.mxu0 0
        %1417 = vmatpush2.bf16.msra.mxu0 0
        %1418 = vmatprep.subr.bf16.mxu0 0
        %1419 = vmatpush2.bf16.msra.mxu0 0
        %1420 = vmatprep.subr.bf16.mxu0 0
        %1421 = vmatpush2.bf16.msra.mxu0 0
        %1422 = vmatprep.subr.bf16.mxu0 0
        %1423 = vmatpush2.bf16.msra.mxu0 0
        %1424 = vmatprep.subr.bf16.mxu0 0
        %1425 = vmatpush2.bf16.msra.mxu0 0
        %1426 = vmatprep.subr.bf16.mxu0 0
        %1427 = vmatpush2.bf16.msra.mxu0 0
        %1428 = vmatprep.subr.bf16.mxu0 0
        %1429 = vmatpush2.bf16.msra.mxu0 0
        %1430 = vmatprep.mubr.bf16.mxu0 0
        %1431 = vmatmul.mubr.bf16.gmra.mxu0 %v1396
        %v1432 = vpop.f32.mrf.mxu0
        %v1433 = vadd.f32 0.0, %v1432
        %v1434 = vpop.f32.mrf.mxu0
        %v1435 = vpop.f32.mrf.mxu0
        %v1436 = vpop.f32.mrf.mxu0
        %1437 = vdwg.mxu0
        %v1439 = vrot.slane %v1433, 6
        %v1441 = vadd.f32 %v1283, %v1439
        %v1442 = vtanh.pop %v1441
        %v1443 = vxor.u32 %v1441, 2147483648
        %v1444 = vmul.f32 %v1443, 1.442695
        %v1445 = vpow.pop %v1444
        %v1446 = vadd.f32 %v1445, 1.0
        %v1447 = vrcp.pop %v1446
        %v1448 = vmul.f32 1.0, %v1447
        %v1449 = vsel %vm453, %v1442, %v1448
        %v1451 = vrot.slane %v1372, 6
        %v1453 = vmul.f32 %v1449, %v1451
        %1455 = vrot.lane.b32.xlu0 %v1449, 64
        %v1456 = vpop.permute.xlu0 %1455
        %v1458 = vmul.f32 %v1449, %v1456
        %1460 = vrot.lane.b32.xlu0 %v1458, 32
        %v1461 = vpop.permute.xlu0 %1460
        %v1463 = vadd.f32 %v1453, %v1461
        %v1464 = vtanh.pop %v1463
        %1466 = vrot.lane.b32.xlu0 %v1464, 64
        %v1467 = vpop.permute.xlu0 %1466
        %v1469 = vmul.f32 %v1449, %v1467
        %v1472 = vunpack.c.l.s4 1983009808
        %v1473 = vunpack.c.0.s8 %v1472
        %v1474 = vlaneseq
        %v1475 = vshrl.u32 %v1474, 7
        %v1476 = vsub.s32 %v1473, %v1475
        %v1477 = vrot.slane %v1469, %v1476
        %v1478 = vcombine.high %v1477, %v1477
        %1479 = vrot.lane.b32.xlu0 %v1478, 64
        %v1480 = vpop.permute.xlu0 %1479
        %vm1482 = vcmask 517376
        %1483 = vst.msk [vmem:[#allocation5] sm:$0x3] %vm1482, %v1480
        %v1484 = vpack.c.bf16 %v1469, %v1469
        %v1486 = vrot.slane %v1484, 1
        %1487 = vrot.lane.b32.xlu0 %v1486, 32
        %v1488 = vpop.permute.xlu0 %1487
        %v1490 = vsel %vm536, %v1488, 0
        %1492 = vmatprep.subr.bf16.mxu0 0
        %1493 = vmatpush1.bf16.msra.mxu0 0
        %1494 = vmatprep.subr.bf16.mxu0 0
        %1495 = vmatpush1.bf16.msra.mxu0 0
        %1496 = vmatprep.subr.bf16.mxu0 0
        %1497 = vmatpush1.bf16.msra.mxu0 0
        %1498 = vmatprep.subr.bf16.mxu0 0
        %1499 = vmatpush1.bf16.msra.mxu0 0
        %1500 = vmatprep.subr.bf16.mxu0 0
        %1501 = vmatpush1.bf16.msra.mxu0 0
        %1502 = vmatprep.subr.bf16.mxu0 0
        %1503 = vmatpush1.bf16.msra.mxu0 0
        %1504 = vmatprep.subr.bf16.mxu0 0
        %1505 = vmatpush1.bf16.msra.mxu0 %v1303
        %1506 = vmatprep.subr.bf16.mxu0 0
        %1507 = vmatpush1.bf16.msra.mxu0 %v1302
        %1508 = vmatprep.subr.bf16.mxu0 0
        %1509 = vmatpush2.bf16.msra.mxu0 0
        %1510 = vmatprep.subr.bf16.mxu0 0
        %1511 = vmatpush2.bf16.msra.mxu0 0
        %1512 = vmatprep.subr.bf16.mxu0 0
        %1513 = vmatpush2.bf16.msra.mxu0 0
        %1514 = vmatprep.subr.bf16.mxu0 0
        %1515 = vmatpush2.bf16.msra.mxu0 0
        %1516 = vmatprep.subr.bf16.mxu0 0
        %1517 = vmatpush2.bf16.msra.mxu0 0
        %1518 = vmatprep.subr.bf16.mxu0 0
        %1519 = vmatpush2.bf16.msra.mxu0 0
        %1520 = vmatprep.subr.bf16.mxu0 0
        %1521 = vmatpush2.bf16.msra.mxu0 0
        %1522 = vmatprep.subr.bf16.mxu0 0
        %1523 = vmatpush2.bf16.msra.mxu0 0
        %1524 = vmatprep.mubr.bf16.mxu0 0
        %1525 = vmatmul.mubr.bf16.gmra.mxu0 %v1490
        %v1526 = vpop.f32.mrf.mxu0
        %v1527 = vadd.f32 0.0, %v1526
        %v1528 = vpop.f32.mrf.mxu0
        %v1529 = vpop.f32.mrf.mxu0
        %v1530 = vpop.f32.mrf.mxu0
        %1531 = vdwg.mxu0
        %v1533 = vrot.slane %v1527, 4
        %v1535 = vadd.f32 %v1283, %v1533
        %v1536 = vtanh.pop %v1535
        %v1537 = vxor.u32 %v1535, 2147483648
        %v1538 = vmul.f32 %v1537, 1.442695
        %v1539 = vpow.pop %v1538
        %v1540 = vadd.f32 %v1539, 1.0
        %v1541 = vrcp.pop %v1540
        %v1542 = vmul.f32 1.0, %v1541
        %v1543 = vsel %vm453, %v1536, %v1542
        %v1545 = vrot.slane %v1463, 6
        %v1547 = vmul.f32 %v1543, %v1545
        %1549 = vrot.lane.b32.xlu0 %v1543, 64
        %v1550 = vpop.permute.xlu0 %1549
        %v1552 = vmul.f32 %v1543, %v1550
        %1554 = vrot.lane.b32.xlu0 %v1552, 32
        %v1555 = vpop.permute.xlu0 %1554
        %v1557 = vadd.f32 %v1547, %v1555
        %v1558 = vtanh.pop %v1557
        %1560 = vrot.lane.b32.xlu0 %v1558, 64
        %v1561 = vpop.permute.xlu0 %1560
        %v1563 = vmul.f32 %v1543, %v1561
        %v1565 = vcombine.high %v1563, %v1563
        %v1567 = vunpack.c.l.s4 1983009808
        %v1568 = vunpack.c.0.s8 %v1567
        %v1569 = vlaneseq
        %v1570 = vshrl.u32 %v1569, 7
        %v1571 = vsub.s32 %v1568, %v1570
        %v1572 = vrot.slane %v1565, %v1571
        %1573 = vrot.lane.b32.xlu0 %v1572, 96
        %v1574 = vpop.permute.xlu0 %1573
        %vm1576 = vcmask 779776
        %1577 = vst.msk [vmem:[#allocation5] sm:$0x3] %vm1576, %v1574
        %v1578 = vpack.c.bf16 %v1563, %v1563
        %v1580 = vrot.slane %v1578, 2
        %1581 = vrot.lane.b32.xlu0 %v1580, 32
        %v1582 = vpop.permute.xlu0 %1581
        %v1584 = vsel %vm536, %v1582, 0
        %1586 = vmatprep.subr.bf16.mxu0 0
        %1587 = vmatpush1.bf16.msra.mxu0 0
        %1588 = vmatprep.subr.bf16.mxu0 0
        %1589 = vmatpush1.bf16.msra.mxu0 0
        %1590 = vmatprep.subr.bf16.mxu0 0
        %1591 = vmatpush1.bf16.msra.mxu0 0
        %1592 = vmatprep.subr.bf16.mxu0 0
        %1593 = vmatpush1.bf16.msra.mxu0 0
        %1594 = vmatprep.subr.bf16.mxu0 0
        %1595 = vmatpush1.bf16.msra.mxu0 0
        %1596 = vmatprep.subr.bf16.mxu0 0
        %1597 = vmatpush1.bf16.msra.mxu0 0
        %1598 = vmatprep.subr.bf16.mxu0 0
        %1599 = vmatpush1.bf16.msra.mxu0 %v1303
        %1600 = vmatprep.subr.bf16.mxu0 0
        %1601 = vmatpush1.bf16.msra.mxu0 %v1302
        %1602 = vmatprep.subr.bf16.mxu0 0
        %1603 = vmatpush2.bf16.msra.mxu0 0
        %1604 = vmatprep.subr.bf16.mxu0 0
        %1605 = vmatpush2.bf16.msra.mxu0 0
        %1606 = vmatprep.subr.bf16.mxu0 0
        %1607 = vmatpush2.bf16.msra.mxu0 0
        %1608 = vmatprep.subr.bf16.mxu0 0
        %1609 = vmatpush2.bf16.msra.mxu0 0
        %1610 = vmatprep.subr.bf16.mxu0 0
        %1611 = vmatpush2.bf16.msra.mxu0 0
        %1612 = vmatprep.subr.bf16.mxu0 0
        %1613 = vmatpush2.bf16.msra.mxu0 0
        %1614 = vmatprep.subr.bf16.mxu0 0
        %1615 = vmatpush2.bf16.msra.mxu0 0
        %1616 = vmatprep.subr.bf16.mxu0 0
        %1617 = vmatpush2.bf16.msra.mxu0 0
        %1618 = vmatprep.mubr.bf16.mxu0 0
        %1619 = vmatmul.mubr.bf16.gmra.mxu0 %v1584
        %v1620 = vpop.f32.mrf.mxu0
        %v1621 = vadd.f32 0.0, %v1620
        %v1622 = vpop.f32.mrf.mxu0
        %v1623 = vpop.f32.mrf.mxu0
        %v1624 = vpop.f32.mrf.mxu0
        %1625 = vdwg.mxu0
        %v1627 = vrot.slane %v1621, 2
        %v1629 = vadd.f32 %v1283, %v1627
        %v1630 = vtanh.pop %v1629
        %v1631 = vxor.u32 %v1629, 2147483648
        %v1632 = vmul.f32 %v1631, 1.442695
        %v1633 = vpow.pop %v1632
        %v1634 = vadd.f32 %v1633, 1.0
        %v1635 = vrcp.pop %v1634
        %v1636 = vmul.f32 1.0, %v1635
        %v1637 = vsel %vm453, %v1630, %v1636
        %v1639 = vrot.slane %v1557, 6
        %v1641 = vmul.f32 %v1637, %v1639
        %1643 = vrot.lane.b32.xlu0 %v1637, 64
        %v1644 = vpop.permute.xlu0 %1643
        %v1646 = vmul.f32 %v1637, %v1644
        %1648 = vrot.lane.b32.xlu0 %v1646, 32
        %v1649 = vpop.permute.xlu0 %1648
        %v1651 = vadd.f32 %v1641, %v1649
        %v1652 = vtanh.pop %v1651
        %1654 = vrot.lane.b32.xlu0 %v1652, 64
        %v1655 = vpop.permute.xlu0 %1654
        %v1657 = vmul.f32 %v1637, %v1655
        %v1659 = vcombine.high %v1657, %v1657
        %v1661 = vunpack.c.l.s4 1983009808
        %v1662 = vunpack.c.0.s8 %v1661
        %v1663 = vlaneseq
        %v1664 = vshrl.u32 %v1663, 7
        %v1665 = vsub.s32 %v1662, %v1664
        %v1666 = vrot.slane %v1659, %v1665
        %v1667 = vcombine.high %v1666, %v1666
        %vm1669 = vcmask 1042176
        %1670 = vst.msk [vmem:[#allocation5] sm:$0x3] %vm1669, %v1667
        %v1671 = vpack.c.bf16 %v1657, %v1657
        %v1673 = vrot.slane %v1671, 3
        %1674 = vrot.lane.b32.xlu0 %v1673, 32
        %v1675 = vpop.permute.xlu0 %1674
        %v1677 = vsel %vm536, %v1675, 0
        %1679 = vmatprep.subr.bf16.mxu0 0
        %1680 = vmatpush1.bf16.msra.mxu0 0
        %1681 = vmatprep.subr.bf16.mxu0 0
        %1682 = vmatpush1.bf16.msra.mxu0 0
        %1683 = vmatprep.subr.bf16.mxu0 0
        %1684 = vmatpush1.bf16.msra.mxu0 0
        %1685 = vmatprep.subr.bf16.mxu0 0
        %1686 = vmatpush1.bf16.msra.mxu0 0
        %1687 = vmatprep.subr.bf16.mxu0 0
        %1688 = vmatpush1.bf16.msra.mxu0 0
        %1689 = vmatprep.subr.bf16.mxu0 0
        %1690 = vmatpush1.bf16.msra.mxu0 0
        %1691 = vmatprep.subr.bf16.mxu0 0
        %1692 = vmatpush1.bf16.msra.mxu0 %v1303
        %1693 = vmatprep.subr.bf16.mxu0 0
        %1694 = vmatpush1.bf16.msra.mxu0 %v1302
        %1695 = vmatprep.subr.bf16.mxu0 0
        %1696 = vmatpush2.bf16.msra.mxu0 0
        %1697 = vmatprep.subr.bf16.mxu0 0
        %1698 = vmatpush2.bf16.msra.mxu0 0
        %1699 = vmatprep.subr.bf16.mxu0 0
        %1700 = vmatpush2.bf16.msra.mxu0 0
        %1701 = vmatprep.subr.bf16.mxu0 0
        %1702 = vmatpush2.bf16.msra.mxu0 0
        %1703 = vmatprep.subr.bf16.mxu0 0
        %1704 = vmatpush2.bf16.msra.mxu0 0
        %1705 = vmatprep.subr.bf16.mxu0 0
        %1706 = vmatpush2.bf16.msra.mxu0 0
        %1707 = vmatprep.subr.bf16.mxu0 0
        %1708 = vmatpush2.bf16.msra.mxu0 0
        %1709 = vmatprep.subr.bf16.mxu0 0
        %1710 = vmatpush2.bf16.msra.mxu0 0
        %1711 = vmatprep.mubr.bf16.mxu0 0
        %1712 = vmatmul.mubr.bf16.gmra.mxu0 %v1677
        %v1713 = vpop.f32.mrf.mxu0
        %v1714 = vadd.f32 0.0, %v1713
        %v1715 = vpop.f32.mrf.mxu0
        %v1716 = vpop.f32.mrf.mxu0
        %v1717 = vpop.f32.mrf.mxu0
        %1718 = vdwg.mxu0
        %v1719 = vadd.f32 %v1286, %v1714
        %v1720 = vtanh.pop %v1719
        %v1721 = vxor.u32 %v1719, 2147483648
        %v1722 = vmul.f32 %v1721, 1.442695
        %v1723 = vpow.pop %v1722
        %v1724 = vadd.f32 %v1723, 1.0
        %v1725 = vrcp.pop %v1724
        %v1726 = vmul.f32 1.0, %v1725
        %v1727 = vsel %vm453, %v1720, %v1726
        %v1729 = vrot.slane %v1651, 6
        %v1731 = vmul.f32 %v1727, %v1729
        %1733 = vrot.lane.b32.xlu0 %v1727, 64
        %v1734 = vpop.permute.xlu0 %1733
        %v1736 = vmul.f32 %v1727, %v1734
        %1738 = vrot.lane.b32.xlu0 %v1736, 32
        %v1739 = vpop.permute.xlu0 %1738
        %v1741 = vadd.f32 %v1731, %v1739
        %v1742 = vtanh.pop %v1741
        %1744 = vrot.lane.b32.xlu0 %v1742, 64
        %v1745 = vpop.permute.xlu0 %1744
        %v1747 = vmul.f32 %v1727, %v1745
        %v1750 = vunpack.c.l.s4 1983009808
        %v1751 = vunpack.c.0.s8 %v1750
        %v1752 = vlaneseq
        %v1753 = vshrl.u32 %v1752, 7
        %v1754 = vsub.s32 %v1751, %v1753
        %v1755 = vrot.slane %v1747, %v1754
        %1756 = vrot.lane.b32.xlu0 %v1755, 32
        %v1757 = vpop.permute.xlu0 %1756
        %1759 = vst.msk [vmem:[#allocation5 + $0x2] sm:$0x3] %vm614, %v1757
        %v1760 = vpack.c.bf16 %v1747, %v1747
        %1762 = vrot.lane.b32.xlu0 %v1760, 32
        %v1763 = vpop.permute.xlu0 %1762
        %v1765 = vsel %vm536, %v1763, 0
        %1767 = vmatprep.subr.bf16.mxu0 0
        %1768 = vmatpush1.bf16.msra.mxu0 0
        %1769 = vmatprep.subr.bf16.mxu0 0
        %1770 = vmatpush1.bf16.msra.mxu0 0
        %1771 = vmatprep.subr.bf16.mxu0 0
        %1772 = vmatpush1.bf16.msra.mxu0 0
        %1773 = vmatprep.subr.bf16.mxu0 0
        %1774 = vmatpush1.bf16.msra.mxu0 0
        %1775 = vmatprep.subr.bf16.mxu0 0
        %1776 = vmatpush1.bf16.msra.mxu0 0
        %1777 = vmatprep.subr.bf16.mxu0 0
        %1778 = vmatpush1.bf16.msra.mxu0 0
        %1779 = vmatprep.subr.bf16.mxu0 0
        %1780 = vmatpush1.bf16.msra.mxu0 %v1303
        %1781 = vmatprep.subr.bf16.mxu0 0
        %1782 = vmatpush1.bf16.msra.mxu0 %v1302
        %1783 = vmatprep.subr.bf16.mxu0 0
        %1784 = vmatpush2.bf16.msra.mxu0 0
        %1785 = vmatprep.subr.bf16.mxu0 0
        %1786 = vmatpush2.bf16.msra.mxu0 0
        %1787 = vmatprep.subr.bf16.mxu0 0
        %1788 = vmatpush2.bf16.msra.mxu0 0
        %1789 = vmatprep.subr.bf16.mxu0 0
        %1790 = vmatpush2.bf16.msra.mxu0 0
        %1791 = vmatprep.subr.bf16.mxu0 0
        %1792 = vmatpush2.bf16.msra.mxu0 0
        %1793 = vmatprep.subr.bf16.mxu0 0
        %1794 = vmatpush2.bf16.msra.mxu0 0
        %1795 = vmatprep.subr.bf16.mxu0 0
        %1796 = vmatpush2.bf16.msra.mxu0 0
        %1797 = vmatprep.subr.bf16.mxu0 0
        %1798 = vmatpush2.bf16.msra.mxu0 0
        %1799 = vmatprep.mubr.bf16.mxu0 0
        %1800 = vmatmul.mubr.bf16.gmra.mxu0 %v1765
        %v1801 = vpop.f32.mrf.mxu0
        %v1802 = vadd.f32 0.0, %v1801
        %v1803 = vpop.f32.mrf.mxu0
        %v1804 = vpop.f32.mrf.mxu0
        %v1805 = vpop.f32.mrf.mxu0
        %1806 = vdwg.mxu0
        %v1808 = vrot.slane %v1802, 6
        %v1810 = vadd.f32 %v1286, %v1808
        %v1811 = vtanh.pop %v1810
        %v1812 = vxor.u32 %v1810, 2147483648
        %v1813 = vmul.f32 %v1812, 1.442695
        %v1814 = vpow.pop %v1813
        %v1815 = vadd.f32 %v1814, 1.0
        %v1816 = vrcp.pop %v1815
        %v1817 = vmul.f32 1.0, %v1816
        %v1818 = vsel %vm453, %v1811, %v1817
        %v1820 = vrot.slane %v1741, 6
        %v1822 = vmul.f32 %v1818, %v1820
        %1824 = vrot.lane.b32.xlu0 %v1818, 64
        %v1825 = vpop.permute.xlu0 %1824
        %v1827 = vmul.f32 %v1818, %v1825
        %1829 = vrot.lane.b32.xlu0 %v1827, 32
        %v1830 = vpop.permute.xlu0 %1829
        %v1832 = vadd.f32 %v1822, %v1830
        %v1833 = vtanh.pop %v1832
        %1835 = vrot.lane.b32.xlu0 %v1833, 64
        %v1836 = vpop.permute.xlu0 %1835
        %v1838 = vmul.f32 %v1818, %v1836
        %v1841 = vunpack.c.l.s4 1983009808
        %v1842 = vunpack.c.0.s8 %v1841
        %v1843 = vlaneseq
        %v1844 = vshrl.u32 %v1843, 7
        %v1845 = vsub.s32 %v1842, %v1844
        %v1846 = vrot.slane %v1838, %v1845
        %v1847 = vcombine.high %v1846, %v1846
        %1848 = vrot.lane.b32.xlu0 %v1847, 64
        %v1849 = vpop.permute.xlu0 %1848
        %1851 = vst.msk [vmem:[#allocation5 + $0x2] sm:$0x3] %vm1482, %v1849
        %v1852 = vpack.c.bf16 %v1838, %v1838
        %v1854 = vrot.slane %v1852, 1
        %1855 = vrot.lane.b32.xlu0 %v1854, 32
        %v1856 = vpop.permute.xlu0 %1855
        %v1858 = vsel %vm536, %v1856, 0
        %1860 = vmatprep.subr.bf16.mxu0 0
        %1861 = vmatpush1.bf16.msra.mxu0 0
        %1862 = vmatprep.subr.bf16.mxu0 0
        %1863 = vmatpush1.bf16.msra.mxu0 0
        %1864 = vmatprep.subr.bf16.mxu0 0
        %1865 = vmatpush1.bf16.msra.mxu0 0
        %1866 = vmatprep.subr.bf16.mxu0 0
        %1867 = vmatpush1.bf16.msra.mxu0 0
        %1868 = vmatprep.subr.bf16.mxu0 0
        %1869 = vmatpush1.bf16.msra.mxu0 0
        %1870 = vmatprep.subr.bf16.mxu0 0
        %1871 = vmatpush1.bf16.msra.mxu0 0
        %1872 = vmatprep.subr.bf16.mxu0 0
        %1873 = vmatpush1.bf16.msra.mxu0 %v1303
        %1874 = vmatprep.subr.bf16.mxu0 0
        %1875 = vmatpush1.bf16.msra.mxu0 %v1302
        %1876 = vmatprep.subr.bf16.mxu0 0
        %1877 = vmatpush2.bf16.msra.mxu0 0
        %1878 = vmatprep.subr.bf16.mxu0 0
        %1879 = vmatpush2.bf16.msra.mxu0 0
        %1880 = vmatprep.subr.bf16.mxu0 0
        %1881 = vmatpush2.bf16.msra.mxu0 0
        %1882 = vmatprep.subr.bf16.mxu0 0
        %1883 = vmatpush2.bf16.msra.mxu0 0
        %1884 = vmatprep.subr.bf16.mxu0 0
        %1885 = vmatpush2.bf16.msra.mxu0 0
        %1886 = vmatprep.subr.bf16.mxu0 0
        %1887 = vmatpush2.bf16.msra.mxu0 0
        %1888 = vmatprep.subr.bf16.mxu0 0
        %1889 = vmatpush2.bf16.msra.mxu0 0
        %1890 = vmatprep.subr.bf16.mxu0 0
        %1891 = vmatpush2.bf16.msra.mxu0 0
        %1892 = vmatprep.mubr.bf16.mxu0 0
        %1893 = vmatmul.mubr.bf16.gmra.mxu0 %v1858
        %v1894 = vpop.f32.mrf.mxu0
        %v1895 = vadd.f32 0.0, %v1894
        %v1896 = vpop.f32.mrf.mxu0
        %v1897 = vpop.f32.mrf.mxu0
        %v1898 = vpop.f32.mrf.mxu0
        %1899 = vdwg.mxu0
        %v1901 = vrot.slane %v1895, 4
        %v1903 = vadd.f32 %v1286, %v1901
        %v1904 = vtanh.pop %v1903
        %v1905 = vxor.u32 %v1903, 2147483648
        %v1906 = vmul.f32 %v1905, 1.442695
        %v1907 = vpow.pop %v1906
        %v1908 = vadd.f32 %v1907, 1.0
        %v1909 = vrcp.pop %v1908
        %v1910 = vmul.f32 1.0, %v1909
        %v1911 = vsel %vm453, %v1904, %v1910
        %v1913 = vrot.slane %v1832, 6
        %v1915 = vmul.f32 %v1911, %v1913
        %1917 = vrot.lane.b32.xlu0 %v1911, 64
        %v1918 = vpop.permute.xlu0 %1917
        %v1920 = vmul.f32 %v1911, %v1918
        %1922 = vrot.lane.b32.xlu0 %v1920, 32
        %v1923 = vpop.permute.xlu0 %1922
        %v1925 = vadd.f32 %v1915, %v1923
        %v1926 = vtanh.pop %v1925
        %1928 = vrot.lane.b32.xlu0 %v1926, 64
        %v1929 = vpop.permute.xlu0 %1928
        %v1931 = vmul.f32 %v1911, %v1929
        %v1933 = vcombine.high %v1931, %v1931
        %v1935 = vunpack.c.l.s4 1983009808
        %v1936 = vunpack.c.0.s8 %v1935
        %v1937 = vlaneseq
        %v1938 = vshrl.u32 %v1937, 7
        %v1939 = vsub.s32 %v1936, %v1938
        %v1940 = vrot.slane %v1933, %v1939
        %1941 = vrot.lane.b32.xlu0 %v1940, 96
        %v1942 = vpop.permute.xlu0 %1941
        %1944 = vst.msk [vmem:[#allocation5 + $0x2] sm:$0x3] %vm1576, %v1942
        %v1945 = vpack.c.bf16 %v1931, %v1931
        %v1947 = vrot.slane %v1945, 2
        %1948 = vrot.lane.b32.xlu0 %v1947, 32
        %v1949 = vpop.permute.xlu0 %1948
        %v1951 = vsel %vm536, %v1949, 0
        %1953 = vmatprep.subr.bf16.mxu0 0
        %1954 = vmatpush1.bf16.msra.mxu0 0
        %1955 = vmatprep.subr.bf16.mxu0 0
        %1956 = vmatpush1.bf16.msra.mxu0 0
        %1957 = vmatprep.subr.bf16.mxu0 0
        %1958 = vmatpush1.bf16.msra.mxu0 0
        %1959 = vmatprep.subr.bf16.mxu0 0
        %1960 = vmatpush1.bf16.msra.mxu0 0
        %1961 = vmatprep.subr.bf16.mxu0 0
        %1962 = vmatpush1.bf16.msra.mxu0 0
        %1963 = vmatprep.subr.bf16.mxu0 0
        %1964 = vmatpush1.bf16.msra.mxu0 0
        %1965 = vmatprep.subr.bf16.mxu0 0
        %1966 = vmatpush1.bf16.msra.mxu0 %v1303
        %1967 = vmatprep.subr.bf16.mxu0 0
        %1968 = vmatpush1.bf16.msra.mxu0 %v1302
        %1969 = vmatprep.subr.bf16.mxu0 0
        %1970 = vmatpush2.bf16.msra.mxu0 0
        %1971 = vmatprep.subr.bf16.mxu0 0
        %1972 = vmatpush2.bf16.msra.mxu0 0
        %1973 = vmatprep.subr.bf16.mxu0 0
        %1974 = vmatpush2.bf16.msra.mxu0 0
        %1975 = vmatprep.subr.bf16.mxu0 0
        %1976 = vmatpush2.bf16.msra.mxu0 0
        %1977 = vmatprep.subr.bf16.mxu0 0
        %1978 = vmatpush2.bf16.msra.mxu0 0
        %1979 = vmatprep.subr.bf16.mxu0 0
        %1980 = vmatpush2.bf16.msra.mxu0 0
        %1981 = vmatprep.subr.bf16.mxu0 0
        %1982 = vmatpush2.bf16.msra.mxu0 0
        %1983 = vmatprep.subr.bf16.mxu0 0
        %1984 = vmatpush2.bf16.msra.mxu0 0
        %1985 = vmatprep.mubr.bf16.mxu0 0
        %1986 = vmatmul.mubr.bf16.gmra.mxu0 %v1951
        %v1987 = vpop.f32.mrf.mxu0
        %v1988 = vadd.f32 0.0, %v1987
        %v1989 = vpop.f32.mrf.mxu0
        %v1990 = vpop.f32.mrf.mxu0
        %v1991 = vpop.f32.mrf.mxu0
        %1992 = vdwg.mxu0
        %v1994 = vrot.slane %v1988, 2
        %v1996 = vadd.f32 %v1286, %v1994
        %v1997 = vtanh.pop %v1996
        %v1998 = vxor.u32 %v1996, 2147483648
        %v1999 = vmul.f32 %v1998, 1.442695
        %v2000 = vpow.pop %v1999
        %v2001 = vadd.f32 %v2000, 1.0
        %v2002 = vrcp.pop %v2001
        %v2003 = vmul.f32 1.0, %v2002
        %v2004 = vsel %vm453, %v1997, %v2003
        %v2006 = vrot.slane %v1925, 6
        %v2008 = vmul.f32 %v2004, %v2006
        %2010 = vrot.lane.b32.xlu0 %v2004, 64
        %v2011 = vpop.permute.xlu0 %2010
        %v2013 = vmul.f32 %v2004, %v2011
        %2015 = vrot.lane.b32.xlu0 %v2013, 32
        %v2016 = vpop.permute.xlu0 %2015
        %v2018 = vadd.f32 %v2008, %v2016
        %v2019 = vtanh.pop %v2018
        %2021 = vrot.lane.b32.xlu0 %v2019, 64
        %v2022 = vpop.permute.xlu0 %2021
        %v2024 = vmul.f32 %v2004, %v2022
        %v2026 = vcombine.high %v2024, %v2024
        %v2028 = vunpack.c.l.s4 1983009808
        %v2029 = vunpack.c.0.s8 %v2028
        %v2030 = vlaneseq
        %v2031 = vshrl.u32 %v2030, 7
        %v2032 = vsub.s32 %v2029, %v2031
        %v2033 = vrot.slane %v2026, %v2032
        %v2034 = vcombine.high %v2033, %v2033
        %2036 = vst.msk [vmem:[#allocation5 + $0x2] sm:$0x3] %vm1669, %v2034
        %2037 = vrot.lane.b32.xlu0 %v2024, 32
        %v2038 = vpop.permute.xlu0 %2037
        %2040 = vst.msk [vmem:[%s1289 - $0x6] sm:$0xc0] %vm871, %v2038
        %2042 = vrot.lane.b32.xlu0 %v2018, 96
        %v2043 = vpop.permute.xlu0 %2042
        %2045 = vst.msk [vmem:[%s1291 - $0x6] sm:$0xc0] %vm871, %v2043
        %v2046 = vld [vmem:[#allocation5] sm:$0xf]
        %v2049 = vunpack.c.l.s4 1983009808
        %v2050 = vunpack.c.0.s8 %v2049
        %v2051 = vlaneseq
        %v2052 = vshrl.u32 %v2051, 7
        %v2053 = vsub.s32 %v2050, %v2052
        %v2054 = vrot.slane %v2046, %v2053
        %v2055 = vcombine.high %v2054, %v2054
        %v2058 = vpack.c.bf16 %v2054, %v2054
        %v2059 = vpack.c.bf16 %v2055, %v2055
        %v2060 = vld [vmem:[%s7] sm:$0xf]
        %v2061 = vld [vmem:[%s7 + $0x4] sm:$0xf]
        %v2062 = vld [vmem:[%s7 + $0x8] sm:$0xf]
        %v2063 = vld [vmem:[%s7 + $0xc] sm:$0xf]
        %v2064 = vld [vmem:[%s7 + $0x10] sm:$0xf]
        %v2065 = vld [vmem:[%s7 + $0x14] sm:$0xf]
        %v2066 = vld [vmem:[%s7 + $0x18] sm:$0xf]
        %v2067 = vld [vmem:[%s7 + $0x1c] sm:$0xf]
        %v2068 = vld [vmem:[%s7 + $0x20] sm:$0xf]
        %v2069 = vld [vmem:[%s7 + $0x24] sm:$0xf]
        %v2070 = vld [vmem:[%s7 + $0x28] sm:$0xf]
        %v2071 = vld [vmem:[%s7 + $0x2c] sm:$0xf]
        %v2072 = vld [vmem:[%s7 + $0x30] sm:$0xf]
        %v2073 = vld [vmem:[%s7 + $0x34] sm:$0xf]
        %v2074 = vld [vmem:[%s7 + $0x38] sm:$0xf]
        %v2075 = vld [vmem:[%s7 + $0x3c] sm:$0xf]
        %v2076 = vld [vmem:[%s7 + $0x40] sm:$0xf]
        %v2077 = vld [vmem:[%s7 + $0x44] sm:$0xf]
        %v2078 = vld [vmem:[%s7 + $0x48] sm:$0xf]
        %v2079 = vld [vmem:[%s7 + $0x4c] sm:$0xf]
        %v2080 = vld [vmem:[%s7 + $0x50] sm:$0xf]
        %v2081 = vld [vmem:[%s7 + $0x54] sm:$0xf]
        %v2082 = vld [vmem:[%s7 + $0x58] sm:$0xf]
        %v2083 = vld [vmem:[%s7 + $0x5c] sm:$0xf]
        %v2084 = vld [vmem:[%s7 + $0x60] sm:$0xf]
        %v2085 = vld [vmem:[%s7 + $0x64] sm:$0xf]
        %v2086 = vld [vmem:[%s7 + $0x68] sm:$0xf]
        %v2087 = vld [vmem:[%s7 + $0x6c] sm:$0xf]
        %v2088 = vld [vmem:[%s7 + $0x70] sm:$0xf]
        %v2089 = vld [vmem:[%s7 + $0x74] sm:$0xf]
        %v2090 = vld [vmem:[%s7 + $0x78] sm:$0xf]
        %v2091 = vld [vmem:[%s7 + $0x7c] sm:$0xf]
        %v2092 = vld [vmem:[%s8] sm:$0x1]
        %v2094 = vlaneseq
        %v2095 = vshrl.u32 %v2094, 7
        %v2096 = vsub.s32 0, %v2095
        %v2097 = vrot.slane %v2092, %v2096
        %v2131 = vunpack.c.l.b16 %v2060
        %v2132 = vunpack.c.l.b16 %v2061
        %v2133 = vunpack.c.l.b16 %v2062
        %v2134 = vunpack.c.l.b16 %v2063
        %v2135 = vunpack.c.l.b16 %v2064
        %v2136 = vunpack.c.l.b16 %v2065
        %v2137 = vunpack.c.l.b16 %v2066
        %v2138 = vunpack.c.l.b16 %v2067
        %v2139 = vunpack.c.l.b16 %v2068
        %v2140 = vunpack.c.l.b16 %v2069
        %v2141 = vunpack.c.l.b16 %v2070
        %v2142 = vunpack.c.l.b16 %v2071
        %v2143 = vunpack.c.l.b16 %v2072
        %v2144 = vunpack.c.l.b16 %v2073
        %v2145 = vunpack.c.l.b16 %v2074
        %v2146 = vunpack.c.l.b16 %v2075
        %v2147 = vunpack.c.l.b16 %v2076
        %v2148 = vunpack.c.l.b16 %v2077
        %v2149 = vunpack.c.l.b16 %v2078
        %v2150 = vunpack.c.l.b16 %v2079
        %v2151 = vunpack.c.l.b16 %v2080
        %v2152 = vunpack.c.l.b16 %v2081
        %v2153 = vunpack.c.l.b16 %v2082
        %v2154 = vunpack.c.l.b16 %v2083
        %v2155 = vunpack.c.l.b16 %v2084
        %v2156 = vunpack.c.l.b16 %v2085
        %v2157 = vunpack.c.l.b16 %v2086
        %v2158 = vunpack.c.l.b16 %v2087
        %v2159 = vunpack.c.l.b16 %v2088
        %v2160 = vunpack.c.l.b16 %v2089
        %v2161 = vunpack.c.l.b16 %v2090
        %v2162 = vunpack.c.l.b16 %v2091
        %v2163 = vpack.c.b16 %v2132, %v2131
        %v2164 = vpack.c.b16 %v2134, %v2133
        %v2165 = vpack.c.b16 %v2136, %v2135
        %v2166 = vpack.c.b16 %v2138, %v2137
        %v2167 = vpack.c.b16 %v2140, %v2139
        %v2168 = vpack.c.b16 %v2142, %v2141
        %v2169 = vpack.c.b16 %v2144, %v2143
        %v2170 = vpack.c.b16 %v2146, %v2145
        %v2171 = vpack.c.b16 %v2148, %v2147
        %v2172 = vpack.c.b16 %v2150, %v2149
        %v2173 = vpack.c.b16 %v2152, %v2151
        %v2174 = vpack.c.b16 %v2154, %v2153
        %v2175 = vpack.c.b16 %v2156, %v2155
        %v2176 = vpack.c.b16 %v2158, %v2157
        %v2177 = vpack.c.b16 %v2160, %v2159
        %v2178 = vpack.c.b16 %v2162, %v2161
        %2195 = vmatprep.subr.bf16.mxu0 0
        %2196 = vmatpush1.bf16.msra.mxu0 %v2170
        %2197 = vmatprep.subr.bf16.mxu0 0
        %2198 = vmatpush1.bf16.msra.mxu0 %v2169
        %2199 = vmatprep.subr.bf16.mxu0 0
        %2200 = vmatpush1.bf16.msra.mxu0 %v2168
        %2201 = vmatprep.subr.bf16.mxu0 0
        %2202 = vmatpush1.bf16.msra.mxu0 %v2167
        %2203 = vmatprep.subr.bf16.mxu0 0
        %2204 = vmatpush1.bf16.msra.mxu0 %v2166
        %2205 = vmatprep.subr.bf16.mxu0 0
        %2206 = vmatpush1.bf16.msra.mxu0 %v2165
        %2207 = vmatprep.subr.bf16.mxu0 0
        %2208 = vmatpush1.bf16.msra.mxu0 %v2164
        %2209 = vmatprep.subr.bf16.mxu0 0
        %2210 = vmatpush1.bf16.msra.mxu0 %v2163
        %2211 = vmatprep.subr.bf16.mxu0 0
        %2212 = vmatpush2.bf16.msra.mxu0 %v2178
        %2213 = vmatprep.subr.bf16.mxu0 0
        %2214 = vmatpush2.bf16.msra.mxu0 %v2177
        %2215 = vmatprep.subr.bf16.mxu0 0
        %2216 = vmatpush2.bf16.msra.mxu0 %v2176
        %2217 = vmatprep.subr.bf16.mxu0 0
        %2218 = vmatpush2.bf16.msra.mxu0 %v2175
        %2219 = vmatprep.subr.bf16.mxu0 0
        %2220 = vmatpush2.bf16.msra.mxu0 %v2174
        %2221 = vmatprep.subr.bf16.mxu0 0
        %2222 = vmatpush2.bf16.msra.mxu0 %v2173
        %2223 = vmatprep.subr.bf16.mxu0 0
        %2224 = vmatpush2.bf16.msra.mxu0 %v2172
        %2225 = vmatprep.subr.bf16.mxu0 0
        %2226 = vmatpush2.bf16.msra.mxu0 %v2171
        %2227 = vmatprep.mubr.bf16.mxu0 %v2059
        %2228 = vmatmul.mubr.bf16.gmra.mxu0 %v2058
        %v2229 = vpop.f32.mrf.mxu0
        %v2230 = vadd.f32 %v2097, %v2229
        %v2231 = vpop.f32.mrf.mxu0
        %v2232 = vpop.f32.mrf.mxu0
        %v2233 = vpop.f32.mrf.mxu0
        %2234 = vdwg.mxu0
        %v2235 = vpack.c.bf16 %v2230, %v2230
        %v2236 = vld [vmem:[%s9] sm:$0xf]
        %v2237 = vld [vmem:[%s9 + $0x4] sm:$0xf]
        %v2238 = vld [vmem:[%s9 + $0x8] sm:$0xf]
        %v2239 = vld [vmem:[%s9 + $0xc] sm:$0xf]
        %v2240 = vld [vmem:[%s9 + $0x10] sm:$0xf]
        %v2241 = vld [vmem:[%s9 + $0x14] sm:$0xf]
        %v2242 = vld [vmem:[%s9 + $0x18] sm:$0xf]
        %v2243 = vld [vmem:[%s9 + $0x1c] sm:$0xf]
        %v2244 = vld [vmem:[%s10] sm:$0x1]
        %v2246 = vlaneseq
        %v2247 = vshrl.u32 %v2246, 7
        %v2248 = vsub.s32 0, %v2247
        %v2249 = vrot.slane %v2244, %v2248
        %v2259 = vunpack.c.l.b16 %v2236
        %v2260 = vunpack.c.l.b16 %v2237
        %v2261 = vunpack.c.l.b16 %v2238
        %v2262 = vunpack.c.l.b16 %v2239
        %v2263 = vunpack.c.l.b16 %v2240
        %v2264 = vunpack.c.l.b16 %v2241
        %v2265 = vunpack.c.l.b16 %v2242
        %v2266 = vunpack.c.l.b16 %v2243
        %v2267 = vpack.c.b16 %v2260, %v2259
        %v2268 = vpack.c.b16 %v2262, %v2261
        %v2269 = vpack.c.b16 %v2264, %v2263
        %v2270 = vpack.c.b16 %v2266, %v2265
        %vm2275 = vcmask 523264
        %v2277 = vsel %vm2275, %v2235, 0
        %2279 = vmatprep.subr.bf16.mxu0 0
        %2280 = vmatpush1.bf16.msra.mxu0 0
        %2281 = vmatprep.subr.bf16.mxu0 0
        %2282 = vmatpush1.bf16.msra.mxu0 0
        %2283 = vmatprep.subr.bf16.mxu0 0
        %2284 = vmatpush1.bf16.msra.mxu0 0
        %2285 = vmatprep.subr.bf16.mxu0 0
        %2286 = vmatpush1.bf16.msra.mxu0 0
        %2287 = vmatprep.subr.bf16.mxu0 0
        %2288 = vmatpush1.bf16.msra.mxu0 %v2270
        %2289 = vmatprep.subr.bf16.mxu0 0
        %2290 = vmatpush1.bf16.msra.mxu0 %v2269
        %2291 = vmatprep.subr.bf16.mxu0 0
        %2292 = vmatpush1.bf16.msra.mxu0 %v2268
        %2293 = vmatprep.subr.bf16.mxu0 0
        %2294 = vmatpush1.bf16.msra.mxu0 %v2267
        %2295 = vmatprep.subr.bf16.mxu0 0
        %2296 = vmatpush2.bf16.msra.mxu0 0
        %2297 = vmatprep.subr.bf16.mxu0 0
        %2298 = vmatpush2.bf16.msra.mxu0 0
        %2299 = vmatprep.subr.bf16.mxu0 0
        %2300 = vmatpush2.bf16.msra.mxu0 0
        %2301 = vmatprep.subr.bf16.mxu0 0
        %2302 = vmatpush2.bf16.msra.mxu0 0
        %2303 = vmatprep.subr.bf16.mxu0 0
        %2304 = vmatpush2.bf16.msra.mxu0 0
        %2305 = vmatprep.subr.bf16.mxu0 0
        %2306 = vmatpush2.bf16.msra.mxu0 0
        %2307 = vmatprep.subr.bf16.mxu0 0
        %2308 = vmatpush2.bf16.msra.mxu0 0
        %2309 = vmatprep.subr.bf16.mxu0 0
        %2310 = vmatpush2.bf16.msra.mxu0 0
        %2311 = vmatprep.mubr.bf16.mxu0 0
        %2312 = vmatmul.mubr.bf16.gmra.mxu0 %v2277
        %v2313 = vpop.f32.mrf.mxu0
        %v2314 = vadd.f32 %v2249, %v2313
        %v2315 = vpop.f32.mrf.mxu0
        %v2316 = vpop.f32.mrf.mxu0
        %v2317 = vpop.f32.mrf.mxu0
        %2318 = vdwg.mxu0
        %v2319 = vpack.c.bf16 %v2314, %v2314
        %v2320 = vld [vmem:[%s11] sm:$0xf]
        %v2321 = vld [vmem:[%s11 + $0x4] sm:$0xf]
        %v2322 = vld [vmem:[%s11 + $0x8] sm:$0xf]
        %v2323 = vld [vmem:[%s11 + $0xc] sm:$0xf]
        %v2324 = vld [vmem:[%s12] sm:$0x1]
        %v2326 = vlaneseq
        %v2327 = vshrl.u32 %v2326, 7
        %v2328 = vsub.s32 0, %v2327
        %v2329 = vrot.slane %v2324, %v2328
        %v2335 = vunpack.c.l.b16 %v2320
        %v2336 = vunpack.c.l.b16 %v2321
        %v2337 = vunpack.c.l.b16 %v2322
        %v2338 = vunpack.c.l.b16 %v2323
        %v2339 = vpack.c.b16 %v2336, %v2335
        %v2340 = vpack.c.b16 %v2338, %v2337
        %v2344 = vsel %vm536, %v2319, 0
        %2346 = vmatprep.subr.bf16.mxu0 0
        %2347 = vmatpush1.bf16.msra.mxu0 0
        %2348 = vmatprep.subr.bf16.mxu0 0
        %2349 = vmatpush1.bf16.msra.mxu0 0
        %2350 = vmatprep.subr.bf16.mxu0 0
        %2351 = vmatpush1.bf16.msra.mxu0 0
        %2352 = vmatprep.subr.bf16.mxu0 0
        %2353 = vmatpush1.bf16.msra.mxu0 0
        %2354 = vmatprep.subr.bf16.mxu0 0
        %2355 = vmatpush1.bf16.msra.mxu0 0
        %2356 = vmatprep.subr.bf16.mxu0 0
        %2357 = vmatpush1.bf16.msra.mxu0 0
        %2358 = vmatprep.subr.bf16.mxu0 0
        %2359 = vmatpush1.bf16.msra.mxu0 %v2340
        %2360 = vmatprep.subr.bf16.mxu0 0
        %2361 = vmatpush1.bf16.msra.mxu0 %v2339
        %2362 = vmatprep.subr.bf16.mxu0 0
        %2363 = vmatpush2.bf16.msra.mxu0 0
        %2364 = vmatprep.subr.bf16.mxu0 0
        %2365 = vmatpush2.bf16.msra.mxu0 0
        %2366 = vmatprep.subr.bf16.mxu0 0
        %2367 = vmatpush2.bf16.msra.mxu0 0
        %2368 = vmatprep.subr.bf16.mxu0 0
        %2369 = vmatpush2.bf16.msra.mxu0 0
        %2370 = vmatprep.subr.bf16.mxu0 0
        %2371 = vmatpush2.bf16.msra.mxu0 0
        %2372 = vmatprep.subr.bf16.mxu0 0
        %2373 = vmatpush2.bf16.msra.mxu0 0
        %2374 = vmatprep.subr.bf16.mxu0 0
        %2375 = vmatpush2.bf16.msra.mxu0 0
        %2376 = vmatprep.subr.bf16.mxu0 0
        %2377 = vmatpush2.bf16.msra.mxu0 0
        %2378 = vmatprep.mubr.bf16.mxu0 0
        %2379 = vmatmul.mubr.bf16.gmra.mxu0 %v2344
        %v2380 = vpop.f32.mrf.mxu0
        %v2381 = vadd.f32 %v2329, %v2380
        %v2382 = vpop.f32.mrf.mxu0
        %v2383 = vpop.f32.mrf.mxu0
        %v2384 = vpop.f32.mrf.mxu0
        %2385 = vdwg.mxu0
        %vm2386 = vcmask 58368
        %2387 = vst.msk [vmem:[%s433] sm:$0x3] %vm2386, %v2381
        %s2388 = sand.u32 %s313, 1
        %s2389 = scalar_lea.sflag [#allocation7], %s2388
        %s2390 = sand.u32 %s313, 1
        %s2391 = smul.addr %s2390, 2
        %s2392 = scalar_lea.vmem [#allocation6], %s2391
        // Predicated region
        $region77: #{tpu_custom_call.1} parent=71 // pred_check
          %p2393 = pneg %p323
        $region78: #{tpu_custom_call.1} parent=71 // pred_check_branch
          %2395 = sbr.rel (%p2393) target = $region80
        $region79: #{tpu_custom_call.1} parent=71 // pred_region
          %s2397 = ssub.s32 32, 32
          %2398 = vsyncadd %s2389, %s2397
          %s2399 = smul.addr %s27, 32
          %s2400 = scalar_lea.hbm %s13, %s2399
          %s2402 = sshll.u32 %s2392, 4
          %s2403 = int_to_ptr.vmem [resolvable:$true] %s2402
          %2405 = dma.vmem_to_hbm [thread:$0]  %s2403, 32, %s2400, %s2389
        $region80: #{tpu_custom_call.1} parent=71 // pred_fallthru
          _
      $region72: #{tpu_custom_call.1} parent=5 // pred_fallthru
        _
      %p2406 = scmp.le.s32.totalorder 2, %s22
      // Predicated region
      $region81: #{tpu_custom_call.1} parent=5 // pred_check
        %p2407 = pneg %p2406
      $region82: #{tpu_custom_call.1} parent=5 // pred_check_branch
        %2409 = sbr.rel (%p2407) target = $region84
      $region83: #{tpu_custom_call.1} parent=5 // pred_region
        %s2410 = ssub.s32 %s22, 2
        // Predicated region
        $region85: #{tpu_custom_call.1} parent=83 // pred_check
          %p2411 = pneg %p329
        $region86: #{tpu_custom_call.1} parent=83 // pred_check_branch
          %2413 = sbr.rel (%p2411) target = $region88
        $region87: #{tpu_custom_call.1} parent=83 // pred_region
          %s2414 = sand.u32 %s314, 1
          %s2415 = scalar_lea.sflag [#allocation7], %s2414
          %s2416 = sand.u32 %s314, 1
          %s2417 = smul.addr %s2416, 2
          %s2418 = scalar_lea.vmem [#allocation6], %s2417
          %2419 = dma.done %s2415, 32
        $region88: #{tpu_custom_call.1} parent=83 // pred_fallthru
          _
      $region84: #{tpu_custom_call.1} parent=5 // pred_fallthru
        _
    $region6: #{tpu_custom_call.1} parent=1 // loop_footer
      %s26 = sadd.s32 1, %s22
    $region7: #{tpu_custom_call.1} parent=1 // loop_footer_branch
      %21 = sbr.rel target = $region3
    $region8: #{tpu_custom_call.1} parent=1 // loop_exit
      _
    %2420 = vsyncpa [#allocation7], 1
    %s2421 = scalar_lea.sflag [#allocation7], 1
    %2422 = vsyncpa %s2421, 1

</llo_original>
